<compile_context>
chip_gen: v5e
topology: v5e:2x2
jax: 0.10.0
libtpu: 0.0.40
codegen_flags: <defaults>
</compile_context>

<pallas_src>
import functools

import jax
import jax.numpy as jnp
from jax.experimental import pallas as pl
from jax.experimental.pallas import tpu as pltpu

# Logical (PyTorch) dims and lane-padded dims.
D_IN, H, Z = 784, 400, 20
D_IN_P, H_P, Z_P = 896, 512, 128      # 7*128, 4*128, 1*128  (outputs / hidden)
ENC2_P = 2 * Z_P                      # fused mu|logvar head output lanes


def _round_up(x, m):
    return (x + m - 1) // m * m


def _vae_kernel(
    x_ref, eps_ref,
    w1_ref, b1_ref,
    wenc2_ref, benc2_ref,
    w3_ref, b3_ref,
    w4_ref, b4_ref,
    recon_ref, enc2_ref,
):
    x = x_ref[...]                                                   # (TB, 784) bf16

    # encode: fc1 + relu  (bf16 x bf16 -> f32 acc)
    h1 = jnp.dot(x, w1_ref[...], preferred_element_type=jnp.float32) + b1_ref[...]
    h1 = jnp.maximum(h1, 0.0).astype(jnp.bfloat16)                   # (TB, 512)

    # fused fc21|fc22 head: one matmul; mu in lanes [0:128), logvar in [128:256)
    enc2 = jnp.dot(h1, wenc2_ref[...],
                   preferred_element_type=jnp.float32) + benc2_ref[...]
    mu = enc2[:, :Z_P]                                               # (TB, 128)
    logvar = enc2[:, Z_P:]                                           # (TB, 128)

    # reparameterize: z = mu + eps * exp(0.5 * logvar)
    # (padded lanes: wenc2/benc2 padding cols are 0 and eps padding is 0,
    #  so z padded lanes stay exactly 0)
    z = mu + eps_ref[...] * jnp.exp(0.5 * logvar)                    # (TB, 128) f32
    z = z.astype(jnp.bfloat16)

    # decode: fc3 + relu, fc4 + sigmoid
    h3 = jnp.dot(z, w3_ref[...], preferred_element_type=jnp.float32) + b3_ref[...]
    h3 = jnp.maximum(h3, 0.0).astype(jnp.bfloat16)                   # (TB, 512)
    logits = jnp.dot(h3, w4_ref[...],
                     preferred_element_type=jnp.float32) + b4_ref[...]

    recon_ref[...] = jax.nn.sigmoid(logits)                          # (TB, 896) f32
    enc2_ref[...] = enc2                                             # (TB, 256) f32


def vae_mnist_forward(x_nchw, eps, packed, *, tb=None):
    """x_nchw: (B, 1, 28, 28) f32, eps: (B, 20) f32, packed: padded bf16 params.

    Returns (recon (B, 784), mu (B, 20), logvar (B, 20)), all f32."""
    (w1, b1, wenc2, benc2, w3, b3, w4, b4) = packed

    B = x_nchw.shape[0]

    # Batch tile: fill the 256-wide MXU (v6e/v7x) where possible, but keep
    # grid >= 2 whenever the batch allows it so v7x's two TensorCores both get
    # work. On v5e (128x128 MXU) TB=128/256 is already ideal.
    if tb is None:
        if B <= 128:
            tb = _round_up(max(B, 8), 8)
        else:
            half = (_round_up(B, 128) // 2) // 128 * 128
            tb = min(256, max(128, half))
    assert tb % 8 == 0, "batch tile must be sublane-aligned"
    B_pad = _round_up(B, tb)
    grid = (B_pad // tb,)

    # x: only a bf16 cast in the wrapper (no feature padding); pad batch rows
    # only if needed for the last tile.
    x = x_nchw.reshape(B, D_IN).astype(jnp.bfloat16)                 # torch: x.view(-1,784)
    if B_pad != B:
        x = jnp.pad(x, ((0, B_pad - B), (0, 0)))
    # eps is tiny: pad to a lane-aligned (B_pad, 128) slab (padding lanes = 0).
    eps_p = jnp.zeros((B_pad, Z_P), jnp.float32).at[:B, :Z].set(eps)

    def tile_spec(cols):
        return pl.BlockSpec((tb, cols), lambda i: (i, 0))

    def resident_spec(shape):
        # Whole-array block, constant index_map: stays VMEM-resident across
        # all grid steps (no re-DMA).
        return pl.BlockSpec(shape, lambda i: (0, 0))

    in_specs = [
        tile_spec(D_IN),                   # x  (784 = full last dim, legal block)
        tile_spec(Z_P),                    # eps
        resident_spec((D_IN, H_P)),        # w1   bf16
        resident_spec((1, H_P)),           # b1   f32
        resident_spec((H_P, ENC2_P)),      # fused w21|w22  bf16
        resident_spec((1, ENC2_P)),        # fused b21|b22  f32
        resident_spec((Z_P, H_P)),         # w3   bf16
        resident_spec((1, H_P)),           # b3   f32
        resident_spec((H_P, D_IN_P)),      # w4   bf16
        resident_spec((1, D_IN_P)),        # b4   f32
    ]
    out_specs = [tile_spec(D_IN_P), tile_spec(ENC2_P)]
    out_shapes = (
        jax.ShapeDtypeStruct((B_pad, D_IN_P), jnp.float32),          # recon (padded)
        jax.ShapeDtypeStruct((B_pad, ENC2_P), jnp.float32),          # fused mu|logvar
    )

    weight_elems = D_IN * H_P + H_P * ENC2_P + Z_P * H_P + H_P * D_IN_P
    bias_elems = H_P + ENC2_P + H_P + D_IN_P
    cost = pl.CostEstimate(
        flops=2 * B_pad * weight_elems,
        transcendentals=B_pad * (Z_P + D_IN_P),
        bytes_accessed=(
            2 * (B_pad * D_IN + weight_elems)                        # bf16 x + weights
            + 4 * (B_pad * (Z_P + D_IN_P + ENC2_P) + bias_elems)     # f32 eps/outs/biases
        ),
    )

    recon_p, enc2_p = pl.pallas_call(
        _vae_kernel,
        out_shape=out_shapes,
        grid_spec=pltpu.PrefetchScalarGridSpec(
            num_scalar_prefetch=0,
            grid=grid,
            in_specs=in_specs,
            out_specs=out_specs,
        ),
        compiler_params=pltpu.CompilerParams(
            dimension_semantics=("parallel",),
            vmem_limit_bytes=32 << 20,
        ),
        cost_estimate=cost,
    )(x, eps_p, w1, b1, wenc2, benc2, w3, b3, w4, b4)

    # Slice padding away / split the fused head (cheap XLA slices outside).
    recon = recon_p[:B, :D_IN]
    mu = enc2_p[:B, :Z]
    logvar = enc2_p[:B, Z_P:Z_P + Z]
    return recon, mu, logvar


def init_params(key):
    """Deterministic synthetic parameters (shapes match VAE_MNIST.__init__),
    stored transposed vs torch.nn.Linear, i.e. (in_features, out_features)."""
    def linear(key, fan_in, fan_out):
        kw, kb = jax.random.split(key)
        scale = 1.0 / jnp.sqrt(jnp.float32(fan_in))
        w = jax.random.uniform(kw, (fan_in, fan_out), jnp.float32, -scale, scale)
        b = jax.random.uniform(kb, (1, fan_out), jnp.float32, -scale, scale)
        return w, b

    k1, k21, k22, k3, k4 = jax.random.split(key, 5)
    w1, b1 = linear(k1, D_IN, H)
    w21, b21 = linear(k21, H, Z)
    w22, b22 = linear(k22, H, Z)
    w3, b3 = linear(k3, Z, H)
    w4, b4 = linear(k4, H, D_IN)
    return dict(w1=w1, b1=b1, w21=w21, b21=b21, w22=w22, b22=b22,
                w3=w3, b3=b3, w4=w4, b4=b4)


def pack_params(p):
    """Zero-pad output dims to lane-aligned widths, fuse the mu/logvar heads,
    and store weights in bf16 (biases stay f32 and are added post-matmul)."""
    bf16, f32 = jnp.bfloat16, jnp.float32
    w1 = jnp.zeros((D_IN, H_P), bf16).at[:, :H].set(p["w1"].astype(bf16))
    b1 = jnp.zeros((1, H_P), f32).at[:, :H].set(p["b1"])
    wenc2 = (jnp.zeros((H_P, ENC2_P), bf16)
             .at[:H, :Z].set(p["w21"].astype(bf16))
             .at[:H, Z_P:Z_P + Z].set(p["w22"].astype(bf16)))
    benc2 = (jnp.zeros((1, ENC2_P), f32)
             .at[:, :Z].set(p["b21"])
             .at[:, Z_P:Z_P + Z].set(p["b22"]))
    w3 = jnp.zeros((Z_P, H_P), bf16).at[:Z, :H].set(p["w3"].astype(bf16))
    b3 = jnp.zeros((1, H_P), f32).at[:, :H].set(p["b3"])
    w4 = jnp.zeros((H_P, D_IN_P), bf16).at[:H, :D_IN].set(p["w4"].astype(bf16))
    b4 = jnp.zeros((1, D_IN_P), f32).at[:, :D_IN].set(p["b4"])
    return (w1, b1, wenc2, benc2, w3, b3, w4, b4)


def vae_mnist_reference(x_nchw, eps, p):
    """Pure-JAX f32 reference (unpadded params) for correctness check."""
    x = x_nchw.reshape(x_nchw.shape[0], D_IN)
    h1 = jnp.maximum(x @ p["w1"] + p["b1"], 0.0)
    mu = h1 @ p["w21"] + p["b21"]
    logvar = h1 @ p["w22"] + p["b22"]
    z = mu + eps * jnp.exp(0.5 * logvar)
    h3 = jnp.maximum(z @ p["w3"] + p["b3"], 0.0)
    recon = jax.nn.sigmoid(h3 @ p["w4"] + p["b4"])
    return recon, mu, logvar


def _check(x, eps, params, packed, fwd):
    recon, mu, logvar = jax.block_until_ready(fwd(x, eps, packed))
    recon_r, mu_r, logvar_r = vae_mnist_reference(x, eps, params)
    B = x.shape[0]
    assert recon.shape == (B, D_IN) and mu.shape == (B, Z) and logvar.shape == (B, Z)
    # bf16 MXU operands vs f32 reference -> relaxed tolerance.
    assert jnp.allclose(recon, recon_r, atol=2e-2, rtol=2e-2)
    assert jnp.allclose(mu, mu_r, atol=2e-2, rtol=2e-2)
    assert jnp.allclose(logvar, logvar_r, atol=2e-2, rtol=2e-2)


if __name__ == "__main__":
    key = jax.random.PRNGKey(0)
    k_x, k_eps, k_p, k_x2, k_eps2 = jax.random.split(key, 5)

    params = init_params(k_p)
    packed = pack_params(params)

    # Small single-tile case (B=8 -> one grid step).
    B = 8
    x = jax.random.normal(k_x, (B, 1, 28, 28), jnp.float32)
    eps = jax.random.normal(k_eps, (B, Z), jnp.float32)
    _check(x, eps, params, packed, jax.jit(vae_mnist_forward))

    # Multi-tile case exercising the batch grid + resident weights (tb=8, 4 steps).
    B2 = 32
    x2 = jax.random.normal(k_x2, (B2, 1, 28, 28), jnp.float32)
    eps2 = jax.random.normal(k_eps2, (B2, Z), jnp.float32)
    _check(x2, eps2, params, packed,
           jax.jit(functools.partial(vae_mnist_forward, tb=8)))

    print("KERNEL_OK")
</pallas_src>

<mosaic_0001>
module attributes {stable_mosaic.version = 11 : i64} {
  func.func @_vae_kernel(%arg0: i32, %arg1: memref<8x784xbf16, #tpu.memory_space<vmem>>, %arg2: memref<8x128xf32, #tpu.memory_space<vmem>>, %arg3: memref<784x512xbf16, #tpu.memory_space<vmem>>, %arg4: memref<1x512xf32, #tpu.memory_space<vmem>>, %arg5: memref<512x256xbf16, #tpu.memory_space<vmem>>, %arg6: memref<1x256xf32, #tpu.memory_space<vmem>>, %arg7: memref<128x512xbf16, #tpu.memory_space<vmem>>, %arg8: memref<1x512xf32, #tpu.memory_space<vmem>>, %arg9: memref<512x896xbf16, #tpu.memory_space<vmem>>, %arg10: memref<1x896xf32, #tpu.memory_space<vmem>>, %arg11: memref<8x896xf32, #tpu.memory_space<vmem>>, %arg12: memref<8x256xf32, #tpu.memory_space<vmem>>) attributes {dimension_semantics = [#tpu.dimension_semantics<parallel>], iteration_bounds = array<i64: 1>, scalar_prefetch = 0 : i64, scratch_operands = 0 : i64, tpu.core_type = #tpu.core_type<tc>, window_params = [{transform_indices = @transform_0, window_bounds = array<i64: 8, 784>}, {transform_indices = @transform_1, window_bounds = array<i64: 8, 128>}, {pipeline_mode = #tpu.pipeline_mode<synchronous>, transform_indices = @transform_2, window_bounds = array<i64: 784, 512>}, {pipeline_mode = #tpu.pipeline_mode<synchronous>, transform_indices = @transform_3, window_bounds = array<i64: 1, 512>}, {pipeline_mode = #tpu.pipeline_mode<synchronous>, transform_indices = @transform_4, window_bounds = array<i64: 512, 256>}, {pipeline_mode = #tpu.pipeline_mode<synchronous>, transform_indices = @transform_5, window_bounds = array<i64: 1, 256>}, {pipeline_mode = #tpu.pipeline_mode<synchronous>, transform_indices = @transform_6, window_bounds = array<i64: 128, 512>}, {pipeline_mode = #tpu.pipeline_mode<synchronous>, transform_indices = @transform_7, window_bounds = array<i64: 1, 512>}, {pipeline_mode = #tpu.pipeline_mode<synchronous>, transform_indices = @transform_8, window_bounds = array<i64: 512, 896>}, {pipeline_mode = #tpu.pipeline_mode<synchronous>, transform_indices = @transform_9, window_bounds = array<i64: 1, 896>}, {transform_indices = @transform_10, window_bounds = array<i64: 8, 896>}, {transform_indices = @transform_11, window_bounds = array<i64: 8, 256>}]} {
    %c0 = arith.constant 0 : index
    %c0_0 = arith.constant 0 : index
    %0 = vector.load %arg1[%c0, %c0_0] : memref<8x784xbf16, #tpu.memory_space<vmem>>, vector<8x784xbf16>
    %c0_1 = arith.constant 0 : index
    %c0_2 = arith.constant 0 : index
    %1 = vector.load %arg3[%c0_1, %c0_2] : memref<784x512xbf16, #tpu.memory_space<vmem>>, vector<784x512xbf16>
    %cst = arith.constant dense<0.000000e+00> : vector<8x512xf32>
    %2 = tpu.matmul %0, %1, %cst {dimension_numbers = #tpu.dot_dimension_numbers<[1], [0], [0], [1], [0, 0, 1, 1], [], []>} : vector<8x784xbf16>, vector<784x512xbf16>, vector<8x512xf32> -> vector<8x512xf32>
    %c0_3 = arith.constant 0 : index
    %c0_4 = arith.constant 0 : index
    %3 = vector.load %arg4[%c0_3, %c0_4] : memref<1x512xf32, #tpu.memory_space<vmem>>, vector<1x512xf32>
    %4 = vector.broadcast %3 : vector<1x512xf32> to vector<8x512xf32>
    %5 = arith.addf %2, %4 : vector<8x512xf32>
    %cst_5 = arith.constant 0.000000e+00 : f32
    %6 = vector.broadcast %cst_5 : f32 to vector<8x512xf32>
    %7 = arith.maximumf %5, %6 : vector<8x512xf32>
    %8 = arith.truncf %7 : vector<8x512xf32> to vector<8x512xbf16>
    %c0_6 = arith.constant 0 : index
    %c0_7 = arith.constant 0 : index
    %9 = vector.load %arg5[%c0_6, %c0_7] : memref<512x256xbf16, #tpu.memory_space<vmem>>, vector<512x256xbf16>
    %cst_8 = arith.constant dense<0.000000e+00> : vector<8x256xf32>
    %10 = tpu.matmul %8, %9, %cst_8 {dimension_numbers = #tpu.dot_dimension_numbers<[1], [0], [0], [1], [0, 0, 1, 1], [], []>} : vector<8x512xbf16>, vector<512x256xbf16>, vector<8x256xf32> -> vector<8x256xf32>
    %c0_9 = arith.constant 0 : index
    %c0_10 = arith.constant 0 : index
    %11 = vector.load %arg6[%c0_9, %c0_10] : memref<1x256xf32, #tpu.memory_space<vmem>>, vector<1x256xf32>
    %12 = vector.broadcast %11 : vector<1x256xf32> to vector<8x256xf32>
    %13 = arith.addf %10, %12 : vector<8x256xf32>
    %14 = vector.extract_strided_slice %13 {offsets = [0, 0], sizes = [8, 128], strides = [1, 1]} : vector<8x256xf32> to vector<8x128xf32>
    %15 = vector.extract_strided_slice %13 {offsets = [0, 128], sizes = [8, 128], strides = [1, 1]} : vector<8x256xf32> to vector<8x128xf32>
    %c0_11 = arith.constant 0 : index
    %c0_12 = arith.constant 0 : index
    %16 = vector.load %arg2[%c0_11, %c0_12] : memref<8x128xf32, #tpu.memory_space<vmem>>, vector<8x128xf32>
    %cst_13 = arith.constant 5.000000e-01 : f32
    %17 = vector.broadcast %cst_13 : f32 to vector<8x128xf32>
    %18 = arith.mulf %17, %15 : vector<8x128xf32>
    %19 = math.exp %18 : vector<8x128xf32>
    %20 = arith.mulf %16, %19 : vector<8x128xf32>
    %21 = arith.addf %14, %20 : vector<8x128xf32>
    %22 = arith.truncf %21 : vector<8x128xf32> to vector<8x128xbf16>
    %c0_14 = arith.constant 0 : index
    %c0_15 = arith.constant 0 : index
    %23 = vector.load %arg7[%c0_14, %c0_15] : memref<128x512xbf16, #tpu.memory_space<vmem>>, vector<128x512xbf16>
    %cst_16 = arith.constant dense<0.000000e+00> : vector<8x512xf32>
    %24 = tpu.matmul %22, %23, %cst_16 {dimension_numbers = #tpu.dot_dimension_numbers<[1], [0], [0], [1], [0, 0, 1, 1], [], []>} : vector<8x128xbf16>, vector<128x512xbf16>, vector<8x512xf32> -> vector<8x512xf32>
    %c0_17 = arith.constant 0 : index
    %c0_18 = arith.constant 0 : index
    %25 = vector.load %arg8[%c0_17, %c0_18] : memref<1x512xf32, #tpu.memory_space<vmem>>, vector<1x512xf32>
    %26 = vector.broadcast %25 : vector<1x512xf32> to vector<8x512xf32>
    %27 = arith.addf %24, %26 : vector<8x512xf32>
    %cst_19 = arith.constant 0.000000e+00 : f32
    %28 = vector.broadcast %cst_19 : f32 to vector<8x512xf32>
    %29 = arith.maximumf %27, %28 : vector<8x512xf32>
    %30 = arith.truncf %29 : vector<8x512xf32> to vector<8x512xbf16>
    %c0_20 = arith.constant 0 : index
    %c0_21 = arith.constant 0 : index
    %31 = vector.load %arg9[%c0_20, %c0_21] : memref<512x896xbf16, #tpu.memory_space<vmem>>, vector<512x896xbf16>
    %cst_22 = arith.constant dense<0.000000e+00> : vector<8x896xf32>
    %32 = tpu.matmul %30, %31, %cst_22 {dimension_numbers = #tpu.dot_dimension_numbers<[1], [0], [0], [1], [0, 0, 1, 1], [], []>} : vector<8x512xbf16>, vector<512x896xbf16>, vector<8x896xf32> -> vector<8x896xf32>
    %c0_23 = arith.constant 0 : index
    %c0_24 = arith.constant 0 : index
    %33 = vector.load %arg10[%c0_23, %c0_24] : memref<1x896xf32, #tpu.memory_space<vmem>>, vector<1x896xf32>
    %34 = vector.broadcast %33 : vector<1x896xf32> to vector<8x896xf32>
    %35 = arith.addf %32, %34 : vector<8x896xf32>
    %36 = arith.negf %35 : vector<8x896xf32>
    %37 = math.exp %36 : vector<8x896xf32>
    %cst_25 = arith.constant 1.000000e+00 : f32
    %38 = vector.broadcast %cst_25 : f32 to vector<8x896xf32>
    %39 = arith.addf %38, %37 : vector<8x896xf32>
    %40 = arith.divf %38, %39 : vector<8x896xf32>
    %c0_26 = arith.constant 0 : index
    %c0_27 = arith.constant 0 : index
    %41 = vector.load %arg11[%c0_26, %c0_27] : memref<8x896xf32, #tpu.memory_space<vmem>>, vector<8x896xf32>
    tpu.vector_store %arg11[%c0_26, %c0_27], %40 {strides = array<i32>} : memref<8x896xf32, #tpu.memory_space<vmem>>, vector<8x896xf32>,
    %c0_28 = arith.constant 0 : index
    %c0_29 = arith.constant 0 : index
    %42 = vector.load %arg12[%c0_28, %c0_29] : memref<8x256xf32, #tpu.memory_space<vmem>>, vector<8x256xf32>
    tpu.vector_store %arg12[%c0_28, %c0_29], %13 {strides = array<i32>} : memref<8x256xf32, #tpu.memory_space<vmem>>, vector<8x256xf32>,
    return
  }
  func.func @transform_0(%arg0: i32) -> (i32, i32) {
    %c0_i32 = arith.constant 0 : i32
    %c0_i32_0 = arith.constant 0 : i32
    return %arg0, %c0_i32 : i32, i32
  }
  func.func @transform_1(%arg0: i32) -> (i32, i32) {
    %c0_i32 = arith.constant 0 : i32
    %c0_i32_0 = arith.constant 0 : i32
    return %arg0, %c0_i32 : i32, i32
  }
  func.func @transform_2(%arg0: i32) -> (i32, i32) {
    %c0_i32 = arith.constant 0 : i32
    %c0_i32_0 = arith.constant 0 : i32
    %c0_i32_1 = arith.constant 0 : i32
    return %c0_i32, %c0_i32_0 : i32, i32
  }
  func.func @transform_3(%arg0: i32) -> (i32, i32) {
    %c0_i32 = arith.constant 0 : i32
    %c0_i32_0 = arith.constant 0 : i32
    %c0_i32_1 = arith.constant 0 : i32
    return %c0_i32, %c0_i32_0 : i32, i32
  }
  func.func @transform_4(%arg0: i32) -> (i32, i32) {
    %c0_i32 = arith.constant 0 : i32
    %c0_i32_0 = arith.constant 0 : i32
    %c0_i32_1 = arith.constant 0 : i32
    return %c0_i32, %c0_i32_0 : i32, i32
  }
  func.func @transform_5(%arg0: i32) -> (i32, i32) {
    %c0_i32 = arith.constant 0 : i32
    %c0_i32_0 = arith.constant 0 : i32
    %c0_i32_1 = arith.constant 0 : i32
    return %c0_i32, %c0_i32_0 : i32, i32
  }
  func.func @transform_6(%arg0: i32) -> (i32, i32) {
    %c0_i32 = arith.constant 0 : i32
    %c0_i32_0 = arith.constant 0 : i32
    %c0_i32_1 = arith.constant 0 : i32
    return %c0_i32, %c0_i32_0 : i32, i32
  }
  func.func @transform_7(%arg0: i32) -> (i32, i32) {
    %c0_i32 = arith.constant 0 : i32
    %c0_i32_0 = arith.constant 0 : i32
    %c0_i32_1 = arith.constant 0 : i32
    return %c0_i32, %c0_i32_0 : i32, i32
  }
  func.func @transform_8(%arg0: i32) -> (i32, i32) {
    %c0_i32 = arith.constant 0 : i32
    %c0_i32_0 = arith.constant 0 : i32
    %c0_i32_1 = arith.constant 0 : i32
    return %c0_i32, %c0_i32_0 : i32, i32
  }
  func.func @transform_9(%arg0: i32) -> (i32, i32) {
    %c0_i32 = arith.constant 0 : i32
    %c0_i32_0 = arith.constant 0 : i32
    %c0_i32_1 = arith.constant 0 : i32
    return %c0_i32, %c0_i32_0 : i32, i32
  }
  func.func @transform_10(%arg0: i32) -> (i32, i32) {
    %c0_i32 = arith.constant 0 : i32
    %c0_i32_0 = arith.constant 0 : i32
    return %arg0, %c0_i32 : i32, i32
  }
  func.func @transform_11(%arg0: i32) -> (i32, i32) {
    %c0_i32 = arith.constant 0 : i32
    %c0_i32_0 = arith.constant 0 : i32
    return %arg0, %c0_i32 : i32, i32
  }
}

</mosaic_0001>

<llo_original>
// kernel: vae_mnist_forward.1
$region0: #{vae_mnist_forward.1}
  #allocation0 [shape = 'u32[]', space=smem, size = 0x4, offset = 0x4, fixed_abs, tag = 'smem constant byte address 0x4 - core index']
  #allocation1 [shape = 'u32[72,128]{1,0:T(1,128)}', space=vmem, size = 0x9000, scoped, tag = 'internal scratch']
  %s0 = inlined_call_operand.vmem [shape: bf16[8,784], index: 0, kind: input, shape index: {}]
  %s1 = inlined_call_operand.vmem [shape: f32[8,128], index: 1, kind: input, shape index: {}]
  %s2 = inlined_call_operand.hbm [shape: bf16[784,512], index: 2, kind: input, shape index: {}]
  %s3 = inlined_call_operand.vmem [shape: f32[1,512], index: 3, kind: input, shape index: {}]
  %s4 = inlined_call_operand.vmem [shape: bf16[512,256], index: 4, kind: input, shape index: {}]
  %s5 = inlined_call_operand.vmem [shape: f32[1,256], index: 5, kind: input, shape index: {}]
  %s6 = inlined_call_operand.hbm [shape: bf16[128,512], index: 6, kind: input, shape index: {}]
  %s7 = inlined_call_operand.vmem [shape: f32[1,512], index: 7, kind: input, shape index: {}]
  %s8 = inlined_call_operand.hbm [shape: bf16[512,896], index: 8, kind: input, shape index: {}]
  %s9 = inlined_call_operand.vmem [shape: f32[1,896], index: 9, kind: input, shape index: {}]
  %s10 = inlined_call_operand.hbm [shape: f32[8,896], index: 10, kind: output, shape index: {0}]
  %s11 = inlined_call_operand.vmem [shape: f32[8,256], index: 11, kind: output, shape index: {1}]
  %12 = xla_tuple %s10, %s11
  %s13 = sld [smem:[#allocation0]]
  $region70: #{vae_mnist_forward.1} parent=0
    _
  %s15 = ssub.s32 1, %s13
  %s16 = scalar_select 0, %s15, %s13
  $region1: #{vae_mnist_forward.1} parent=0
    #allocation2 [shape = 'u8[802816]{0}', space=vmem, size = 0xc4000, scoped, tag = 'input window, operand 2, single buffered']
    #allocation3 [shape = 's32[1]{0}', space=sflag, size = 0x4, scoped, tag = 'scoped memory for vae_mnist_forward.1']
    #allocation4 [shape = 's32[1]{0}', space=sflag, size = 0x4, scoped, tag = 'scoped memory for vae_mnist_forward.1']
    #allocation5 [shape = 'u8[131072]{0}', space=vmem, size = 0x20000, scoped, tag = 'input window, operand 6, single buffered']
    #allocation6 [shape = 's32[1]{0}', space=sflag, size = 0x4, scoped, tag = 'scoped memory for vae_mnist_forward.1']
    #allocation7 [shape = 'u8[917504]{0}', space=vmem, size = 0xe0000, scoped, tag = 'input window, operand 8, single buffered']
    #allocation8 [shape = 'u8[28672]{0}', space=vmem, size = 0x7000, scoped, tag = 'output window, operand 0, single buffered']
    %17 = vsyncpa [#allocation3], 0
    %18 = vsyncpa [#allocation6], 0
    %19 = vsyncpa [#allocation4], 0
    // Predicated region
    $region2: #{vae_mnist_forward.1} parent=1 // pred_check
      _
    $region3: #{vae_mnist_forward.1} parent=1 // pred_check_branch
      %21 = sbr.rel (0) target = $region5
    $region4: #{vae_mnist_forward.1} parent=1 // pred_region
      _
    $region5: #{vae_mnist_forward.1} parent=1 // pred_fallthru
      _
    // Predicated region
    $region6: #{vae_mnist_forward.1} parent=1 // pred_check
      _
    $region7: #{vae_mnist_forward.1} parent=1 // pred_check_branch
      %23 = sbr.rel (0) target = $region9
    $region8: #{vae_mnist_forward.1} parent=1 // pred_region
      _
    $region9: #{vae_mnist_forward.1} parent=1 // pred_fallthru
      _
    // Predicated region
    $region10: #{vae_mnist_forward.1} parent=1 // pred_check
      _
    $region11: #{vae_mnist_forward.1} parent=1 // pred_check_branch
      %25 = sbr.rel (0) target = $region13
    $region12: #{vae_mnist_forward.1} parent=1 // pred_region
      %27 = vsyncadd [#allocation3], 0
      %s28 = sshll.u32 %s2, 4
      %s29 = int_to_ptr.hbm [resolvable:$true] %s28
      %s30 = sshll.u32 [#allocation2], 4
      %s31 = int_to_ptr.vmem [resolvable:$true] %s30
      %36 = dma.hbm_to_vmem [thread:$0]  %s29, 25088, %s31, [#allocation3], 256, 256, 16
    $region13: #{vae_mnist_forward.1} parent=1 // pred_fallthru
      _
    // Predicated region
    $region14: #{vae_mnist_forward.1} parent=1 // pred_check
      _
    $region15: #{vae_mnist_forward.1} parent=1 // pred_check_branch
      %38 = sbr.rel (0) target = $region17
    $region16: #{vae_mnist_forward.1} parent=1 // pred_region
      _
    $region17: #{vae_mnist_forward.1} parent=1 // pred_fallthru
      _
    // Predicated region
    $region18: #{vae_mnist_forward.1} parent=1 // pred_check
      _
    $region19: #{vae_mnist_forward.1} parent=1 // pred_check_branch
      %40 = sbr.rel (0) target = $region21
    $region20: #{vae_mnist_forward.1} parent=1 // pred_region
      _
    $region21: #{vae_mnist_forward.1} parent=1 // pred_fallthru
      _
    // Predicated region
    $region22: #{vae_mnist_forward.1} parent=1 // pred_check
      _
    $region23: #{vae_mnist_forward.1} parent=1 // pred_check_branch
      %42 = sbr.rel (0) target = $region25
    $region24: #{vae_mnist_forward.1} parent=1 // pred_region
      _
    $region25: #{vae_mnist_forward.1} parent=1 // pred_fallthru
      _
    // Predicated region
    $region26: #{vae_mnist_forward.1} parent=1 // pred_check
      _
    $region27: #{vae_mnist_forward.1} parent=1 // pred_check_branch
      %44 = sbr.rel (0) target = $region29
    $region28: #{vae_mnist_forward.1} parent=1 // pred_region
      %46 = vsyncadd [#allocation6], 0
      %s47 = sshll.u32 %s6, 4
      %s48 = int_to_ptr.hbm [resolvable:$true] %s47
      %s49 = sshll.u32 [#allocation5], 4
      %s50 = int_to_ptr.vmem [resolvable:$true] %s49
      %55 = dma.hbm_to_vmem [thread:$0]  %s48, 4096, %s50, [#allocation6], 256, 256, 16
    $region29: #{vae_mnist_forward.1} parent=1 // pred_fallthru
      _
    // Predicated region
    $region30: #{vae_mnist_forward.1} parent=1 // pred_check
      _
    $region31: #{vae_mnist_forward.1} parent=1 // pred_check_branch
      %57 = sbr.rel (0) target = $region33
    $region32: #{vae_mnist_forward.1} parent=1 // pred_region
      _
    $region33: #{vae_mnist_forward.1} parent=1 // pred_fallthru
      _
    // Predicated region
    $region34: #{vae_mnist_forward.1} parent=1 // pred_check
      _
    $region35: #{vae_mnist_forward.1} parent=1 // pred_check_branch
      %59 = sbr.rel (0) target = $region37
    $region36: #{vae_mnist_forward.1} parent=1 // pred_region
      %61 = vsyncadd [#allocation6], 0
      %s62 = sshll.u32 %s8, 4
      %s63 = int_to_ptr.hbm [resolvable:$true] %s62
      %s64 = sshll.u32 [#allocation7], 4
      %s65 = int_to_ptr.vmem [resolvable:$true] %s64
      %70 = dma.hbm_to_vmem [thread:$0]  %s63, 28672, %s65, [#allocation6], 448, 448, 28
    $region37: #{vae_mnist_forward.1} parent=1 // pred_fallthru
      _
    // Predicated region
    $region38: #{vae_mnist_forward.1} parent=1 // pred_check
      _
    $region39: #{vae_mnist_forward.1} parent=1 // pred_check_branch
      %72 = sbr.rel (0) target = $region41
    $region40: #{vae_mnist_forward.1} parent=1 // pred_region
      _
    $region41: #{vae_mnist_forward.1} parent=1 // pred_fallthru
      _
    // Predicated region
    $region42: #{vae_mnist_forward.1} parent=1 // pred_check
      _
    $region43: #{vae_mnist_forward.1} parent=1 // pred_check_branch
      %74 = sbr.rel (0) target = $region45
    $region44: #{vae_mnist_forward.1} parent=1 // pred_region
      %76 = dma.done [#allocation3], 25088
    $region45: #{vae_mnist_forward.1} parent=1 // pred_fallthru
      _
    // Predicated region
    $region46: #{vae_mnist_forward.1} parent=1 // pred_check
      _
    $region47: #{vae_mnist_forward.1} parent=1 // pred_check_branch
      %78 = sbr.rel (0) target = $region49
    $region48: #{vae_mnist_forward.1} parent=1 // pred_region
      %80 = dma.done [#allocation6], 4096
    $region49: #{vae_mnist_forward.1} parent=1 // pred_fallthru
      _
    // Predicated region
    $region50: #{vae_mnist_forward.1} parent=1 // pred_check
      _
    $region51: #{vae_mnist_forward.1} parent=1 // pred_check_branch
      %82 = sbr.rel (0) target = $region53
    $region52: #{vae_mnist_forward.1} parent=1 // pred_region
      %84 = dma.done [#allocation6], 28672
    $region53: #{vae_mnist_forward.1} parent=1 // pred_fallthru
      _
    %v86 = vld [vmem:[%s0] sm:$0xff]
    %v87 = vld [vmem:[%s0 + $0x8] sm:$0xff]
    %v88 = vld [vmem:[%s0 + $0x10] sm:$0xff]
    %v89 = vld [vmem:[%s0 + $0x18] sm:$0xf]
    %v90 = vld [vmem:[#allocation2] sm:$0xff]
    %v91 = vld [vmem:[#allocation2 + $0x8] sm:$0xff]
    %v92 = vld [vmem:[#allocation2 + $0x10] sm:$0xff]
    %v93 = vld [vmem:[#allocation2 + $0x18] sm:$0xff]
    %v94 = vld [vmem:[#allocation2 + $0x20] sm:$0xff]
    %v95 = vld [vmem:[#allocation2 + $0x28] sm:$0xff]
    %v96 = vld [vmem:[#allocation2 + $0x30] sm:$0xff]
    %v97 = vld [vmem:[#allocation2 + $0x38] sm:$0xff]
    %v98 = vld [vmem:[#allocation2 + $0x40] sm:$0xff]
    %v99 = vld [vmem:[#allocation2 + $0x48] sm:$0xff]
    %v100 = vld [vmem:[#allocation2 + $0x50] sm:$0xff]
    %v101 = vld [vmem:[#allocation2 + $0x58] sm:$0xff]
    %v102 = vld [vmem:[#allocation2 + $0x60] sm:$0xff]
    %v103 = vld [vmem:[#allocation2 + $0x68] sm:$0xff]
    %v104 = vld [vmem:[#allocation2 + $0x70] sm:$0xff]
    %v105 = vld [vmem:[#allocation2 + $0x78] sm:$0xff]
    %v106 = vld [vmem:[#allocation2 + $0x80] sm:$0xff]
    %v107 = vld [vmem:[#allocation2 + $0x88] sm:$0xff]
    %v108 = vld [vmem:[#allocation2 + $0x90] sm:$0xff]
    %v109 = vld [vmem:[#allocation2 + $0x98] sm:$0xff]
    %v110 = vld [vmem:[#allocation2 + $0xa0] sm:$0xff]
    %v111 = vld [vmem:[#allocation2 + $0xa8] sm:$0xff]
    %v112 = vld [vmem:[#allocation2 + $0xb0] sm:$0xff]
    %v113 = vld [vmem:[#allocation2 + $0xb8] sm:$0xff]
    %v114 = vld [vmem:[#allocation2 + $0xc0] sm:$0xff]
    %v115 = vld [vmem:[#allocation2 + $0xc8] sm:$0xff]
    %v116 = vld [vmem:[#allocation2 + $0xd0] sm:$0xff]
    %v117 = vld [vmem:[#allocation2 + $0xd8] sm:$0xff]
    %v118 = vld [vmem:[#allocation2 + $0xe0] sm:$0xff]
    %v119 = vld [vmem:[#allocation2 + $0xe8] sm:$0xff]
    %v120 = vld [vmem:[#allocation2 + $0xf0] sm:$0xff]
    %v121 = vld [vmem:[#allocation2 + $0xf8] sm:$0xff]
    %v122 = vld [vmem:[#allocation2 + $0x100] sm:$0xff]
    %v123 = vld [vmem:[#allocation2 + $0x108] sm:$0xff]
    %v124 = vld [vmem:[#allocation2 + $0x110] sm:$0xff]
    %v125 = vld [vmem:[#allocation2 + $0x118] sm:$0xff]
    %v126 = vld [vmem:[#allocation2 + $0x120] sm:$0xff]
    %v127 = vld [vmem:[#allocation2 + $0x128] sm:$0xff]
    %v128 = vld [vmem:[#allocation2 + $0x130] sm:$0xff]
    %v129 = vld [vmem:[#allocation2 + $0x138] sm:$0xff]
    %v130 = vld [vmem:[#allocation2 + $0x140] sm:$0xff]
    %v131 = vld [vmem:[#allocation2 + $0x148] sm:$0xff]
    %v132 = vld [vmem:[#allocation2 + $0x150] sm:$0xff]
    %v133 = vld [vmem:[#allocation2 + $0x158] sm:$0xff]
    %v134 = vld [vmem:[#allocation2 + $0x160] sm:$0xff]
    %v135 = vld [vmem:[#allocation2 + $0x168] sm:$0xff]
    %v136 = vld [vmem:[#allocation2 + $0x170] sm:$0xff]
    %v137 = vld [vmem:[#allocation2 + $0x178] sm:$0xff]
    %v138 = vld [vmem:[#allocation2 + $0x180] sm:$0xff]
    %v139 = vld [vmem:[#allocation2 + $0x188] sm:$0xff]
    %v140 = vld [vmem:[#allocation2 + $0x190] sm:$0xff]
    %v141 = vld [vmem:[#allocation2 + $0x198] sm:$0xff]
    %v142 = vld [vmem:[#allocation2 + $0x1a0] sm:$0xff]
    %v143 = vld [vmem:[#allocation2 + $0x1a8] sm:$0xff]
    %v144 = vld [vmem:[#allocation2 + $0x1b0] sm:$0xff]
    %v145 = vld [vmem:[#allocation2 + $0x1b8] sm:$0xff]
    %v146 = vld [vmem:[#allocation2 + $0x1c0] sm:$0xff]
    %v147 = vld [vmem:[#allocation2 + $0x1c8] sm:$0xff]
    %v148 = vld [vmem:[#allocation2 + $0x1d0] sm:$0xff]
    %v149 = vld [vmem:[#allocation2 + $0x1d8] sm:$0xff]
    %v150 = vld [vmem:[#allocation2 + $0x1e0] sm:$0xff]
    %v151 = vld [vmem:[#allocation2 + $0x1e8] sm:$0xff]
    %v152 = vld [vmem:[#allocation2 + $0x1f0] sm:$0xff]
    %v153 = vld [vmem:[#allocation2 + $0x1f8] sm:$0xff]
    %v154 = vld [vmem:[#allocation2 + $0x200] sm:$0xff]
    %v155 = vld [vmem:[#allocation2 + $0x208] sm:$0xff]
    %v156 = vld [vmem:[#allocation2 + $0x210] sm:$0xff]
    %v157 = vld [vmem:[#allocation2 + $0x218] sm:$0xff]
    %v158 = vld [vmem:[#allocation2 + $0x220] sm:$0xff]
    %v159 = vld [vmem:[#allocation2 + $0x228] sm:$0xff]
    %v160 = vld [vmem:[#allocation2 + $0x230] sm:$0xff]
    %v161 = vld [vmem:[#allocation2 + $0x238] sm:$0xff]
    %v162 = vld [vmem:[#allocation2 + $0x240] sm:$0xff]
    %v163 = vld [vmem:[#allocation2 + $0x248] sm:$0xff]
    %v164 = vld [vmem:[#allocation2 + $0x250] sm:$0xff]
    %v165 = vld [vmem:[#allocation2 + $0x258] sm:$0xff]
    %v166 = vld [vmem:[#allocation2 + $0x260] sm:$0xff]
    %v167 = vld [vmem:[#allocation2 + $0x268] sm:$0xff]
    %v168 = vld [vmem:[#allocation2 + $0x270] sm:$0xff]
    %v169 = vld [vmem:[#allocation2 + $0x278] sm:$0xff]
    %v170 = vld [vmem:[#allocation2 + $0x280] sm:$0xff]
    %v171 = vld [vmem:[#allocation2 + $0x288] sm:$0xff]
    %v172 = vld [vmem:[#allocation2 + $0x290] sm:$0xff]
    %v173 = vld [vmem:[#allocation2 + $0x298] sm:$0xff]
    %v174 = vld [vmem:[#allocation2 + $0x2a0] sm:$0xff]
    %v175 = vld [vmem:[#allocation2 + $0x2a8] sm:$0xff]
    %v176 = vld [vmem:[#allocation2 + $0x2b0] sm:$0xff]
    %v177 = vld [vmem:[#allocation2 + $0x2b8] sm:$0xff]
    %v178 = vld [vmem:[#allocation2 + $0x2c0] sm:$0xff]
    %v179 = vld [vmem:[#allocation2 + $0x2c8] sm:$0xff]
    %v180 = vld [vmem:[#allocation2 + $0x2d0] sm:$0xff]
    %v181 = vld [vmem:[#allocation2 + $0x2d8] sm:$0xff]
    %v182 = vld [vmem:[#allocation2 + $0x2e0] sm:$0xff]
    %v183 = vld [vmem:[#allocation2 + $0x2e8] sm:$0xff]
    %v184 = vld [vmem:[#allocation2 + $0x2f0] sm:$0xff]
    %v185 = vld [vmem:[#allocation2 + $0x2f8] sm:$0xff]
    %v186 = vld [vmem:[#allocation2 + $0x300] sm:$0xff]
    %v187 = vld [vmem:[#allocation2 + $0x308] sm:$0xff]
    %v188 = vld [vmem:[#allocation2 + $0x310] sm:$0xff]
    %v189 = vld [vmem:[#allocation2 + $0x318] sm:$0xff]
    %v190 = vld [vmem:[#allocation2 + $0x320] sm:$0xff]
    %v191 = vld [vmem:[#allocation2 + $0x328] sm:$0xff]
    %v192 = vld [vmem:[#allocation2 + $0x330] sm:$0xff]
    %v193 = vld [vmem:[#allocation2 + $0x338] sm:$0xff]
    %v194 = vld [vmem:[#allocation2 + $0x340] sm:$0xff]
    %v195 = vld [vmem:[#allocation2 + $0x348] sm:$0xff]
    %v196 = vld [vmem:[#allocation2 + $0x350] sm:$0xff]
    %v197 = vld [vmem:[#allocation2 + $0x358] sm:$0xff]
    %v198 = vld [vmem:[#allocation2 + $0x360] sm:$0xff]
    %v199 = vld [vmem:[#allocation2 + $0x368] sm:$0xff]
    %v200 = vld [vmem:[#allocation2 + $0x370] sm:$0xff]
    %v201 = vld [vmem:[#allocation2 + $0x378] sm:$0xff]
    %v202 = vld [vmem:[#allocation2 + $0x380] sm:$0xff]
    %v203 = vld [vmem:[#allocation2 + $0x388] sm:$0xff]
    %v204 = vld [vmem:[#allocation2 + $0x390] sm:$0xff]
    %v205 = vld [vmem:[#allocation2 + $0x398] sm:$0xff]
    %v206 = vld [vmem:[#allocation2 + $0x3a0] sm:$0xff]
    %v207 = vld [vmem:[#allocation2 + $0x3a8] sm:$0xff]
    %v208 = vld [vmem:[#allocation2 + $0x3b0] sm:$0xff]
    %v209 = vld [vmem:[#allocation2 + $0x3b8] sm:$0xff]
    %v210 = vld [vmem:[#allocation2 + $0x3c0] sm:$0xff]
    %v211 = vld [vmem:[#allocation2 + $0x3c8] sm:$0xff]
    %v212 = vld [vmem:[#allocation2 + $0x3d0] sm:$0xff]
    %v213 = vld [vmem:[#allocation2 + $0x3d8] sm:$0xff]
    %v214 = vld [vmem:[#allocation2 + $0x3e0] sm:$0xff]
    %v215 = vld [vmem:[#allocation2 + $0x3e8] sm:$0xff]
    %v216 = vld [vmem:[#allocation2 + $0x3f0] sm:$0xff]
    %v217 = vld [vmem:[#allocation2 + $0x3f8] sm:$0xff]
    %v218 = vld [vmem:[#allocation2 + $0x400] sm:$0xff]
    %v219 = vld [vmem:[#allocation2 + $0x408] sm:$0xff]
    %v220 = vld [vmem:[#allocation2 + $0x410] sm:$0xff]
    %v221 = vld [vmem:[#allocation2 + $0x418] sm:$0xff]
    %v222 = vld [vmem:[#allocation2 + $0x420] sm:$0xff]
    %v223 = vld [vmem:[#allocation2 + $0x428] sm:$0xff]
    %v224 = vld [vmem:[#allocation2 + $0x430] sm:$0xff]
    %v225 = vld [vmem:[#allocation2 + $0x438] sm:$0xff]
    %v226 = vld [vmem:[#allocation2 + $0x440] sm:$0xff]
    %v227 = vld [vmem:[#allocation2 + $0x448] sm:$0xff]
    %v228 = vld [vmem:[#allocation2 + $0x450] sm:$0xff]
    %v229 = vld [vmem:[#allocation2 + $0x458] sm:$0xff]
    %v230 = vld [vmem:[#allocation2 + $0x460] sm:$0xff]
    %v231 = vld [vmem:[#allocation2 + $0x468] sm:$0xff]
    %v232 = vld [vmem:[#allocation2 + $0x470] sm:$0xff]
    %v233 = vld [vmem:[#allocation2 + $0x478] sm:$0xff]
    %v234 = vld [vmem:[#allocation2 + $0x480] sm:$0xff]
    %v235 = vld [vmem:[#allocation2 + $0x488] sm:$0xff]
    %v236 = vld [vmem:[#allocation2 + $0x490] sm:$0xff]
    %v237 = vld [vmem:[#allocation2 + $0x498] sm:$0xff]
    %v238 = vld [vmem:[#allocation2 + $0x4a0] sm:$0xff]
    %v239 = vld [vmem:[#allocation2 + $0x4a8] sm:$0xff]
    %v240 = vld [vmem:[#allocation2 + $0x4b0] sm:$0xff]
    %v241 = vld [vmem:[#allocation2 + $0x4b8] sm:$0xff]
    %v242 = vld [vmem:[#allocation2 + $0x4c0] sm:$0xff]
    %v243 = vld [vmem:[#allocation2 + $0x4c8] sm:$0xff]
    %v244 = vld [vmem:[#allocation2 + $0x4d0] sm:$0xff]
    %v245 = vld [vmem:[#allocation2 + $0x4d8] sm:$0xff]
    %v246 = vld [vmem:[#allocation2 + $0x4e0] sm:$0xff]
    %v247 = vld [vmem:[#allocation2 + $0x4e8] sm:$0xff]
    %v248 = vld [vmem:[#allocation2 + $0x4f0] sm:$0xff]
    %v249 = vld [vmem:[#allocation2 + $0x4f8] sm:$0xff]
    %v250 = vld [vmem:[#allocation2 + $0x500] sm:$0xff]
    %v251 = vld [vmem:[#allocation2 + $0x508] sm:$0xff]
    %v252 = vld [vmem:[#allocation2 + $0x510] sm:$0xff]
    %v253 = vld [vmem:[#allocation2 + $0x518] sm:$0xff]
    %v254 = vld [vmem:[#allocation2 + $0x520] sm:$0xff]
    %v255 = vld [vmem:[#allocation2 + $0x528] sm:$0xff]
    %v256 = vld [vmem:[#allocation2 + $0x530] sm:$0xff]
    %v257 = vld [vmem:[#allocation2 + $0x538] sm:$0xff]
    %v258 = vld [vmem:[#allocation2 + $0x540] sm:$0xff]
    %v259 = vld [vmem:[#allocation2 + $0x548] sm:$0xff]
    %v260 = vld [vmem:[#allocation2 + $0x550] sm:$0xff]
    %v261 = vld [vmem:[#allocation2 + $0x558] sm:$0xff]
    %v262 = vld [vmem:[#allocation2 + $0x560] sm:$0xff]
    %v263 = vld [vmem:[#allocation2 + $0x568] sm:$0xff]
    %v264 = vld [vmem:[#allocation2 + $0x570] sm:$0xff]
    %v265 = vld [vmem:[#allocation2 + $0x578] sm:$0xff]
    %v266 = vld [vmem:[#allocation2 + $0x580] sm:$0xff]
    %v267 = vld [vmem:[#allocation2 + $0x588] sm:$0xff]
    %v268 = vld [vmem:[#allocation2 + $0x590] sm:$0xff]
    %v269 = vld [vmem:[#allocation2 + $0x598] sm:$0xff]
    %v270 = vld [vmem:[#allocation2 + $0x5a0] sm:$0xff]
    %v271 = vld [vmem:[#allocation2 + $0x5a8] sm:$0xff]
    %v272 = vld [vmem:[#allocation2 + $0x5b0] sm:$0xff]
    %v273 = vld [vmem:[#allocation2 + $0x5b8] sm:$0xff]
    %v274 = vld [vmem:[#allocation2 + $0x5c0] sm:$0xff]
    %v275 = vld [vmem:[#allocation2 + $0x5c8] sm:$0xff]
    %v276 = vld [vmem:[#allocation2 + $0x5d0] sm:$0xff]
    %v277 = vld [vmem:[#allocation2 + $0x5d8] sm:$0xff]
    %v278 = vld [vmem:[#allocation2 + $0x5e0] sm:$0xff]
    %v279 = vld [vmem:[#allocation2 + $0x5e8] sm:$0xff]
    %v280 = vld [vmem:[#allocation2 + $0x5f0] sm:$0xff]
    %v281 = vld [vmem:[#allocation2 + $0x5f8] sm:$0xff]
    %v282 = vld [vmem:[#allocation2 + $0x600] sm:$0xff]
    %v283 = vld [vmem:[#allocation2 + $0x608] sm:$0xff]
    %v284 = vld [vmem:[#allocation2 + $0x610] sm:$0xff]
    %v285 = vld [vmem:[#allocation2 + $0x618] sm:$0xff]
    %v286 = vld [vmem:[%s3] sm:$0xf]
    %v288 = vperm.slane %v286, 0
    %v289 = vperm.slane %v286, 1
    %v290 = vperm.slane %v286, 2
    %v291 = vperm.slane %v286, 3
    %v300 = vunpack.c.l.b16 %v86
    %v301 = vunpack.c.h.b16 %v86
    %v302 = vunpack.c.l.b16 %v87
    %v303 = vunpack.c.h.b16 %v87
    %v304 = vunpack.c.l.b16 %v88
    %v305 = vunpack.c.h.b16 %v88
    %v306 = vunpack.c.l.b16 %v89
    %v307 = vpack.c.b16 %v300, %v300
    %v308 = vpack.c.b16 %v301, %v301
    %v309 = vpack.c.b16 %v302, %v302
    %v310 = vpack.c.b16 %v303, %v303
    %v311 = vpack.c.b16 %v304, %v304
    %v312 = vpack.c.b16 %v305, %v305
    %v313 = vpack.c.b16 %v306, %v306
    %v516 = vunpack.c.l.b16 %v90
    %v517 = vunpack.c.h.b16 %v90
    %v518 = vunpack.c.l.b16 %v91
    %v519 = vunpack.c.h.b16 %v91
    %v520 = vunpack.c.l.b16 %v92
    %v521 = vunpack.c.h.b16 %v92
    %v522 = vunpack.c.l.b16 %v93
    %v523 = vunpack.c.h.b16 %v93
    %v524 = vunpack.c.l.b16 %v94
    %v525 = vunpack.c.h.b16 %v94
    %v526 = vunpack.c.l.b16 %v95
    %v527 = vunpack.c.h.b16 %v95
    %v528 = vunpack.c.l.b16 %v96
    %v529 = vunpack.c.h.b16 %v96
    %v530 = vunpack.c.l.b16 %v97
    %v531 = vunpack.c.h.b16 %v97
    %v532 = vunpack.c.l.b16 %v98
    %v533 = vunpack.c.h.b16 %v98
    %v534 = vunpack.c.l.b16 %v99
    %v535 = vunpack.c.h.b16 %v99
    %v536 = vunpack.c.l.b16 %v100
    %v537 = vunpack.c.h.b16 %v100
    %v538 = vunpack.c.l.b16 %v101
    %v539 = vunpack.c.h.b16 %v101
    %v540 = vunpack.c.l.b16 %v102
    %v541 = vunpack.c.h.b16 %v102
    %v542 = vunpack.c.l.b16 %v103
    %v543 = vunpack.c.h.b16 %v103
    %v544 = vunpack.c.l.b16 %v104
    %v545 = vunpack.c.h.b16 %v104
    %v546 = vunpack.c.l.b16 %v105
    %v547 = vunpack.c.h.b16 %v105
    %v548 = vunpack.c.l.b16 %v106
    %v549 = vunpack.c.h.b16 %v106
    %v550 = vunpack.c.l.b16 %v107
    %v551 = vunpack.c.h.b16 %v107
    %v552 = vunpack.c.l.b16 %v108
    %v553 = vunpack.c.h.b16 %v108
    %v554 = vunpack.c.l.b16 %v109
    %v555 = vunpack.c.h.b16 %v109
    %v556 = vunpack.c.l.b16 %v110
    %v557 = vunpack.c.h.b16 %v110
    %v558 = vunpack.c.l.b16 %v111
    %v559 = vunpack.c.h.b16 %v111
    %v560 = vunpack.c.l.b16 %v112
    %v561 = vunpack.c.h.b16 %v112
    %v562 = vunpack.c.l.b16 %v113
    %v563 = vunpack.c.h.b16 %v113
    %v564 = vunpack.c.l.b16 %v114
    %v565 = vunpack.c.h.b16 %v114
    %v566 = vunpack.c.l.b16 %v115
    %v567 = vunpack.c.h.b16 %v115
    %v568 = vunpack.c.l.b16 %v116
    %v569 = vunpack.c.h.b16 %v116
    %v570 = vunpack.c.l.b16 %v117
    %v571 = vunpack.c.h.b16 %v117
    %v572 = vunpack.c.l.b16 %v118
    %v573 = vunpack.c.h.b16 %v118
    %v574 = vunpack.c.l.b16 %v119
    %v575 = vunpack.c.h.b16 %v119
    %v576 = vunpack.c.l.b16 %v120
    %v577 = vunpack.c.h.b16 %v120
    %v578 = vunpack.c.l.b16 %v121
    %v579 = vunpack.c.h.b16 %v121
    %v580 = vunpack.c.l.b16 %v122
    %v581 = vunpack.c.h.b16 %v122
    %v582 = vunpack.c.l.b16 %v123
    %v583 = vunpack.c.h.b16 %v123
    %v584 = vunpack.c.l.b16 %v124
    %v585 = vunpack.c.h.b16 %v124
    %v586 = vunpack.c.l.b16 %v125
    %v587 = vunpack.c.h.b16 %v125
    %v588 = vunpack.c.l.b16 %v126
    %v589 = vunpack.c.h.b16 %v126
    %v590 = vunpack.c.l.b16 %v127
    %v591 = vunpack.c.h.b16 %v127
    %v592 = vunpack.c.l.b16 %v128
    %v593 = vunpack.c.h.b16 %v128
    %v594 = vunpack.c.l.b16 %v129
    %v595 = vunpack.c.h.b16 %v129
    %v596 = vunpack.c.l.b16 %v130
    %v597 = vunpack.c.h.b16 %v130
    %v598 = vunpack.c.l.b16 %v131
    %v599 = vunpack.c.h.b16 %v131
    %v600 = vunpack.c.l.b16 %v132
    %v601 = vunpack.c.h.b16 %v132
    %v602 = vunpack.c.l.b16 %v133
    %v603 = vunpack.c.h.b16 %v133
    %v604 = vunpack.c.l.b16 %v134
    %v605 = vunpack.c.h.b16 %v134
    %v606 = vunpack.c.l.b16 %v135
    %v607 = vunpack.c.h.b16 %v135
    %v608 = vunpack.c.l.b16 %v136
    %v609 = vunpack.c.h.b16 %v136
    %v610 = vunpack.c.l.b16 %v137
    %v611 = vunpack.c.h.b16 %v137
    %v612 = vunpack.c.l.b16 %v138
    %v613 = vunpack.c.h.b16 %v138
    %v614 = vunpack.c.l.b16 %v139
    %v615 = vunpack.c.h.b16 %v139
    %v616 = vunpack.c.l.b16 %v140
    %v617 = vunpack.c.h.b16 %v140
    %v618 = vunpack.c.l.b16 %v141
    %v619 = vunpack.c.h.b16 %v141
    %v620 = vunpack.c.l.b16 %v142
    %v621 = vunpack.c.h.b16 %v142
    %v622 = vunpack.c.l.b16 %v143
    %v623 = vunpack.c.h.b16 %v143
    %v624 = vunpack.c.l.b16 %v144
    %v625 = vunpack.c.h.b16 %v144
    %v626 = vunpack.c.l.b16 %v145
    %v627 = vunpack.c.h.b16 %v145
    %v628 = vunpack.c.l.b16 %v146
    %v629 = vunpack.c.h.b16 %v146
    %v630 = vunpack.c.l.b16 %v147
    %v631 = vunpack.c.h.b16 %v147
    %v632 = vunpack.c.l.b16 %v148
    %v633 = vunpack.c.h.b16 %v148
    %v634 = vunpack.c.l.b16 %v149
    %v635 = vunpack.c.h.b16 %v149
    %v636 = vunpack.c.l.b16 %v150
    %v637 = vunpack.c.h.b16 %v150
    %v638 = vunpack.c.l.b16 %v151
    %v639 = vunpack.c.h.b16 %v151
    %v640 = vunpack.c.l.b16 %v152
    %v641 = vunpack.c.h.b16 %v152
    %v642 = vunpack.c.l.b16 %v153
    %v643 = vunpack.c.h.b16 %v153
    %v644 = vunpack.c.l.b16 %v154
    %v645 = vunpack.c.h.b16 %v154
    %v646 = vunpack.c.l.b16 %v155
    %v647 = vunpack.c.h.b16 %v155
    %v648 = vunpack.c.l.b16 %v156
    %v649 = vunpack.c.h.b16 %v156
    %v650 = vunpack.c.l.b16 %v157
    %v651 = vunpack.c.h.b16 %v157
    %v652 = vunpack.c.l.b16 %v158
    %v653 = vunpack.c.h.b16 %v158
    %v654 = vunpack.c.l.b16 %v159
    %v655 = vunpack.c.h.b16 %v159
    %v656 = vunpack.c.l.b16 %v160
    %v657 = vunpack.c.h.b16 %v160
    %v658 = vunpack.c.l.b16 %v161
    %v659 = vunpack.c.h.b16 %v161
    %v660 = vunpack.c.l.b16 %v162
    %v661 = vunpack.c.h.b16 %v162
    %v662 = vunpack.c.l.b16 %v163
    %v663 = vunpack.c.h.b16 %v163
    %v664 = vunpack.c.l.b16 %v164
    %v665 = vunpack.c.h.b16 %v164
    %v666 = vunpack.c.l.b16 %v165
    %v667 = vunpack.c.h.b16 %v165
    %v668 = vunpack.c.l.b16 %v166
    %v669 = vunpack.c.h.b16 %v166
    %v670 = vunpack.c.l.b16 %v167
    %v671 = vunpack.c.h.b16 %v167
    %v672 = vunpack.c.l.b16 %v168
    %v673 = vunpack.c.h.b16 %v168
    %v674 = vunpack.c.l.b16 %v169
    %v675 = vunpack.c.h.b16 %v169
    %v676 = vunpack.c.l.b16 %v170
    %v677 = vunpack.c.h.b16 %v170
    %v678 = vunpack.c.l.b16 %v171
    %v679 = vunpack.c.h.b16 %v171
    %v680 = vunpack.c.l.b16 %v172
    %v681 = vunpack.c.h.b16 %v172
    %v682 = vunpack.c.l.b16 %v173
    %v683 = vunpack.c.h.b16 %v173
    %v684 = vunpack.c.l.b16 %v174
    %v685 = vunpack.c.h.b16 %v174
    %v686 = vunpack.c.l.b16 %v175
    %v687 = vunpack.c.h.b16 %v175
    %v688 = vunpack.c.l.b16 %v176
    %v689 = vunpack.c.h.b16 %v176
    %v690 = vunpack.c.l.b16 %v177
    %v691 = vunpack.c.h.b16 %v177
    %v692 = vunpack.c.l.b16 %v178
    %v693 = vunpack.c.h.b16 %v178
    %v694 = vunpack.c.l.b16 %v179
    %v695 = vunpack.c.h.b16 %v179
    %v696 = vunpack.c.l.b16 %v180
    %v697 = vunpack.c.h.b16 %v180
    %v698 = vunpack.c.l.b16 %v181
    %v699 = vunpack.c.h.b16 %v181
    %v700 = vunpack.c.l.b16 %v182
    %v701 = vunpack.c.h.b16 %v182
    %v702 = vunpack.c.l.b16 %v183
    %v703 = vunpack.c.h.b16 %v183
    %v704 = vunpack.c.l.b16 %v184
    %v705 = vunpack.c.h.b16 %v184
    %v706 = vunpack.c.l.b16 %v185
    %v707 = vunpack.c.h.b16 %v185
    %v708 = vunpack.c.l.b16 %v186
    %v709 = vunpack.c.h.b16 %v186
    %v710 = vunpack.c.l.b16 %v187
    %v711 = vunpack.c.h.b16 %v187
    %v712 = vunpack.c.l.b16 %v188
    %v713 = vunpack.c.h.b16 %v188
    %v714 = vunpack.c.l.b16 %v189
    %v715 = vunpack.c.h.b16 %v189
    %v716 = vunpack.c.l.b16 %v190
    %v717 = vunpack.c.h.b16 %v190
    %v718 = vunpack.c.l.b16 %v191
    %v719 = vunpack.c.h.b16 %v191
    %v720 = vunpack.c.l.b16 %v192
    %v721 = vunpack.c.h.b16 %v192
    %v722 = vunpack.c.l.b16 %v193
    %v723 = vunpack.c.h.b16 %v193
    %v724 = vunpack.c.l.b16 %v194
    %v725 = vunpack.c.h.b16 %v194
    %v726 = vunpack.c.l.b16 %v195
    %v727 = vunpack.c.h.b16 %v195
    %v728 = vunpack.c.l.b16 %v196
    %v729 = vunpack.c.h.b16 %v196
    %v730 = vunpack.c.l.b16 %v197
    %v731 = vunpack.c.h.b16 %v197
    %v732 = vunpack.c.l.b16 %v198
    %v733 = vunpack.c.h.b16 %v198
    %v734 = vunpack.c.l.b16 %v199
    %v735 = vunpack.c.h.b16 %v199
    %v736 = vunpack.c.l.b16 %v200
    %v737 = vunpack.c.h.b16 %v200
    %v738 = vunpack.c.l.b16 %v201
    %v739 = vunpack.c.h.b16 %v201
    %v740 = vunpack.c.l.b16 %v202
    %v741 = vunpack.c.h.b16 %v202
    %v742 = vunpack.c.l.b16 %v203
    %v743 = vunpack.c.h.b16 %v203
    %v744 = vunpack.c.l.b16 %v204
    %v745 = vunpack.c.h.b16 %v204
    %v746 = vunpack.c.l.b16 %v205
    %v747 = vunpack.c.h.b16 %v205
    %v748 = vunpack.c.l.b16 %v206
    %v749 = vunpack.c.h.b16 %v206
    %v750 = vunpack.c.l.b16 %v207
    %v751 = vunpack.c.h.b16 %v207
    %v752 = vunpack.c.l.b16 %v208
    %v753 = vunpack.c.h.b16 %v208
    %v754 = vunpack.c.l.b16 %v209
    %v755 = vunpack.c.h.b16 %v209
    %v756 = vunpack.c.l.b16 %v210
    %v757 = vunpack.c.h.b16 %v210
    %v758 = vunpack.c.l.b16 %v211
    %v759 = vunpack.c.h.b16 %v211
    %v760 = vunpack.c.l.b16 %v212
    %v761 = vunpack.c.h.b16 %v212
    %v762 = vunpack.c.l.b16 %v213
    %v763 = vunpack.c.h.b16 %v213
    %v764 = vunpack.c.l.b16 %v214
    %v765 = vunpack.c.h.b16 %v214
    %v766 = vunpack.c.l.b16 %v215
    %v767 = vunpack.c.h.b16 %v215
    %v768 = vunpack.c.l.b16 %v216
    %v769 = vunpack.c.h.b16 %v216
    %v770 = vunpack.c.l.b16 %v217
    %v771 = vunpack.c.h.b16 %v217
    %v772 = vunpack.c.l.b16 %v218
    %v773 = vunpack.c.h.b16 %v218
    %v774 = vunpack.c.l.b16 %v219
    %v775 = vunpack.c.h.b16 %v219
    %v776 = vunpack.c.l.b16 %v220
    %v777 = vunpack.c.h.b16 %v220
    %v778 = vunpack.c.l.b16 %v221
    %v779 = vunpack.c.h.b16 %v221
    %v780 = vunpack.c.l.b16 %v222
    %v781 = vunpack.c.h.b16 %v222
    %v782 = vunpack.c.l.b16 %v223
    %v783 = vunpack.c.h.b16 %v223
    %v784 = vunpack.c.l.b16 %v224
    %v785 = vunpack.c.h.b16 %v224
    %v786 = vunpack.c.l.b16 %v225
    %v787 = vunpack.c.h.b16 %v225
    %v788 = vunpack.c.l.b16 %v226
    %v789 = vunpack.c.h.b16 %v226
    %v790 = vunpack.c.l.b16 %v227
    %v791 = vunpack.c.h.b16 %v227
    %v792 = vunpack.c.l.b16 %v228
    %v793 = vunpack.c.h.b16 %v228
    %v794 = vunpack.c.l.b16 %v229
    %v795 = vunpack.c.h.b16 %v229
    %v796 = vunpack.c.l.b16 %v230
    %v797 = vunpack.c.h.b16 %v230
    %v798 = vunpack.c.l.b16 %v231
    %v799 = vunpack.c.h.b16 %v231
    %v800 = vunpack.c.l.b16 %v232
    %v801 = vunpack.c.h.b16 %v232
    %v802 = vunpack.c.l.b16 %v233
    %v803 = vunpack.c.h.b16 %v233
    %v804 = vunpack.c.l.b16 %v234
    %v805 = vunpack.c.h.b16 %v234
    %v806 = vunpack.c.l.b16 %v235
    %v807 = vunpack.c.h.b16 %v235
    %v808 = vunpack.c.l.b16 %v236
    %v809 = vunpack.c.h.b16 %v236
    %v810 = vunpack.c.l.b16 %v237
    %v811 = vunpack.c.h.b16 %v237
    %v812 = vunpack.c.l.b16 %v238
    %v813 = vunpack.c.h.b16 %v238
    %v814 = vunpack.c.l.b16 %v239
    %v815 = vunpack.c.h.b16 %v239
    %v816 = vunpack.c.l.b16 %v240
    %v817 = vunpack.c.h.b16 %v240
    %v818 = vunpack.c.l.b16 %v241
    %v819 = vunpack.c.h.b16 %v241
    %v820 = vunpack.c.l.b16 %v242
    %v821 = vunpack.c.h.b16 %v242
    %v822 = vunpack.c.l.b16 %v243
    %v823 = vunpack.c.h.b16 %v243
    %v824 = vunpack.c.l.b16 %v244
    %v825 = vunpack.c.h.b16 %v244
    %v826 = vunpack.c.l.b16 %v245
    %v827 = vunpack.c.h.b16 %v245
    %v828 = vunpack.c.l.b16 %v246
    %v829 = vunpack.c.h.b16 %v246
    %v830 = vunpack.c.l.b16 %v247
    %v831 = vunpack.c.h.b16 %v247
    %v832 = vunpack.c.l.b16 %v248
    %v833 = vunpack.c.h.b16 %v248
    %v834 = vunpack.c.l.b16 %v249
    %v835 = vunpack.c.h.b16 %v249
    %v836 = vunpack.c.l.b16 %v250
    %v837 = vunpack.c.h.b16 %v250
    %v838 = vunpack.c.l.b16 %v251
    %v839 = vunpack.c.h.b16 %v251
    %v840 = vunpack.c.l.b16 %v252
    %v841 = vunpack.c.h.b16 %v252
    %v842 = vunpack.c.l.b16 %v253
    %v843 = vunpack.c.h.b16 %v253
    %v844 = vunpack.c.l.b16 %v254
    %v845 = vunpack.c.h.b16 %v254
    %v846 = vunpack.c.l.b16 %v255
    %v847 = vunpack.c.h.b16 %v255
    %v848 = vunpack.c.l.b16 %v256
    %v849 = vunpack.c.h.b16 %v256
    %v850 = vunpack.c.l.b16 %v257
    %v851 = vunpack.c.h.b16 %v257
    %v852 = vunpack.c.l.b16 %v258
    %v853 = vunpack.c.h.b16 %v258
    %v854 = vunpack.c.l.b16 %v259
    %v855 = vunpack.c.h.b16 %v259
    %v856 = vunpack.c.l.b16 %v260
    %v857 = vunpack.c.h.b16 %v260
    %v858 = vunpack.c.l.b16 %v261
    %v859 = vunpack.c.h.b16 %v261
    %v860 = vunpack.c.l.b16 %v262
    %v861 = vunpack.c.h.b16 %v262
    %v862 = vunpack.c.l.b16 %v263
    %v863 = vunpack.c.h.b16 %v263
    %v864 = vunpack.c.l.b16 %v264
    %v865 = vunpack.c.h.b16 %v264
    %v866 = vunpack.c.l.b16 %v265
    %v867 = vunpack.c.h.b16 %v265
    %v868 = vunpack.c.l.b16 %v266
    %v869 = vunpack.c.h.b16 %v266
    %v870 = vunpack.c.l.b16 %v267
    %v871 = vunpack.c.h.b16 %v267
    %v872 = vunpack.c.l.b16 %v268
    %v873 = vunpack.c.h.b16 %v268
    %v874 = vunpack.c.l.b16 %v269
    %v875 = vunpack.c.h.b16 %v269
    %v876 = vunpack.c.l.b16 %v270
    %v877 = vunpack.c.h.b16 %v270
    %v878 = vunpack.c.l.b16 %v271
    %v879 = vunpack.c.h.b16 %v271
    %v880 = vunpack.c.l.b16 %v272
    %v881 = vunpack.c.h.b16 %v272
    %v882 = vunpack.c.l.b16 %v273
    %v883 = vunpack.c.h.b16 %v273
    %v884 = vunpack.c.l.b16 %v274
    %v885 = vunpack.c.h.b16 %v274
    %v886 = vunpack.c.l.b16 %v275
    %v887 = vunpack.c.h.b16 %v275
    %v888 = vunpack.c.l.b16 %v276
    %v889 = vunpack.c.h.b16 %v276
    %v890 = vunpack.c.l.b16 %v277
    %v891 = vunpack.c.h.b16 %v277
    %v892 = vunpack.c.l.b16 %v278
    %v893 = vunpack.c.h.b16 %v278
    %v894 = vunpack.c.l.b16 %v279
    %v895 = vunpack.c.h.b16 %v279
    %v896 = vunpack.c.l.b16 %v280
    %v897 = vunpack.c.h.b16 %v280
    %v898 = vunpack.c.l.b16 %v281
    %v899 = vunpack.c.h.b16 %v281
    %v900 = vunpack.c.l.b16 %v282
    %v901 = vunpack.c.h.b16 %v282
    %v902 = vunpack.c.l.b16 %v283
    %v903 = vunpack.c.h.b16 %v283
    %v904 = vunpack.c.l.b16 %v284
    %v905 = vunpack.c.h.b16 %v284
    %v906 = vunpack.c.l.b16 %v285
    %v907 = vunpack.c.h.b16 %v285
    %v908 = vpack.c.b16 %v520, %v516
    %v909 = vpack.c.b16 %v521, %v517
    %v910 = vpack.c.b16 %v522, %v518
    %v911 = vpack.c.b16 %v523, %v519
    %v912 = vpack.c.b16 %v528, %v524
    %v913 = vpack.c.b16 %v529, %v525
    %v914 = vpack.c.b16 %v530, %v526
    %v915 = vpack.c.b16 %v531, %v527
    %v916 = vpack.c.b16 %v536, %v532
    %v917 = vpack.c.b16 %v537, %v533
    %v918 = vpack.c.b16 %v538, %v534
    %v919 = vpack.c.b16 %v539, %v535
    %v920 = vpack.c.b16 %v544, %v540
    %v921 = vpack.c.b16 %v545, %v541
    %v922 = vpack.c.b16 %v546, %v542
    %v923 = vpack.c.b16 %v547, %v543
    %v924 = vpack.c.b16 %v552, %v548
    %v925 = vpack.c.b16 %v553, %v549
    %v926 = vpack.c.b16 %v554, %v550
    %v927 = vpack.c.b16 %v555, %v551
    %v928 = vpack.c.b16 %v560, %v556
    %v929 = vpack.c.b16 %v561, %v557
    %v930 = vpack.c.b16 %v562, %v558
    %v931 = vpack.c.b16 %v563, %v559
    %v932 = vpack.c.b16 %v568, %v564
    %v933 = vpack.c.b16 %v569, %v565
    %v934 = vpack.c.b16 %v570, %v566
    %v935 = vpack.c.b16 %v571, %v567
    %v936 = vpack.c.b16 %v576, %v572
    %v937 = vpack.c.b16 %v577, %v573
    %v938 = vpack.c.b16 %v578, %v574
    %v939 = vpack.c.b16 %v579, %v575
    %v940 = vpack.c.b16 %v584, %v580
    %v941 = vpack.c.b16 %v585, %v581
    %v942 = vpack.c.b16 %v586, %v582
    %v943 = vpack.c.b16 %v587, %v583
    %v944 = vpack.c.b16 %v592, %v588
    %v945 = vpack.c.b16 %v593, %v589
    %v946 = vpack.c.b16 %v594, %v590
    %v947 = vpack.c.b16 %v595, %v591
    %v948 = vpack.c.b16 %v600, %v596
    %v949 = vpack.c.b16 %v601, %v597
    %v950 = vpack.c.b16 %v602, %v598
    %v951 = vpack.c.b16 %v603, %v599
    %v952 = vpack.c.b16 %v608, %v604
    %v953 = vpack.c.b16 %v609, %v605
    %v954 = vpack.c.b16 %v610, %v606
    %v955 = vpack.c.b16 %v611, %v607
    %v956 = vpack.c.b16 %v616, %v612
    %v957 = vpack.c.b16 %v617, %v613
    %v958 = vpack.c.b16 %v618, %v614
    %v959 = vpack.c.b16 %v619, %v615
    %v960 = vpack.c.b16 %v624, %v620
    %v961 = vpack.c.b16 %v625, %v621
    %v962 = vpack.c.b16 %v626, %v622
    %v963 = vpack.c.b16 %v627, %v623
    %v964 = vpack.c.b16 %v632, %v628
    %v965 = vpack.c.b16 %v633, %v629
    %v966 = vpack.c.b16 %v634, %v630
    %v967 = vpack.c.b16 %v635, %v631
    %v968 = vpack.c.b16 %v640, %v636
    %v969 = vpack.c.b16 %v641, %v637
    %v970 = vpack.c.b16 %v642, %v638
    %v971 = vpack.c.b16 %v643, %v639
    %v972 = vpack.c.b16 %v648, %v644
    %v973 = vpack.c.b16 %v649, %v645
    %v974 = vpack.c.b16 %v650, %v646
    %v975 = vpack.c.b16 %v651, %v647
    %v976 = vpack.c.b16 %v656, %v652
    %v977 = vpack.c.b16 %v657, %v653
    %v978 = vpack.c.b16 %v658, %v654
    %v979 = vpack.c.b16 %v659, %v655
    %v980 = vpack.c.b16 %v664, %v660
    %v981 = vpack.c.b16 %v665, %v661
    %v982 = vpack.c.b16 %v666, %v662
    %v983 = vpack.c.b16 %v667, %v663
    %v984 = vpack.c.b16 %v672, %v668
    %v985 = vpack.c.b16 %v673, %v669
    %v986 = vpack.c.b16 %v674, %v670
    %v987 = vpack.c.b16 %v675, %v671
    %v988 = vpack.c.b16 %v680, %v676
    %v989 = vpack.c.b16 %v681, %v677
    %v990 = vpack.c.b16 %v682, %v678
    %v991 = vpack.c.b16 %v683, %v679
    %v992 = vpack.c.b16 %v688, %v684
    %v993 = vpack.c.b16 %v689, %v685
    %v994 = vpack.c.b16 %v690, %v686
    %v995 = vpack.c.b16 %v691, %v687
    %v996 = vpack.c.b16 %v696, %v692
    %v997 = vpack.c.b16 %v697, %v693
    %v998 = vpack.c.b16 %v698, %v694
    %v999 = vpack.c.b16 %v699, %v695
    %v1000 = vpack.c.b16 %v704, %v700
    %v1001 = vpack.c.b16 %v705, %v701
    %v1002 = vpack.c.b16 %v706, %v702
    %v1003 = vpack.c.b16 %v707, %v703
    %v1004 = vpack.c.b16 %v712, %v708
    %v1005 = vpack.c.b16 %v713, %v709
    %v1006 = vpack.c.b16 %v714, %v710
    %v1007 = vpack.c.b16 %v715, %v711
    %v1008 = vpack.c.b16 %v720, %v716
    %v1009 = vpack.c.b16 %v721, %v717
    %v1010 = vpack.c.b16 %v722, %v718
    %v1011 = vpack.c.b16 %v723, %v719
    %v1012 = vpack.c.b16 %v728, %v724
    %v1013 = vpack.c.b16 %v729, %v725
    %v1014 = vpack.c.b16 %v730, %v726
    %v1015 = vpack.c.b16 %v731, %v727
    %v1016 = vpack.c.b16 %v736, %v732
    %v1017 = vpack.c.b16 %v737, %v733
    %v1018 = vpack.c.b16 %v738, %v734
    %v1019 = vpack.c.b16 %v739, %v735
    %v1020 = vpack.c.b16 %v744, %v740
    %v1021 = vpack.c.b16 %v745, %v741
    %v1022 = vpack.c.b16 %v746, %v742
    %v1023 = vpack.c.b16 %v747, %v743
    %v1024 = vpack.c.b16 %v752, %v748
    %v1025 = vpack.c.b16 %v753, %v749
    %v1026 = vpack.c.b16 %v754, %v750
    %v1027 = vpack.c.b16 %v755, %v751
    %v1028 = vpack.c.b16 %v760, %v756
    %v1029 = vpack.c.b16 %v761, %v757
    %v1030 = vpack.c.b16 %v762, %v758
    %v1031 = vpack.c.b16 %v763, %v759
    %v1032 = vpack.c.b16 %v768, %v764
    %v1033 = vpack.c.b16 %v769, %v765
    %v1034 = vpack.c.b16 %v770, %v766
    %v1035 = vpack.c.b16 %v771, %v767
    %v1036 = vpack.c.b16 %v776, %v772
    %v1037 = vpack.c.b16 %v777, %v773
    %v1038 = vpack.c.b16 %v778, %v774
    %v1039 = vpack.c.b16 %v779, %v775
    %v1040 = vpack.c.b16 %v784, %v780
    %v1041 = vpack.c.b16 %v785, %v781
    %v1042 = vpack.c.b16 %v786, %v782
    %v1043 = vpack.c.b16 %v787, %v783
    %v1044 = vpack.c.b16 %v792, %v788
    %v1045 = vpack.c.b16 %v793, %v789
    %v1046 = vpack.c.b16 %v794, %v790
    %v1047 = vpack.c.b16 %v795, %v791
    %v1048 = vpack.c.b16 %v800, %v796
    %v1049 = vpack.c.b16 %v801, %v797
    %v1050 = vpack.c.b16 %v802, %v798
    %v1051 = vpack.c.b16 %v803, %v799
    %v1052 = vpack.c.b16 %v808, %v804
    %v1053 = vpack.c.b16 %v809, %v805
    %v1054 = vpack.c.b16 %v810, %v806
    %v1055 = vpack.c.b16 %v811, %v807
    %v1056 = vpack.c.b16 %v816, %v812
    %v1057 = vpack.c.b16 %v817, %v813
    %v1058 = vpack.c.b16 %v818, %v814
    %v1059 = vpack.c.b16 %v819, %v815
    %v1060 = vpack.c.b16 %v824, %v820
    %v1061 = vpack.c.b16 %v825, %v821
    %v1062 = vpack.c.b16 %v826, %v822
    %v1063 = vpack.c.b16 %v827, %v823
    %v1064 = vpack.c.b16 %v832, %v828
    %v1065 = vpack.c.b16 %v833, %v829
    %v1066 = vpack.c.b16 %v834, %v830
    %v1067 = vpack.c.b16 %v835, %v831
    %v1068 = vpack.c.b16 %v840, %v836
    %v1069 = vpack.c.b16 %v841, %v837
    %v1070 = vpack.c.b16 %v842, %v838
    %v1071 = vpack.c.b16 %v843, %v839
    %v1072 = vpack.c.b16 %v848, %v844
    %v1073 = vpack.c.b16 %v849, %v845
    %v1074 = vpack.c.b16 %v850, %v846
    %v1075 = vpack.c.b16 %v851, %v847
    %v1076 = vpack.c.b16 %v856, %v852
    %v1077 = vpack.c.b16 %v857, %v853
    %v1078 = vpack.c.b16 %v858, %v854
    %v1079 = vpack.c.b16 %v859, %v855
    %v1080 = vpack.c.b16 %v864, %v860
    %v1081 = vpack.c.b16 %v865, %v861
    %v1082 = vpack.c.b16 %v866, %v862
    %v1083 = vpack.c.b16 %v867, %v863
    %v1084 = vpack.c.b16 %v872, %v868
    %v1085 = vpack.c.b16 %v873, %v869
    %v1086 = vpack.c.b16 %v874, %v870
    %v1087 = vpack.c.b16 %v875, %v871
    %v1088 = vpack.c.b16 %v880, %v876
    %v1089 = vpack.c.b16 %v881, %v877
    %v1090 = vpack.c.b16 %v882, %v878
    %v1091 = vpack.c.b16 %v883, %v879
    %v1092 = vpack.c.b16 %v888, %v884
    %v1093 = vpack.c.b16 %v889, %v885
    %v1094 = vpack.c.b16 %v890, %v886
    %v1095 = vpack.c.b16 %v891, %v887
    %v1096 = vpack.c.b16 %v896, %v892
    %v1097 = vpack.c.b16 %v897, %v893
    %v1098 = vpack.c.b16 %v898, %v894
    %v1099 = vpack.c.b16 %v899, %v895
    %v1100 = vpack.c.b16 %v904, %v900
    %v1101 = vpack.c.b16 %v905, %v901
    %v1102 = vpack.c.b16 %v906, %v902
    %v1103 = vpack.c.b16 %v907, %v903
    %vm1300 = vcmask 130048
    %v1302 = vsel %vm1300, %v313, 0
    %1304 = vmatpush.bf16.msra.mxu0 %v936
    %1305 = vmatpush.bf16.msra.mxu0 %v932
    %1306 = vmatpush.bf16.msra.mxu0 %v928
    %1307 = vmatpush.bf16.msra.mxu0 %v924
    %1308 = vmatpush.bf16.msra.mxu0 %v920
    %1309 = vmatpush.bf16.msra.mxu0 %v916
    %1310 = vmatpush.bf16.msra.mxu0 %v912
    %1311 = vmatpush.bf16.msra.mxu0 %v908
    %1312 = vmatmul.bf16.gmra.mxu0 %v307
    %v1313 = vpop.f32.mrf.mxu0
    %v1314 = vadd.f32 %v288, %v1313
    %v1315 = vpop.f32.mrf.mxu0
    %1316 = vdwg.mxu0
    %1317 = vmatpush.bf16.msra.mxu0 %v968
    %1318 = vmatpush.bf16.msra.mxu0 %v964
    %1319 = vmatpush.bf16.msra.mxu0 %v960
    %1320 = vmatpush.bf16.msra.mxu0 %v956
    %1321 = vmatpush.bf16.msra.mxu0 %v952
    %1322 = vmatpush.bf16.msra.mxu0 %v948
    %1323 = vmatpush.bf16.msra.mxu0 %v944
    %1324 = vmatpush.bf16.msra.mxu0 %v940
    %1325 = vmatmul.bf16.gmra.mxu0 %v308
    %v1326 = vpop.f32.mrf.mxu0
    %v1327 = vadd.f32 %v1314, %v1326
    %v1328 = vpop.f32.mrf.mxu0
    %1329 = vdwg.mxu0
    %1330 = vmatpush.bf16.msra.mxu0 %v1000
    %1331 = vmatpush.bf16.msra.mxu0 %v996
    %1332 = vmatpush.bf16.msra.mxu0 %v992
    %1333 = vmatpush.bf16.msra.mxu0 %v988
    %1334 = vmatpush.bf16.msra.mxu0 %v984
    %1335 = vmatpush.bf16.msra.mxu0 %v980
    %1336 = vmatpush.bf16.msra.mxu0 %v976
    %1337 = vmatpush.bf16.msra.mxu0 %v972
    %1338 = vmatmul.bf16.gmra.mxu0 %v309
    %v1339 = vpop.f32.mrf.mxu0
    %v1340 = vadd.f32 %v1327, %v1339
    %v1341 = vpop.f32.mrf.mxu0
    %1342 = vdwg.mxu0
    %1343 = vmatpush.bf16.msra.mxu0 %v1032
    %1344 = vmatpush.bf16.msra.mxu0 %v1028
    %1345 = vmatpush.bf16.msra.mxu0 %v1024
    %1346 = vmatpush.bf16.msra.mxu0 %v1020
    %1347 = vmatpush.bf16.msra.mxu0 %v1016
    %1348 = vmatpush.bf16.msra.mxu0 %v1012
    %1349 = vmatpush.bf16.msra.mxu0 %v1008
    %1350 = vmatpush.bf16.msra.mxu0 %v1004
    %1351 = vmatmul.bf16.gmra.mxu0 %v310
    %v1352 = vpop.f32.mrf.mxu0
    %v1353 = vadd.f32 %v1340, %v1352
    %v1354 = vpop.f32.mrf.mxu0
    %1355 = vdwg.mxu0
    %1356 = vmatpush.bf16.msra.mxu0 %v1064
    %1357 = vmatpush.bf16.msra.mxu0 %v1060
    %1358 = vmatpush.bf16.msra.mxu0 %v1056
    %1359 = vmatpush.bf16.msra.mxu0 %v1052
    %1360 = vmatpush.bf16.msra.mxu0 %v1048
    %1361 = vmatpush.bf16.msra.mxu0 %v1044
    %1362 = vmatpush.bf16.msra.mxu0 %v1040
    %1363 = vmatpush.bf16.msra.mxu0 %v1036
    %1364 = vmatmul.bf16.gmra.mxu0 %v311
    %v1365 = vpop.f32.mrf.mxu0
    %v1366 = vadd.f32 %v1353, %v1365
    %v1367 = vpop.f32.mrf.mxu0
    %1368 = vdwg.mxu0
    %1369 = vmatpush.bf16.msra.mxu0 %v1096
    %1370 = vmatpush.bf16.msra.mxu0 %v1092
    %1371 = vmatpush.bf16.msra.mxu0 %v1088
    %1372 = vmatpush.bf16.msra.mxu0 %v1084
    %1373 = vmatpush.bf16.msra.mxu0 %v1080
    %1374 = vmatpush.bf16.msra.mxu0 %v1076
    %1375 = vmatpush.bf16.msra.mxu0 %v1072
    %1376 = vmatpush.bf16.msra.mxu0 %v1068
    %1377 = vmatmul.bf16.gmra.mxu0 %v312
    %v1378 = vpop.f32.mrf.mxu0
    %v1379 = vadd.f32 %v1366, %v1378
    %v1380 = vpop.f32.mrf.mxu0
    %1381 = vdwg.mxu0
    %1382 = vmatpush.bf16.msra.mxu0 0
    %1383 = vmatpush.bf16.msra.mxu0 0
    %1384 = vmatpush.bf16.msra.mxu0 0
    %1385 = vmatpush.bf16.msra.mxu0 0
    %1386 = vmatpush.bf16.msra.mxu0 0
    %1387 = vmatpush.bf16.msra.mxu0 0
    %1388 = vmatpush.bf16.msra.mxu0 0
    %1389 = vmatpush.bf16.msra.mxu0 %v1100
    %1390 = vmatmul.bf16.gmra.mxu0 %v1302
    %v1391 = vpop.f32.mrf.mxu0
    %v1392 = vadd.f32 %v1379, %v1391
    %v1393 = vpop.f32.mrf.mxu0
    %1394 = vdwg.mxu0
    %1395 = vmatpush.bf16.msra.mxu0 %v937
    %1396 = vmatpush.bf16.msra.mxu0 %v933
    %1397 = vmatpush.bf16.msra.mxu0 %v929
    %1398 = vmatpush.bf16.msra.mxu0 %v925
    %1399 = vmatpush.bf16.msra.mxu0 %v921
    %1400 = vmatpush.bf16.msra.mxu0 %v917
    %1401 = vmatpush.bf16.msra.mxu0 %v913
    %1402 = vmatpush.bf16.msra.mxu0 %v909
    %1403 = vmatmul.bf16.gmra.mxu0 %v307
    %v1404 = vpop.f32.mrf.mxu0
    %v1405 = vadd.f32 %v289, %v1404
    %v1406 = vpop.f32.mrf.mxu0
    %1407 = vdwg.mxu0
    %1408 = vmatpush.bf16.msra.mxu0 %v969
    %1409 = vmatpush.bf16.msra.mxu0 %v965
    %1410 = vmatpush.bf16.msra.mxu0 %v961
    %1411 = vmatpush.bf16.msra.mxu0 %v957
    %1412 = vmatpush.bf16.msra.mxu0 %v953
    %1413 = vmatpush.bf16.msra.mxu0 %v949
    %1414 = vmatpush.bf16.msra.mxu0 %v945
    %1415 = vmatpush.bf16.msra.mxu0 %v941
    %1416 = vmatmul.bf16.gmra.mxu0 %v308
    %v1417 = vpop.f32.mrf.mxu0
    %v1418 = vadd.f32 %v1405, %v1417
    %v1419 = vpop.f32.mrf.mxu0
    %1420 = vdwg.mxu0
    %1421 = vmatpush.bf16.msra.mxu0 %v1001
    %1422 = vmatpush.bf16.msra.mxu0 %v997
    %1423 = vmatpush.bf16.msra.mxu0 %v993
    %1424 = vmatpush.bf16.msra.mxu0 %v989
    %1425 = vmatpush.bf16.msra.mxu0 %v985
    %1426 = vmatpush.bf16.msra.mxu0 %v981
    %1427 = vmatpush.bf16.msra.mxu0 %v977
    %1428 = vmatpush.bf16.msra.mxu0 %v973
    %1429 = vmatmul.bf16.gmra.mxu0 %v309
    %v1430 = vpop.f32.mrf.mxu0
    %v1431 = vadd.f32 %v1418, %v1430
    %v1432 = vpop.f32.mrf.mxu0
    %1433 = vdwg.mxu0
    %1434 = vmatpush.bf16.msra.mxu0 %v1033
    %1435 = vmatpush.bf16.msra.mxu0 %v1029
    %1436 = vmatpush.bf16.msra.mxu0 %v1025
    %1437 = vmatpush.bf16.msra.mxu0 %v1021
    %1438 = vmatpush.bf16.msra.mxu0 %v1017
    %1439 = vmatpush.bf16.msra.mxu0 %v1013
    %1440 = vmatpush.bf16.msra.mxu0 %v1009
    %1441 = vmatpush.bf16.msra.mxu0 %v1005
    %1442 = vmatmul.bf16.gmra.mxu0 %v310
    %v1443 = vpop.f32.mrf.mxu0
    %v1444 = vadd.f32 %v1431, %v1443
    %v1445 = vpop.f32.mrf.mxu0
    %1446 = vdwg.mxu0
    %1447 = vmatpush.bf16.msra.mxu0 %v1065
    %1448 = vmatpush.bf16.msra.mxu0 %v1061
    %1449 = vmatpush.bf16.msra.mxu0 %v1057
    %1450 = vmatpush.bf16.msra.mxu0 %v1053
    %1451 = vmatpush.bf16.msra.mxu0 %v1049
    %1452 = vmatpush.bf16.msra.mxu0 %v1045
    %1453 = vmatpush.bf16.msra.mxu0 %v1041
    %1454 = vmatpush.bf16.msra.mxu0 %v1037
    %1455 = vmatmul.bf16.gmra.mxu0 %v311
    %v1456 = vpop.f32.mrf.mxu0
    %v1457 = vadd.f32 %v1444, %v1456
    %v1458 = vpop.f32.mrf.mxu0
    %1459 = vdwg.mxu0
    %1460 = vmatpush.bf16.msra.mxu0 %v1097
    %1461 = vmatpush.bf16.msra.mxu0 %v1093
    %1462 = vmatpush.bf16.msra.mxu0 %v1089
    %1463 = vmatpush.bf16.msra.mxu0 %v1085
    %1464 = vmatpush.bf16.msra.mxu0 %v1081
    %1465 = vmatpush.bf16.msra.mxu0 %v1077
    %1466 = vmatpush.bf16.msra.mxu0 %v1073
    %1467 = vmatpush.bf16.msra.mxu0 %v1069
    %1468 = vmatmul.bf16.gmra.mxu0 %v312
    %v1469 = vpop.f32.mrf.mxu0
    %v1470 = vadd.f32 %v1457, %v1469
    %v1471 = vpop.f32.mrf.mxu0
    %1472 = vdwg.mxu0
    %1473 = vmatpush.bf16.msra.mxu0 0
    %1474 = vmatpush.bf16.msra.mxu0 0
    %1475 = vmatpush.bf16.msra.mxu0 0
    %1476 = vmatpush.bf16.msra.mxu0 0
    %1477 = vmatpush.bf16.msra.mxu0 0
    %1478 = vmatpush.bf16.msra.mxu0 0
    %1479 = vmatpush.bf16.msra.mxu0 0
    %1480 = vmatpush.bf16.msra.mxu0 %v1101
    %1481 = vmatmul.bf16.gmra.mxu0 %v1302
    %v1482 = vpop.f32.mrf.mxu0
    %v1483 = vadd.f32 %v1470, %v1482
    %v1484 = vpop.f32.mrf.mxu0
    %1485 = vdwg.mxu0
    %1486 = vmatpush.bf16.msra.mxu0 %v938
    %1487 = vmatpush.bf16.msra.mxu0 %v934
    %1488 = vmatpush.bf16.msra.mxu0 %v930
    %1489 = vmatpush.bf16.msra.mxu0 %v926
    %1490 = vmatpush.bf16.msra.mxu0 %v922
    %1491 = vmatpush.bf16.msra.mxu0 %v918
    %1492 = vmatpush.bf16.msra.mxu0 %v914
    %1493 = vmatpush.bf16.msra.mxu0 %v910
    %1494 = vmatmul.bf16.gmra.mxu0 %v307
    %v1495 = vpop.f32.mrf.mxu0
    %v1496 = vadd.f32 %v290, %v1495
    %v1497 = vpop.f32.mrf.mxu0
    %1498 = vdwg.mxu0
    %1499 = vmatpush.bf16.msra.mxu0 %v970
    %1500 = vmatpush.bf16.msra.mxu0 %v966
    %1501 = vmatpush.bf16.msra.mxu0 %v962
    %1502 = vmatpush.bf16.msra.mxu0 %v958
    %1503 = vmatpush.bf16.msra.mxu0 %v954
    %1504 = vmatpush.bf16.msra.mxu0 %v950
    %1505 = vmatpush.bf16.msra.mxu0 %v946
    %1506 = vmatpush.bf16.msra.mxu0 %v942
    %1507 = vmatmul.bf16.gmra.mxu0 %v308
    %v1508 = vpop.f32.mrf.mxu0
    %v1509 = vadd.f32 %v1496, %v1508
    %v1510 = vpop.f32.mrf.mxu0
    %1511 = vdwg.mxu0
    %1512 = vmatpush.bf16.msra.mxu0 %v1002
    %1513 = vmatpush.bf16.msra.mxu0 %v998
    %1514 = vmatpush.bf16.msra.mxu0 %v994
    %1515 = vmatpush.bf16.msra.mxu0 %v990
    %1516 = vmatpush.bf16.msra.mxu0 %v986
    %1517 = vmatpush.bf16.msra.mxu0 %v982
    %1518 = vmatpush.bf16.msra.mxu0 %v978
    %1519 = vmatpush.bf16.msra.mxu0 %v974
    %1520 = vmatmul.bf16.gmra.mxu0 %v309
    %v1521 = vpop.f32.mrf.mxu0
    %v1522 = vadd.f32 %v1509, %v1521
    %v1523 = vpop.f32.mrf.mxu0
    %1524 = vdwg.mxu0
    %1525 = vmatpush.bf16.msra.mxu0 %v1034
    %1526 = vmatpush.bf16.msra.mxu0 %v1030
    %1527 = vmatpush.bf16.msra.mxu0 %v1026
    %1528 = vmatpush.bf16.msra.mxu0 %v1022
    %1529 = vmatpush.bf16.msra.mxu0 %v1018
    %1530 = vmatpush.bf16.msra.mxu0 %v1014
    %1531 = vmatpush.bf16.msra.mxu0 %v1010
    %1532 = vmatpush.bf16.msra.mxu0 %v1006
    %1533 = vmatmul.bf16.gmra.mxu0 %v310
    %v1534 = vpop.f32.mrf.mxu0
    %v1535 = vadd.f32 %v1522, %v1534
    %v1536 = vpop.f32.mrf.mxu0
    %1537 = vdwg.mxu0
    %1538 = vmatpush.bf16.msra.mxu0 %v1066
    %1539 = vmatpush.bf16.msra.mxu0 %v1062
    %1540 = vmatpush.bf16.msra.mxu0 %v1058
    %1541 = vmatpush.bf16.msra.mxu0 %v1054
    %1542 = vmatpush.bf16.msra.mxu0 %v1050
    %1543 = vmatpush.bf16.msra.mxu0 %v1046
    %1544 = vmatpush.bf16.msra.mxu0 %v1042
    %1545 = vmatpush.bf16.msra.mxu0 %v1038
    %1546 = vmatmul.bf16.gmra.mxu0 %v311
    %v1547 = vpop.f32.mrf.mxu0
    %v1548 = vadd.f32 %v1535, %v1547
    %v1549 = vpop.f32.mrf.mxu0
    %1550 = vdwg.mxu0
    %1551 = vmatpush.bf16.msra.mxu0 %v1098
    %1552 = vmatpush.bf16.msra.mxu0 %v1094
    %1553 = vmatpush.bf16.msra.mxu0 %v1090
    %1554 = vmatpush.bf16.msra.mxu0 %v1086
    %1555 = vmatpush.bf16.msra.mxu0 %v1082
    %1556 = vmatpush.bf16.msra.mxu0 %v1078
    %1557 = vmatpush.bf16.msra.mxu0 %v1074
    %1558 = vmatpush.bf16.msra.mxu0 %v1070
    %1559 = vmatmul.bf16.gmra.mxu0 %v312
    %v1560 = vpop.f32.mrf.mxu0
    %v1561 = vadd.f32 %v1548, %v1560
    %v1562 = vpop.f32.mrf.mxu0
    %1563 = vdwg.mxu0
    %1564 = vmatpush.bf16.msra.mxu0 0
    %1565 = vmatpush.bf16.msra.mxu0 0
    %1566 = vmatpush.bf16.msra.mxu0 0
    %1567 = vmatpush.bf16.msra.mxu0 0
    %1568 = vmatpush.bf16.msra.mxu0 0
    %1569 = vmatpush.bf16.msra.mxu0 0
    %1570 = vmatpush.bf16.msra.mxu0 0
    %1571 = vmatpush.bf16.msra.mxu0 %v1102
    %1572 = vmatmul.bf16.gmra.mxu0 %v1302
    %v1573 = vpop.f32.mrf.mxu0
    %v1574 = vadd.f32 %v1561, %v1573
    %v1575 = vpop.f32.mrf.mxu0
    %1576 = vdwg.mxu0
    %1577 = vmatpush.bf16.msra.mxu0 %v939
    %1578 = vmatpush.bf16.msra.mxu0 %v935
    %1579 = vmatpush.bf16.msra.mxu0 %v931
    %1580 = vmatpush.bf16.msra.mxu0 %v927
    %1581 = vmatpush.bf16.msra.mxu0 %v923
    %1582 = vmatpush.bf16.msra.mxu0 %v919
    %1583 = vmatpush.bf16.msra.mxu0 %v915
    %1584 = vmatpush.bf16.msra.mxu0 %v911
    %1585 = vmatmul.bf16.gmra.mxu0 %v307
    %v1586 = vpop.f32.mrf.mxu0
    %v1587 = vadd.f32 %v291, %v1586
    %v1588 = vpop.f32.mrf.mxu0
    %1589 = vdwg.mxu0
    %1590 = vmatpush.bf16.msra.mxu0 %v971
    %1591 = vmatpush.bf16.msra.mxu0 %v967
    %1592 = vmatpush.bf16.msra.mxu0 %v963
    %1593 = vmatpush.bf16.msra.mxu0 %v959
    %1594 = vmatpush.bf16.msra.mxu0 %v955
    %1595 = vmatpush.bf16.msra.mxu0 %v951
    %1596 = vmatpush.bf16.msra.mxu0 %v947
    %1597 = vmatpush.bf16.msra.mxu0 %v943
    %1598 = vmatmul.bf16.gmra.mxu0 %v308
    %v1599 = vpop.f32.mrf.mxu0
    %v1600 = vadd.f32 %v1587, %v1599
    %v1601 = vpop.f32.mrf.mxu0
    %1602 = vdwg.mxu0
    %1603 = vmatpush.bf16.msra.mxu0 %v1003
    %1604 = vmatpush.bf16.msra.mxu0 %v999
    %1605 = vmatpush.bf16.msra.mxu0 %v995
    %1606 = vmatpush.bf16.msra.mxu0 %v991
    %1607 = vmatpush.bf16.msra.mxu0 %v987
    %1608 = vmatpush.bf16.msra.mxu0 %v983
    %1609 = vmatpush.bf16.msra.mxu0 %v979
    %1610 = vmatpush.bf16.msra.mxu0 %v975
    %1611 = vmatmul.bf16.gmra.mxu0 %v309
    %v1612 = vpop.f32.mrf.mxu0
    %v1613 = vadd.f32 %v1600, %v1612
    %v1614 = vpop.f32.mrf.mxu0
    %1615 = vdwg.mxu0
    %1616 = vmatpush.bf16.msra.mxu0 %v1035
    %1617 = vmatpush.bf16.msra.mxu0 %v1031
    %1618 = vmatpush.bf16.msra.mxu0 %v1027
    %1619 = vmatpush.bf16.msra.mxu0 %v1023
    %1620 = vmatpush.bf16.msra.mxu0 %v1019
    %1621 = vmatpush.bf16.msra.mxu0 %v1015
    %1622 = vmatpush.bf16.msra.mxu0 %v1011
    %1623 = vmatpush.bf16.msra.mxu0 %v1007
    %1624 = vmatmul.bf16.gmra.mxu0 %v310
    %v1625 = vpop.f32.mrf.mxu0
    %v1626 = vadd.f32 %v1613, %v1625
    %v1627 = vpop.f32.mrf.mxu0
    %1628 = vdwg.mxu0
    %1629 = vmatpush.bf16.msra.mxu0 %v1067
    %1630 = vmatpush.bf16.msra.mxu0 %v1063
    %1631 = vmatpush.bf16.msra.mxu0 %v1059
    %1632 = vmatpush.bf16.msra.mxu0 %v1055
    %1633 = vmatpush.bf16.msra.mxu0 %v1051
    %1634 = vmatpush.bf16.msra.mxu0 %v1047
    %1635 = vmatpush.bf16.msra.mxu0 %v1043
    %1636 = vmatpush.bf16.msra.mxu0 %v1039
    %1637 = vmatmul.bf16.gmra.mxu0 %v311
    %v1638 = vpop.f32.mrf.mxu0
    %v1639 = vadd.f32 %v1626, %v1638
    %v1640 = vpop.f32.mrf.mxu0
    %1641 = vdwg.mxu0
    %1642 = vmatpush.bf16.msra.mxu0 %v1099
    %1643 = vmatpush.bf16.msra.mxu0 %v1095
    %1644 = vmatpush.bf16.msra.mxu0 %v1091
    %1645 = vmatpush.bf16.msra.mxu0 %v1087
    %1646 = vmatpush.bf16.msra.mxu0 %v1083
    %1647 = vmatpush.bf16.msra.mxu0 %v1079
    %1648 = vmatpush.bf16.msra.mxu0 %v1075
    %1649 = vmatpush.bf16.msra.mxu0 %v1071
    %1650 = vmatmul.bf16.gmra.mxu0 %v312
    %v1651 = vpop.f32.mrf.mxu0
    %v1652 = vadd.f32 %v1639, %v1651
    %v1653 = vpop.f32.mrf.mxu0
    %1654 = vdwg.mxu0
    %1655 = vmatpush.bf16.msra.mxu0 0
    %1656 = vmatpush.bf16.msra.mxu0 0
    %1657 = vmatpush.bf16.msra.mxu0 0
    %1658 = vmatpush.bf16.msra.mxu0 0
    %1659 = vmatpush.bf16.msra.mxu0 0
    %1660 = vmatpush.bf16.msra.mxu0 0
    %1661 = vmatpush.bf16.msra.mxu0 0
    %1662 = vmatpush.bf16.msra.mxu0 %v1103
    %1663 = vmatmul.bf16.gmra.mxu0 %v1302
    %v1664 = vpop.f32.mrf.mxu0
    %v1665 = vadd.f32 %v1652, %v1664
    %v1666 = vpop.f32.mrf.mxu0
    %1667 = vdwg.mxu0
    %v1668 = vmax.f32 %v1392, 0.0
    %v1669 = vmax.f32 %v1483, 0.0
    %v1670 = vmax.f32 %v1574, 0.0
    %v1671 = vmax.f32 %v1665, 0.0
    %v1672 = vpack.c.bf16 %v1668, %v1668
    %v1673 = vpack.c.bf16 %v1669, %v1669
    %v1674 = vpack.c.bf16 %v1670, %v1670
    %v1675 = vpack.c.bf16 %v1671, %v1671
    %v1676 = vld [vmem:[%s4] sm:$0xff]
    %v1677 = vld [vmem:[%s4 + $0x8] sm:$0xff]
    %v1678 = vld [vmem:[%s4 + $0x10] sm:$0xff]
    %v1679 = vld [vmem:[%s4 + $0x18] sm:$0xff]
    %v1680 = vld [vmem:[%s4 + $0x20] sm:$0xff]
    %v1681 = vld [vmem:[%s4 + $0x28] sm:$0xff]
    %v1682 = vld [vmem:[%s4 + $0x30] sm:$0xff]
    %v1683 = vld [vmem:[%s4 + $0x38] sm:$0xff]
    %v1684 = vld [vmem:[%s4 + $0x40] sm:$0xff]
    %v1685 = vld [vmem:[%s4 + $0x48] sm:$0xff]
    %v1686 = vld [vmem:[%s4 + $0x50] sm:$0xff]
    %v1687 = vld [vmem:[%s4 + $0x58] sm:$0xff]
    %v1688 = vld [vmem:[%s4 + $0x60] sm:$0xff]
    %v1689 = vld [vmem:[%s4 + $0x68] sm:$0xff]
    %v1690 = vld [vmem:[%s4 + $0x70] sm:$0xff]
    %v1691 = vld [vmem:[%s4 + $0x78] sm:$0xff]
    %v1692 = vld [vmem:[%s4 + $0x80] sm:$0xff]
    %v1693 = vld [vmem:[%s4 + $0x88] sm:$0xff]
    %v1694 = vld [vmem:[%s4 + $0x90] sm:$0xff]
    %v1695 = vld [vmem:[%s4 + $0x98] sm:$0xff]
    %v1696 = vld [vmem:[%s4 + $0xa0] sm:$0xff]
    %v1697 = vld [vmem:[%s4 + $0xa8] sm:$0xff]
    %v1698 = vld [vmem:[%s4 + $0xb0] sm:$0xff]
    %v1699 = vld [vmem:[%s4 + $0xb8] sm:$0xff]
    %v1700 = vld [vmem:[%s4 + $0xc0] sm:$0xff]
    %v1701 = vld [vmem:[%s4 + $0xc8] sm:$0xff]
    %v1702 = vld [vmem:[%s4 + $0xd0] sm:$0xff]
    %v1703 = vld [vmem:[%s4 + $0xd8] sm:$0xff]
    %v1704 = vld [vmem:[%s4 + $0xe0] sm:$0xff]
    %v1705 = vld [vmem:[%s4 + $0xe8] sm:$0xff]
    %v1706 = vld [vmem:[%s4 + $0xf0] sm:$0xff]
    %v1707 = vld [vmem:[%s4 + $0xf8] sm:$0xff]
    %v1708 = vld [vmem:[%s4 + $0x100] sm:$0xff]
    %v1709 = vld [vmem:[%s4 + $0x108] sm:$0xff]
    %v1710 = vld [vmem:[%s4 + $0x110] sm:$0xff]
    %v1711 = vld [vmem:[%s4 + $0x118] sm:$0xff]
    %v1712 = vld [vmem:[%s4 + $0x120] sm:$0xff]
    %v1713 = vld [vmem:[%s4 + $0x128] sm:$0xff]
    %v1714 = vld [vmem:[%s4 + $0x130] sm:$0xff]
    %v1715 = vld [vmem:[%s4 + $0x138] sm:$0xff]
    %v1716 = vld [vmem:[%s4 + $0x140] sm:$0xff]
    %v1717 = vld [vmem:[%s4 + $0x148] sm:$0xff]
    %v1718 = vld [vmem:[%s4 + $0x150] sm:$0xff]
    %v1719 = vld [vmem:[%s4 + $0x158] sm:$0xff]
    %v1720 = vld [vmem:[%s4 + $0x160] sm:$0xff]
    %v1721 = vld [vmem:[%s4 + $0x168] sm:$0xff]
    %v1722 = vld [vmem:[%s4 + $0x170] sm:$0xff]
    %v1723 = vld [vmem:[%s4 + $0x178] sm:$0xff]
    %v1724 = vld [vmem:[%s4 + $0x180] sm:$0xff]
    %v1725 = vld [vmem:[%s4 + $0x188] sm:$0xff]
    %v1726 = vld [vmem:[%s4 + $0x190] sm:$0xff]
    %v1727 = vld [vmem:[%s4 + $0x198] sm:$0xff]
    %v1728 = vld [vmem:[%s4 + $0x1a0] sm:$0xff]
    %v1729 = vld [vmem:[%s4 + $0x1a8] sm:$0xff]
    %v1730 = vld [vmem:[%s4 + $0x1b0] sm:$0xff]
    %v1731 = vld [vmem:[%s4 + $0x1b8] sm:$0xff]
    %v1732 = vld [vmem:[%s4 + $0x1c0] sm:$0xff]
    %v1733 = vld [vmem:[%s4 + $0x1c8] sm:$0xff]
    %v1734 = vld [vmem:[%s4 + $0x1d0] sm:$0xff]
    %v1735 = vld [vmem:[%s4 + $0x1d8] sm:$0xff]
    %v1736 = vld [vmem:[%s4 + $0x1e0] sm:$0xff]
    %v1737 = vld [vmem:[%s4 + $0x1e8] sm:$0xff]
    %v1738 = vld [vmem:[%s4 + $0x1f0] sm:$0xff]
    %v1739 = vld [vmem:[%s4 + $0x1f8] sm:$0xff]
    %v1740 = vld [vmem:[%s5] sm:$0x3]
    %v1742 = vperm.slane %v1740, 0
    %v1743 = vperm.slane %v1740, 1
    %v1810 = vunpack.c.l.b16 %v1676
    %v1811 = vunpack.c.h.b16 %v1676
    %v1812 = vunpack.c.l.b16 %v1677
    %v1813 = vunpack.c.h.b16 %v1677
    %v1814 = vunpack.c.l.b16 %v1678
    %v1815 = vunpack.c.h.b16 %v1678
    %v1816 = vunpack.c.l.b16 %v1679
    %v1817 = vunpack.c.h.b16 %v1679
    %v1818 = vunpack.c.l.b16 %v1680
    %v1819 = vunpack.c.h.b16 %v1680
    %v1820 = vunpack.c.l.b16 %v1681
    %v1821 = vunpack.c.h.b16 %v1681
    %v1822 = vunpack.c.l.b16 %v1682
    %v1823 = vunpack.c.h.b16 %v1682
    %v1824 = vunpack.c.l.b16 %v1683
    %v1825 = vunpack.c.h.b16 %v1683
    %v1826 = vunpack.c.l.b16 %v1684
    %v1827 = vunpack.c.h.b16 %v1684
    %v1828 = vunpack.c.l.b16 %v1685
    %v1829 = vunpack.c.h.b16 %v1685
    %v1830 = vunpack.c.l.b16 %v1686
    %v1831 = vunpack.c.h.b16 %v1686
    %v1832 = vunpack.c.l.b16 %v1687
    %v1833 = vunpack.c.h.b16 %v1687
    %v1834 = vunpack.c.l.b16 %v1688
    %v1835 = vunpack.c.h.b16 %v1688
    %v1836 = vunpack.c.l.b16 %v1689
    %v1837 = vunpack.c.h.b16 %v1689
    %v1838 = vunpack.c.l.b16 %v1690
    %v1839 = vunpack.c.h.b16 %v1690
    %v1840 = vunpack.c.l.b16 %v1691
    %v1841 = vunpack.c.h.b16 %v1691
    %v1842 = vunpack.c.l.b16 %v1692
    %v1843 = vunpack.c.h.b16 %v1692
    %v1844 = vunpack.c.l.b16 %v1693
    %v1845 = vunpack.c.h.b16 %v1693
    %v1846 = vunpack.c.l.b16 %v1694
    %v1847 = vunpack.c.h.b16 %v1694
    %v1848 = vunpack.c.l.b16 %v1695
    %v1849 = vunpack.c.h.b16 %v1695
    %v1850 = vunpack.c.l.b16 %v1696
    %v1851 = vunpack.c.h.b16 %v1696
    %v1852 = vunpack.c.l.b16 %v1697
    %v1853 = vunpack.c.h.b16 %v1697
    %v1854 = vunpack.c.l.b16 %v1698
    %v1855 = vunpack.c.h.b16 %v1698
    %v1856 = vunpack.c.l.b16 %v1699
    %v1857 = vunpack.c.h.b16 %v1699
    %v1858 = vunpack.c.l.b16 %v1700
    %v1859 = vunpack.c.h.b16 %v1700
    %v1860 = vunpack.c.l.b16 %v1701
    %v1861 = vunpack.c.h.b16 %v1701
    %v1862 = vunpack.c.l.b16 %v1702
    %v1863 = vunpack.c.h.b16 %v1702
    %v1864 = vunpack.c.l.b16 %v1703
    %v1865 = vunpack.c.h.b16 %v1703
    %v1866 = vunpack.c.l.b16 %v1704
    %v1867 = vunpack.c.h.b16 %v1704
    %v1868 = vunpack.c.l.b16 %v1705
    %v1869 = vunpack.c.h.b16 %v1705
    %v1870 = vunpack.c.l.b16 %v1706
    %v1871 = vunpack.c.h.b16 %v1706
    %v1872 = vunpack.c.l.b16 %v1707
    %v1873 = vunpack.c.h.b16 %v1707
    %v1874 = vunpack.c.l.b16 %v1708
    %v1875 = vunpack.c.h.b16 %v1708
    %v1876 = vunpack.c.l.b16 %v1709
    %v1877 = vunpack.c.h.b16 %v1709
    %v1878 = vunpack.c.l.b16 %v1710
    %v1879 = vunpack.c.h.b16 %v1710
    %v1880 = vunpack.c.l.b16 %v1711
    %v1881 = vunpack.c.h.b16 %v1711
    %v1882 = vunpack.c.l.b16 %v1712
    %v1883 = vunpack.c.h.b16 %v1712
    %v1884 = vunpack.c.l.b16 %v1713
    %v1885 = vunpack.c.h.b16 %v1713
    %v1886 = vunpack.c.l.b16 %v1714
    %v1887 = vunpack.c.h.b16 %v1714
    %v1888 = vunpack.c.l.b16 %v1715
    %v1889 = vunpack.c.h.b16 %v1715
    %v1890 = vunpack.c.l.b16 %v1716
    %v1891 = vunpack.c.h.b16 %v1716
    %v1892 = vunpack.c.l.b16 %v1717
    %v1893 = vunpack.c.h.b16 %v1717
    %v1894 = vunpack.c.l.b16 %v1718
    %v1895 = vunpack.c.h.b16 %v1718
    %v1896 = vunpack.c.l.b16 %v1719
    %v1897 = vunpack.c.h.b16 %v1719
    %v1898 = vunpack.c.l.b16 %v1720
    %v1899 = vunpack.c.h.b16 %v1720
    %v1900 = vunpack.c.l.b16 %v1721
    %v1901 = vunpack.c.h.b16 %v1721
    %v1902 = vunpack.c.l.b16 %v1722
    %v1903 = vunpack.c.h.b16 %v1722
    %v1904 = vunpack.c.l.b16 %v1723
    %v1905 = vunpack.c.h.b16 %v1723
    %v1906 = vunpack.c.l.b16 %v1724
    %v1907 = vunpack.c.h.b16 %v1724
    %v1908 = vunpack.c.l.b16 %v1725
    %v1909 = vunpack.c.h.b16 %v1725
    %v1910 = vunpack.c.l.b16 %v1726
    %v1911 = vunpack.c.h.b16 %v1726
    %v1912 = vunpack.c.l.b16 %v1727
    %v1913 = vunpack.c.h.b16 %v1727
    %v1914 = vunpack.c.l.b16 %v1728
    %v1915 = vunpack.c.h.b16 %v1728
    %v1916 = vunpack.c.l.b16 %v1729
    %v1917 = vunpack.c.h.b16 %v1729
    %v1918 = vunpack.c.l.b16 %v1730
    %v1919 = vunpack.c.h.b16 %v1730
    %v1920 = vunpack.c.l.b16 %v1731
    %v1921 = vunpack.c.h.b16 %v1731
    %v1922 = vunpack.c.l.b16 %v1732
    %v1923 = vunpack.c.h.b16 %v1732
    %v1924 = vunpack.c.l.b16 %v1733
    %v1925 = vunpack.c.h.b16 %v1733
    %v1926 = vunpack.c.l.b16 %v1734
    %v1927 = vunpack.c.h.b16 %v1734
    %v1928 = vunpack.c.l.b16 %v1735
    %v1929 = vunpack.c.h.b16 %v1735
    %v1930 = vunpack.c.l.b16 %v1736
    %v1931 = vunpack.c.h.b16 %v1736
    %v1932 = vunpack.c.l.b16 %v1737
    %v1933 = vunpack.c.h.b16 %v1737
    %v1934 = vunpack.c.l.b16 %v1738
    %v1935 = vunpack.c.h.b16 %v1738
    %v1936 = vunpack.c.l.b16 %v1739
    %v1937 = vunpack.c.h.b16 %v1739
    %v1938 = vpack.c.b16 %v1812, %v1810
    %v1939 = vpack.c.b16 %v1813, %v1811
    %v1940 = vpack.c.b16 %v1816, %v1814
    %v1941 = vpack.c.b16 %v1817, %v1815
    %v1942 = vpack.c.b16 %v1820, %v1818
    %v1943 = vpack.c.b16 %v1821, %v1819
    %v1944 = vpack.c.b16 %v1824, %v1822
    %v1945 = vpack.c.b16 %v1825, %v1823
    %v1946 = vpack.c.b16 %v1828, %v1826
    %v1947 = vpack.c.b16 %v1829, %v1827
    %v1948 = vpack.c.b16 %v1832, %v1830
    %v1949 = vpack.c.b16 %v1833, %v1831
    %v1950 = vpack.c.b16 %v1836, %v1834
    %v1951 = vpack.c.b16 %v1837, %v1835
    %v1952 = vpack.c.b16 %v1840, %v1838
    %v1953 = vpack.c.b16 %v1841, %v1839
    %v1954 = vpack.c.b16 %v1844, %v1842
    %v1955 = vpack.c.b16 %v1845, %v1843
    %v1956 = vpack.c.b16 %v1848, %v1846
    %v1957 = vpack.c.b16 %v1849, %v1847
    %v1958 = vpack.c.b16 %v1852, %v1850
    %v1959 = vpack.c.b16 %v1853, %v1851
    %v1960 = vpack.c.b16 %v1856, %v1854
    %v1961 = vpack.c.b16 %v1857, %v1855
    %v1962 = vpack.c.b16 %v1860, %v1858
    %v1963 = vpack.c.b16 %v1861, %v1859
    %v1964 = vpack.c.b16 %v1864, %v1862
    %v1965 = vpack.c.b16 %v1865, %v1863
    %v1966 = vpack.c.b16 %v1868, %v1866
    %v1967 = vpack.c.b16 %v1869, %v1867
    %v1968 = vpack.c.b16 %v1872, %v1870
    %v1969 = vpack.c.b16 %v1873, %v1871
    %v1970 = vpack.c.b16 %v1876, %v1874
    %v1971 = vpack.c.b16 %v1877, %v1875
    %v1972 = vpack.c.b16 %v1880, %v1878
    %v1973 = vpack.c.b16 %v1881, %v1879
    %v1974 = vpack.c.b16 %v1884, %v1882
    %v1975 = vpack.c.b16 %v1885, %v1883
    %v1976 = vpack.c.b16 %v1888, %v1886
    %v1977 = vpack.c.b16 %v1889, %v1887
    %v1978 = vpack.c.b16 %v1892, %v1890
    %v1979 = vpack.c.b16 %v1893, %v1891
    %v1980 = vpack.c.b16 %v1896, %v1894
    %v1981 = vpack.c.b16 %v1897, %v1895
    %v1982 = vpack.c.b16 %v1900, %v1898
    %v1983 = vpack.c.b16 %v1901, %v1899
    %v1984 = vpack.c.b16 %v1904, %v1902
    %v1985 = vpack.c.b16 %v1905, %v1903
    %v1986 = vpack.c.b16 %v1908, %v1906
    %v1987 = vpack.c.b16 %v1909, %v1907
    %v1988 = vpack.c.b16 %v1912, %v1910
    %v1989 = vpack.c.b16 %v1913, %v1911
    %v1990 = vpack.c.b16 %v1916, %v1914
    %v1991 = vpack.c.b16 %v1917, %v1915
    %v1992 = vpack.c.b16 %v1920, %v1918
    %v1993 = vpack.c.b16 %v1921, %v1919
    %v1994 = vpack.c.b16 %v1924, %v1922
    %v1995 = vpack.c.b16 %v1925, %v1923
    %v1996 = vpack.c.b16 %v1928, %v1926
    %v1997 = vpack.c.b16 %v1929, %v1927
    %v1998 = vpack.c.b16 %v1932, %v1930
    %v1999 = vpack.c.b16 %v1933, %v1931
    %v2000 = vpack.c.b16 %v1936, %v1934
    %v2001 = vpack.c.b16 %v1937, %v1935
    %2066 = vmatpush.bf16.msra.mxu0 %v1952
    %2067 = vmatpush.bf16.msra.mxu0 %v1950
    %2068 = vmatpush.bf16.msra.mxu0 %v1948
    %2069 = vmatpush.bf16.msra.mxu0 %v1946
    %2070 = vmatpush.bf16.msra.mxu0 %v1944
    %2071 = vmatpush.bf16.msra.mxu0 %v1942
    %2072 = vmatpush.bf16.msra.mxu0 %v1940
    %2073 = vmatpush.bf16.msra.mxu0 %v1938
    %2074 = vmatmul.bf16.gmra.mxu0 %v1672
    %v2075 = vpop.f32.mrf.mxu0
    %v2076 = vadd.f32 %v1742, %v2075
    %v2077 = vpop.f32.mrf.mxu0
    %2078 = vdwg.mxu0
    %2079 = vmatpush.bf16.msra.mxu0 %v1968
    %2080 = vmatpush.bf16.msra.mxu0 %v1966
    %2081 = vmatpush.bf16.msra.mxu0 %v1964
    %2082 = vmatpush.bf16.msra.mxu0 %v1962
    %2083 = vmatpush.bf16.msra.mxu0 %v1960
    %2084 = vmatpush.bf16.msra.mxu0 %v1958
    %2085 = vmatpush.bf16.msra.mxu0 %v1956
    %2086 = vmatpush.bf16.msra.mxu0 %v1954
    %2087 = vmatmul.bf16.gmra.mxu0 %v1673
    %v2088 = vpop.f32.mrf.mxu0
    %v2089 = vadd.f32 %v2076, %v2088
    %v2090 = vpop.f32.mrf.mxu0
    %2091 = vdwg.mxu0
    %2092 = vmatpush.bf16.msra.mxu0 %v1984
    %2093 = vmatpush.bf16.msra.mxu0 %v1982
    %2094 = vmatpush.bf16.msra.mxu0 %v1980
    %2095 = vmatpush.bf16.msra.mxu0 %v1978
    %2096 = vmatpush.bf16.msra.mxu0 %v1976
    %2097 = vmatpush.bf16.msra.mxu0 %v1974
    %2098 = vmatpush.bf16.msra.mxu0 %v1972
    %2099 = vmatpush.bf16.msra.mxu0 %v1970
    %2100 = vmatmul.bf16.gmra.mxu0 %v1674
    %v2101 = vpop.f32.mrf.mxu0
    %v2102 = vadd.f32 %v2089, %v2101
    %v2103 = vpop.f32.mrf.mxu0
    %2104 = vdwg.mxu0
    %2105 = vmatpush.bf16.msra.mxu0 %v2000
    %2106 = vmatpush.bf16.msra.mxu0 %v1998
    %2107 = vmatpush.bf16.msra.mxu0 %v1996
    %2108 = vmatpush.bf16.msra.mxu0 %v1994
    %2109 = vmatpush.bf16.msra.mxu0 %v1992
    %2110 = vmatpush.bf16.msra.mxu0 %v1990
    %2111 = vmatpush.bf16.msra.mxu0 %v1988
    %2112 = vmatpush.bf16.msra.mxu0 %v1986
    %2113 = vmatmul.bf16.gmra.mxu0 %v1675
    %v2114 = vpop.f32.mrf.mxu0
    %v2115 = vadd.f32 %v2102, %v2114
    %v2116 = vpop.f32.mrf.mxu0
    %2117 = vdwg.mxu0
    %2118 = vmatpush.bf16.msra.mxu0 %v1953
    %2119 = vmatpush.bf16.msra.mxu0 %v1951
    %2120 = vmatpush.bf16.msra.mxu0 %v1949
    %2121 = vmatpush.bf16.msra.mxu0 %v1947
    %2122 = vmatpush.bf16.msra.mxu0 %v1945
    %2123 = vmatpush.bf16.msra.mxu0 %v1943
    %2124 = vmatpush.bf16.msra.mxu0 %v1941
    %2125 = vmatpush.bf16.msra.mxu0 %v1939
    %2126 = vmatmul.bf16.gmra.mxu0 %v1672
    %v2127 = vpop.f32.mrf.mxu0
    %v2128 = vadd.f32 %v1743, %v2127
    %v2129 = vpop.f32.mrf.mxu0
    %2130 = vdwg.mxu0
    %2131 = vmatpush.bf16.msra.mxu0 %v1969
    %2132 = vmatpush.bf16.msra.mxu0 %v1967
    %2133 = vmatpush.bf16.msra.mxu0 %v1965
    %2134 = vmatpush.bf16.msra.mxu0 %v1963
    %2135 = vmatpush.bf16.msra.mxu0 %v1961
    %2136 = vmatpush.bf16.msra.mxu0 %v1959
    %2137 = vmatpush.bf16.msra.mxu0 %v1957
    %2138 = vmatpush.bf16.msra.mxu0 %v1955
    %2139 = vmatmul.bf16.gmra.mxu0 %v1673
    %v2140 = vpop.f32.mrf.mxu0
    %v2141 = vadd.f32 %v2128, %v2140
    %v2142 = vpop.f32.mrf.mxu0
    %2143 = vdwg.mxu0
    %2144 = vmatpush.bf16.msra.mxu0 %v1985
    %2145 = vmatpush.bf16.msra.mxu0 %v1983
    %2146 = vmatpush.bf16.msra.mxu0 %v1981
    %2147 = vmatpush.bf16.msra.mxu0 %v1979
    %2148 = vmatpush.bf16.msra.mxu0 %v1977
    %2149 = vmatpush.bf16.msra.mxu0 %v1975
    %2150 = vmatpush.bf16.msra.mxu0 %v1973
    %2151 = vmatpush.bf16.msra.mxu0 %v1971
    %2152 = vmatmul.bf16.gmra.mxu0 %v1674
    %v2153 = vpop.f32.mrf.mxu0
    %v2154 = vadd.f32 %v2141, %v2153
    %v2155 = vpop.f32.mrf.mxu0
    %2156 = vdwg.mxu0
    %2157 = vmatpush.bf16.msra.mxu0 %v2001
    %2158 = vmatpush.bf16.msra.mxu0 %v1999
    %2159 = vmatpush.bf16.msra.mxu0 %v1997
    %2160 = vmatpush.bf16.msra.mxu0 %v1995
    %2161 = vmatpush.bf16.msra.mxu0 %v1993
    %2162 = vmatpush.bf16.msra.mxu0 %v1991
    %2163 = vmatpush.bf16.msra.mxu0 %v1989
    %2164 = vmatpush.bf16.msra.mxu0 %v1987
    %2165 = vmatmul.bf16.gmra.mxu0 %v1675
    %v2166 = vpop.f32.mrf.mxu0
    %v2167 = vadd.f32 %v2154, %v2166
    %v2168 = vpop.f32.mrf.mxu0
    %2169 = vdwg.mxu0
    %v2170 = vld [vmem:[%s1] sm:$0xff]
    %v2171 = vmul.f32 %v2167, 0.5
    %v2172 = vmul.f32 %v2171, 1.442695
    %v2173 = vpow.pop %v2172
    %v2174 = vmul.f32 %v2170, %v2173
    %v2175 = vadd.f32 %v2115, %v2174
    %v2176 = vpack.c.bf16 %v2175, %v2175
    %v2177 = vld [vmem:[#allocation5] sm:$0xff]
    %v2178 = vld [vmem:[#allocation5 + $0x8] sm:$0xff]
    %v2179 = vld [vmem:[#allocation5 + $0x10] sm:$0xff]
    %v2180 = vld [vmem:[#allocation5 + $0x18] sm:$0xff]
    %v2181 = vld [vmem:[#allocation5 + $0x20] sm:$0xff]
    %v2182 = vld [vmem:[#allocation5 + $0x28] sm:$0xff]
    %v2183 = vld [vmem:[#allocation5 + $0x30] sm:$0xff]
    %v2184 = vld [vmem:[#allocation5 + $0x38] sm:$0xff]
    %v2185 = vld [vmem:[#allocation5 + $0x40] sm:$0xff]
    %v2186 = vld [vmem:[#allocation5 + $0x48] sm:$0xff]
    %v2187 = vld [vmem:[#allocation5 + $0x50] sm:$0xff]
    %v2188 = vld [vmem:[#allocation5 + $0x58] sm:$0xff]
    %v2189 = vld [vmem:[#allocation5 + $0x60] sm:$0xff]
    %v2190 = vld [vmem:[#allocation5 + $0x68] sm:$0xff]
    %v2191 = vld [vmem:[#allocation5 + $0x70] sm:$0xff]
    %v2192 = vld [vmem:[#allocation5 + $0x78] sm:$0xff]
    %v2193 = vld [vmem:[#allocation5 + $0x80] sm:$0xff]
    %v2194 = vld [vmem:[#allocation5 + $0x88] sm:$0xff]
    %v2195 = vld [vmem:[#allocation5 + $0x90] sm:$0xff]
    %v2196 = vld [vmem:[#allocation5 + $0x98] sm:$0xff]
    %v2197 = vld [vmem:[#allocation5 + $0xa0] sm:$0xff]
    %v2198 = vld [vmem:[#allocation5 + $0xa8] sm:$0xff]
    %v2199 = vld [vmem:[#allocation5 + $0xb0] sm:$0xff]
    %v2200 = vld [vmem:[#allocation5 + $0xb8] sm:$0xff]
    %v2201 = vld [vmem:[#allocation5 + $0xc0] sm:$0xff]
    %v2202 = vld [vmem:[#allocation5 + $0xc8] sm:$0xff]
    %v2203 = vld [vmem:[#allocation5 + $0xd0] sm:$0xff]
    %v2204 = vld [vmem:[#allocation5 + $0xd8] sm:$0xff]
    %v2205 = vld [vmem:[#allocation5 + $0xe0] sm:$0xff]
    %v2206 = vld [vmem:[#allocation5 + $0xe8] sm:$0xff]
    %v2207 = vld [vmem:[#allocation5 + $0xf0] sm:$0xff]
    %v2208 = vld [vmem:[#allocation5 + $0xf8] sm:$0xff]
    %v2209 = vld [vmem:[%s7] sm:$0xf]
    %v2211 = vperm.slane %v2209, 0
    %v2212 = vperm.slane %v2209, 1
    %v2213 = vperm.slane %v2209, 2
    %v2214 = vperm.slane %v2209, 3
    %v2251 = vunpack.c.l.b16 %v2177
    %v2252 = vunpack.c.h.b16 %v2177
    %v2253 = vunpack.c.l.b16 %v2178
    %v2254 = vunpack.c.h.b16 %v2178
    %v2255 = vunpack.c.l.b16 %v2179
    %v2256 = vunpack.c.h.b16 %v2179
    %v2257 = vunpack.c.l.b16 %v2180
    %v2258 = vunpack.c.h.b16 %v2180
    %v2259 = vunpack.c.l.b16 %v2181
    %v2260 = vunpack.c.h.b16 %v2181
    %v2261 = vunpack.c.l.b16 %v2182
    %v2262 = vunpack.c.h.b16 %v2182
    %v2263 = vunpack.c.l.b16 %v2183
    %v2264 = vunpack.c.h.b16 %v2183
    %v2265 = vunpack.c.l.b16 %v2184
    %v2266 = vunpack.c.h.b16 %v2184
    %v2267 = vunpack.c.l.b16 %v2185
    %v2268 = vunpack.c.h.b16 %v2185
    %v2269 = vunpack.c.l.b16 %v2186
    %v2270 = vunpack.c.h.b16 %v2186
    %v2271 = vunpack.c.l.b16 %v2187
    %v2272 = vunpack.c.h.b16 %v2187
    %v2273 = vunpack.c.l.b16 %v2188
    %v2274 = vunpack.c.h.b16 %v2188
    %v2275 = vunpack.c.l.b16 %v2189
    %v2276 = vunpack.c.h.b16 %v2189
    %v2277 = vunpack.c.l.b16 %v2190
    %v2278 = vunpack.c.h.b16 %v2190
    %v2279 = vunpack.c.l.b16 %v2191
    %v2280 = vunpack.c.h.b16 %v2191
    %v2281 = vunpack.c.l.b16 %v2192
    %v2282 = vunpack.c.h.b16 %v2192
    %v2283 = vunpack.c.l.b16 %v2193
    %v2284 = vunpack.c.h.b16 %v2193
    %v2285 = vunpack.c.l.b16 %v2194
    %v2286 = vunpack.c.h.b16 %v2194
    %v2287 = vunpack.c.l.b16 %v2195
    %v2288 = vunpack.c.h.b16 %v2195
    %v2289 = vunpack.c.l.b16 %v2196
    %v2290 = vunpack.c.h.b16 %v2196
    %v2291 = vunpack.c.l.b16 %v2197
    %v2292 = vunpack.c.h.b16 %v2197
    %v2293 = vunpack.c.l.b16 %v2198
    %v2294 = vunpack.c.h.b16 %v2198
    %v2295 = vunpack.c.l.b16 %v2199
    %v2296 = vunpack.c.h.b16 %v2199
    %v2297 = vunpack.c.l.b16 %v2200
    %v2298 = vunpack.c.h.b16 %v2200
    %v2299 = vunpack.c.l.b16 %v2201
    %v2300 = vunpack.c.h.b16 %v2201
    %v2301 = vunpack.c.l.b16 %v2202
    %v2302 = vunpack.c.h.b16 %v2202
    %v2303 = vunpack.c.l.b16 %v2203
    %v2304 = vunpack.c.h.b16 %v2203
    %v2305 = vunpack.c.l.b16 %v2204
    %v2306 = vunpack.c.h.b16 %v2204
    %v2307 = vunpack.c.l.b16 %v2205
    %v2308 = vunpack.c.h.b16 %v2205
    %v2309 = vunpack.c.l.b16 %v2206
    %v2310 = vunpack.c.h.b16 %v2206
    %v2311 = vunpack.c.l.b16 %v2207
    %v2312 = vunpack.c.h.b16 %v2207
    %v2313 = vunpack.c.l.b16 %v2208
    %v2314 = vunpack.c.h.b16 %v2208
    %v2315 = vpack.c.b16 %v2255, %v2251
    %v2316 = vpack.c.b16 %v2256, %v2252
    %v2317 = vpack.c.b16 %v2257, %v2253
    %v2318 = vpack.c.b16 %v2258, %v2254
    %v2319 = vpack.c.b16 %v2263, %v2259
    %v2320 = vpack.c.b16 %v2264, %v2260
    %v2321 = vpack.c.b16 %v2265, %v2261
    %v2322 = vpack.c.b16 %v2266, %v2262
    %v2323 = vpack.c.b16 %v2271, %v2267
    %v2324 = vpack.c.b16 %v2272, %v2268
    %v2325 = vpack.c.b16 %v2273, %v2269
    %v2326 = vpack.c.b16 %v2274, %v2270
    %v2327 = vpack.c.b16 %v2279, %v2275
    %v2328 = vpack.c.b16 %v2280, %v2276
    %v2329 = vpack.c.b16 %v2281, %v2277
    %v2330 = vpack.c.b16 %v2282, %v2278
    %v2331 = vpack.c.b16 %v2287, %v2283
    %v2332 = vpack.c.b16 %v2288, %v2284
    %v2333 = vpack.c.b16 %v2289, %v2285
    %v2334 = vpack.c.b16 %v2290, %v2286
    %v2335 = vpack.c.b16 %v2295, %v2291
    %v2336 = vpack.c.b16 %v2296, %v2292
    %v2337 = vpack.c.b16 %v2297, %v2293
    %v2338 = vpack.c.b16 %v2298, %v2294
    %v2339 = vpack.c.b16 %v2303, %v2299
    %v2340 = vpack.c.b16 %v2304, %v2300
    %v2341 = vpack.c.b16 %v2305, %v2301
    %v2342 = vpack.c.b16 %v2306, %v2302
    %v2343 = vpack.c.b16 %v2311, %v2307
    %v2344 = vpack.c.b16 %v2312, %v2308
    %v2345 = vpack.c.b16 %v2313, %v2309
    %v2346 = vpack.c.b16 %v2314, %v2310
    %2379 = vmatpush.bf16.msra.mxu0 %v2343
    %2380 = vmatpush.bf16.msra.mxu0 %v2339
    %2381 = vmatpush.bf16.msra.mxu0 %v2335
    %2382 = vmatpush.bf16.msra.mxu0 %v2331
    %2383 = vmatpush.bf16.msra.mxu0 %v2327
    %2384 = vmatpush.bf16.msra.mxu0 %v2323
    %2385 = vmatpush.bf16.msra.mxu0 %v2319
    %2386 = vmatpush.bf16.msra.mxu0 %v2315
    %2387 = vmatmul.bf16.gmra.mxu0 %v2176
    %v2388 = vpop.f32.mrf.mxu0
    %v2389 = vadd.f32 %v2211, %v2388
    %v2390 = vpop.f32.mrf.mxu0
    %2391 = vdwg.mxu0
    %2392 = vmatpush.bf16.msra.mxu0 %v2344
    %2393 = vmatpush.bf16.msra.mxu0 %v2340
    %2394 = vmatpush.bf16.msra.mxu0 %v2336
    %2395 = vmatpush.bf16.msra.mxu0 %v2332
    %2396 = vmatpush.bf16.msra.mxu0 %v2328
    %2397 = vmatpush.bf16.msra.mxu0 %v2324
    %2398 = vmatpush.bf16.msra.mxu0 %v2320
    %2399 = vmatpush.bf16.msra.mxu0 %v2316
    %2400 = vmatmul.bf16.gmra.mxu0 %v2176
    %v2401 = vpop.f32.mrf.mxu0
    %v2402 = vadd.f32 %v2212, %v2401
    %v2403 = vpop.f32.mrf.mxu0
    %2404 = vdwg.mxu0
    %2405 = vmatpush.bf16.msra.mxu0 %v2345
    %2406 = vmatpush.bf16.msra.mxu0 %v2341
    %2407 = vmatpush.bf16.msra.mxu0 %v2337
    %2408 = vmatpush.bf16.msra.mxu0 %v2333
    %2409 = vmatpush.bf16.msra.mxu0 %v2329
    %2410 = vmatpush.bf16.msra.mxu0 %v2325
    %2411 = vmatpush.bf16.msra.mxu0 %v2321
    %2412 = vmatpush.bf16.msra.mxu0 %v2317
    %2413 = vmatmul.bf16.gmra.mxu0 %v2176
    %v2414 = vpop.f32.mrf.mxu0
    %v2415 = vadd.f32 %v2213, %v2414
    %v2416 = vpop.f32.mrf.mxu0
    %2417 = vdwg.mxu0
    %2418 = vmatpush.bf16.msra.mxu0 %v2346
    %2419 = vmatpush.bf16.msra.mxu0 %v2342
    %2420 = vmatpush.bf16.msra.mxu0 %v2338
    %2421 = vmatpush.bf16.msra.mxu0 %v2334
    %2422 = vmatpush.bf16.msra.mxu0 %v2330
    %2423 = vmatpush.bf16.msra.mxu0 %v2326
    %2424 = vmatpush.bf16.msra.mxu0 %v2322
    %2425 = vmatpush.bf16.msra.mxu0 %v2318
    %2426 = vmatmul.bf16.gmra.mxu0 %v2176
    %v2427 = vpop.f32.mrf.mxu0
    %v2428 = vadd.f32 %v2214, %v2427
    %v2429 = vpop.f32.mrf.mxu0
    %2430 = vdwg.mxu0
    %v2431 = vmax.f32 %v2389, 0.0
    %v2432 = vmax.f32 %v2402, 0.0
    %v2433 = vmax.f32 %v2415, 0.0
    %v2434 = vmax.f32 %v2428, 0.0
    %v2435 = vpack.c.bf16 %v2431, %v2431
    %v2436 = vpack.c.bf16 %v2432, %v2432
    %v2437 = vpack.c.bf16 %v2433, %v2433
    %v2438 = vpack.c.bf16 %v2434, %v2434
    %v2439 = vld [vmem:[#allocation7] sm:$0xff]
    %v2440 = vld [vmem:[#allocation7 + $0x8] sm:$0xff]
    %v2441 = vld [vmem:[#allocation7 + $0x10] sm:$0xff]
    %v2442 = vld [vmem:[#allocation7 + $0x18] sm:$0xf]
    %v2443 = vld [vmem:[#allocation7 + $0x1c] sm:$0xff]
    %v2444 = vld [vmem:[#allocation7 + $0x24] sm:$0xff]
    %v2445 = vld [vmem:[#allocation7 + $0x2c] sm:$0xff]
    %v2446 = vld [vmem:[#allocation7 + $0x34] sm:$0xf]
    %v2447 = vld [vmem:[#allocation7 + $0x38] sm:$0xff]
    %v2448 = vld [vmem:[#allocation7 + $0x40] sm:$0xff]
    %v2449 = vld [vmem:[#allocation7 + $0x48] sm:$0xff]
    %v2450 = vld [vmem:[#allocation7 + $0x50] sm:$0xf]
    %v2451 = vld [vmem:[#allocation7 + $0x54] sm:$0xff]
    %v2452 = vld [vmem:[#allocation7 + $0x5c] sm:$0xff]
    %v2453 = vld [vmem:[#allocation7 + $0x64] sm:$0xff]
    %v2454 = vld [vmem:[#allocation7 + $0x6c] sm:$0xf]
    %v2455 = vld [vmem:[#allocation7 + $0x70] sm:$0xff]
    %v2456 = vld [vmem:[#allocation7 + $0x78] sm:$0xff]
    %v2457 = vld [vmem:[#allocation7 + $0x80] sm:$0xff]
    %v2458 = vld [vmem:[#allocation7 + $0x88] sm:$0xf]
    %v2459 = vld [vmem:[#allocation7 + $0x8c] sm:$0xff]
    %v2460 = vld [vmem:[#allocation7 + $0x94] sm:$0xff]
    %v2461 = vld [vmem:[#allocation7 + $0x9c] sm:$0xff]
    %v2462 = vld [vmem:[#allocation7 + $0xa4] sm:$0xf]
    %v2463 = vld [vmem:[#allocation7 + $0xa8] sm:$0xff]
    %v2464 = vld [vmem:[#allocation7 + $0xb0] sm:$0xff]
    %v2465 = vld [vmem:[#allocation7 + $0xb8] sm:$0xff]
    %v2466 = vld [vmem:[#allocation7 + $0xc0] sm:$0xf]
    %v2467 = vld [vmem:[#allocation7 + $0xc4] sm:$0xff]
    %v2468 = vld [vmem:[#allocation7 + $0xcc] sm:$0xff]
    %v2469 = vld [vmem:[#allocation7 + $0xd4] sm:$0xff]
    %v2470 = vld [vmem:[#allocation7 + $0xdc] sm:$0xf]
    %v2471 = vld [vmem:[#allocation7 + $0xe0] sm:$0xff]
    %v2472 = vld [vmem:[#allocation7 + $0xe8] sm:$0xff]
    %v2473 = vld [vmem:[#allocation7 + $0xf0] sm:$0xff]
    %v2474 = vld [vmem:[#allocation7 + $0xf8] sm:$0xf]
    %v2475 = vld [vmem:[#allocation7 + $0xfc] sm:$0xff]
    %v2476 = vld [vmem:[#allocation7 + $0x104] sm:$0xff]
    %v2477 = vld [vmem:[#allocation7 + $0x10c] sm:$0xff]
    %v2478 = vld [vmem:[#allocation7 + $0x114] sm:$0xf]
    %v2479 = vld [vmem:[#allocation7 + $0x118] sm:$0xff]
    %v2480 = vld [vmem:[#allocation7 + $0x120] sm:$0xff]
    %v2481 = vld [vmem:[#allocation7 + $0x128] sm:$0xff]
    %v2482 = vld [vmem:[#allocation7 + $0x130] sm:$0xf]
    %v2483 = vld [vmem:[#allocation7 + $0x134] sm:$0xff]
    %v2484 = vld [vmem:[#allocation7 + $0x13c] sm:$0xff]
    %v2485 = vld [vmem:[#allocation7 + $0x144] sm:$0xff]
    %v2486 = vld [vmem:[#allocation7 + $0x14c] sm:$0xf]
    %v2487 = vld [vmem:[#allocation7 + $0x150] sm:$0xff]
    %v2488 = vld [vmem:[#allocation7 + $0x158] sm:$0xff]
    %v2489 = vld [vmem:[#allocation7 + $0x160] sm:$0xff]
    %v2490 = vld [vmem:[#allocation7 + $0x168] sm:$0xf]
    %v2491 = vld [vmem:[#allocation7 + $0x16c] sm:$0xff]
    %v2492 = vld [vmem:[#allocation7 + $0x174] sm:$0xff]
    %v2493 = vld [vmem:[#allocation7 + $0x17c] sm:$0xff]
    %v2494 = vld [vmem:[#allocation7 + $0x184] sm:$0xf]
    %v2495 = vld [vmem:[#allocation7 + $0x188] sm:$0xff]
    %v2496 = vld [vmem:[#allocation7 + $0x190] sm:$0xff]
    %v2497 = vld [vmem:[#allocation7 + $0x198] sm:$0xff]
    %v2498 = vld [vmem:[#allocation7 + $0x1a0] sm:$0xf]
    %v2499 = vld [vmem:[#allocation7 + $0x1a4] sm:$0xff]
    %v2500 = vld [vmem:[#allocation7 + $0x1ac] sm:$0xff]
    %v2501 = vld [vmem:[#allocation7 + $0x1b4] sm:$0xff]
    %v2502 = vld [vmem:[#allocation7 + $0x1bc] sm:$0xf]
    %v2503 = vld [vmem:[#allocation7 + $0x1c0] sm:$0xff]
    %v2504 = vld [vmem:[#allocation7 + $0x1c8] sm:$0xff]
    %v2505 = vld [vmem:[#allocation7 + $0x1d0] sm:$0xff]
    %v2506 = vld [vmem:[#allocation7 + $0x1d8] sm:$0xf]
    %v2507 = vld [vmem:[#allocation7 + $0x1dc] sm:$0xff]
    %v2508 = vld [vmem:[#allocation7 + $0x1e4] sm:$0xff]
    %v2509 = vld [vmem:[#allocation7 + $0x1ec] sm:$0xff]
    %v2510 = vld [vmem:[#allocation7 + $0x1f4] sm:$0xf]
    %v2511 = vld [vmem:[#allocation7 + $0x1f8] sm:$0xff]
    %v2512 = vld [vmem:[#allocation7 + $0x200] sm:$0xff]
    %v2513 = vld [vmem:[#allocation7 + $0x208] sm:$0xff]
    %v2514 = vld [vmem:[#allocation7 + $0x210] sm:$0xf]
    %v2515 = vld [vmem:[#allocation7 + $0x214] sm:$0xff]
    %v2516 = vld [vmem:[#allocation7 + $0x21c] sm:$0xff]
    %v2517 = vld [vmem:[#allocation7 + $0x224] sm:$0xff]
    %v2518 = vld [vmem:[#allocation7 + $0x22c] sm:$0xf]
    %v2519 = vld [vmem:[#allocation7 + $0x230] sm:$0xff]
    %v2520 = vld [vmem:[#allocation7 + $0x238] sm:$0xff]
    %v2521 = vld [vmem:[#allocation7 + $0x240] sm:$0xff]
    %v2522 = vld [vmem:[#allocation7 + $0x248] sm:$0xf]
    %v2523 = vld [vmem:[#allocation7 + $0x24c] sm:$0xff]
    %v2524 = vld [vmem:[#allocation7 + $0x254] sm:$0xff]
    %v2525 = vld [vmem:[#allocation7 + $0x25c] sm:$0xff]
    %v2526 = vld [vmem:[#allocation7 + $0x264] sm:$0xf]
    %v2527 = vld [vmem:[#allocation7 + $0x268] sm:$0xff]
    %v2528 = vld [vmem:[#allocation7 + $0x270] sm:$0xff]
    %v2529 = vld [vmem:[#allocation7 + $0x278] sm:$0xff]
    %v2530 = vld [vmem:[#allocation7 + $0x280] sm:$0xf]
    %v2531 = vld [vmem:[#allocation7 + $0x284] sm:$0xff]
    %v2532 = vld [vmem:[#allocation7 + $0x28c] sm:$0xff]
    %v2533 = vld [vmem:[#allocation7 + $0x294] sm:$0xff]
    %v2534 = vld [vmem:[#allocation7 + $0x29c] sm:$0xf]
    %v2535 = vld [vmem:[#allocation7 + $0x2a0] sm:$0xff]
    %v2536 = vld [vmem:[#allocation7 + $0x2a8] sm:$0xff]
    %v2537 = vld [vmem:[#allocation7 + $0x2b0] sm:$0xff]
    %v2538 = vld [vmem:[#allocation7 + $0x2b8] sm:$0xf]
    %v2539 = vld [vmem:[#allocation7 + $0x2bc] sm:$0xff]
    %v2540 = vld [vmem:[#allocation7 + $0x2c4] sm:$0xff]
    %v2541 = vld [vmem:[#allocation7 + $0x2cc] sm:$0xff]
    %v2542 = vld [vmem:[#allocation7 + $0x2d4] sm:$0xf]
    %v2543 = vld [vmem:[#allocation7 + $0x2d8] sm:$0xff]
    %v2544 = vld [vmem:[#allocation7 + $0x2e0] sm:$0xff]
    %v2545 = vld [vmem:[#allocation7 + $0x2e8] sm:$0xff]
    %v2546 = vld [vmem:[#allocation7 + $0x2f0] sm:$0xf]
    %v2547 = vld [vmem:[#allocation7 + $0x2f4] sm:$0xff]
    %v2548 = vld [vmem:[#allocation7 + $0x2fc] sm:$0xff]
    %v2549 = vld [vmem:[#allocation7 + $0x304] sm:$0xff]
    %v2550 = vld [vmem:[#allocation7 + $0x30c] sm:$0xf]
    %v2551 = vld [vmem:[#allocation7 + $0x310] sm:$0xff]
    %v2552 = vld [vmem:[#allocation7 + $0x318] sm:$0xff]
    %v2553 = vld [vmem:[#allocation7 + $0x320] sm:$0xff]
    %v2554 = vld [vmem:[#allocation7 + $0x328] sm:$0xf]
    %v2555 = vld [vmem:[#allocation7 + $0x32c] sm:$0xff]
    %v2556 = vld [vmem:[#allocation7 + $0x334] sm:$0xff]
    %v2557 = vld [vmem:[#allocation7 + $0x33c] sm:$0xff]
    %v2558 = vld [vmem:[#allocation7 + $0x344] sm:$0xf]
    %v2559 = vld [vmem:[#allocation7 + $0x348] sm:$0xff]
    %v2560 = vld [vmem:[#allocation7 + $0x350] sm:$0xff]
    %v2561 = vld [vmem:[#allocation7 + $0x358] sm:$0xff]
    %v2562 = vld [vmem:[#allocation7 + $0x360] sm:$0xf]
    %v2563 = vld [vmem:[#allocation7 + $0x364] sm:$0xff]
    %v2564 = vld [vmem:[#allocation7 + $0x36c] sm:$0xff]
    %v2565 = vld [vmem:[#allocation7 + $0x374] sm:$0xff]
    %v2566 = vld [vmem:[#allocation7 + $0x37c] sm:$0xf]
    %v2567 = vld [vmem:[#allocation7 + $0x380] sm:$0xff]
    %v2568 = vld [vmem:[#allocation7 + $0x388] sm:$0xff]
    %v2569 = vld [vmem:[#allocation7 + $0x390] sm:$0xff]
    %v2570 = vld [vmem:[#allocation7 + $0x398] sm:$0xf]
    %v2571 = vld [vmem:[#allocation7 + $0x39c] sm:$0xff]
    %v2572 = vld [vmem:[#allocation7 + $0x3a4] sm:$0xff]
    %v2573 = vld [vmem:[#allocation7 + $0x3ac] sm:$0xff]
    %v2574 = vld [vmem:[#allocation7 + $0x3b4] sm:$0xf]
    %v2575 = vld [vmem:[#allocation7 + $0x3b8] sm:$0xff]
    %v2576 = vld [vmem:[#allocation7 + $0x3c0] sm:$0xff]
    %v2577 = vld [vmem:[#allocation7 + $0x3c8] sm:$0xff]
    %v2578 = vld [vmem:[#allocation7 + $0x3d0] sm:$0xf]
    %v2579 = vld [vmem:[#allocation7 + $0x3d4] sm:$0xff]
    %v2580 = vld [vmem:[#allocation7 + $0x3dc] sm:$0xff]
    %v2581 = vld [vmem:[#allocation7 + $0x3e4] sm:$0xff]
    %v2582 = vld [vmem:[#allocation7 + $0x3ec] sm:$0xf]
    %v2583 = vld [vmem:[#allocation7 + $0x3f0] sm:$0xff]
    %v2584 = vld [vmem:[#allocation7 + $0x3f8] sm:$0xff]
    %v2585 = vld [vmem:[#allocation7 + $0x400] sm:$0xff]
    %v2586 = vld [vmem:[#allocation7 + $0x408] sm:$0xf]
    %v2587 = vld [vmem:[#allocation7 + $0x40c] sm:$0xff]
    %v2588 = vld [vmem:[#allocation7 + $0x414] sm:$0xff]
    %v2589 = vld [vmem:[#allocation7 + $0x41c] sm:$0xff]
    %v2590 = vld [vmem:[#allocation7 + $0x424] sm:$0xf]
    %v2591 = vld [vmem:[#allocation7 + $0x428] sm:$0xff]
    %v2592 = vld [vmem:[#allocation7 + $0x430] sm:$0xff]
    %v2593 = vld [vmem:[#allocation7 + $0x438] sm:$0xff]
    %v2594 = vld [vmem:[#allocation7 + $0x440] sm:$0xf]
    %v2595 = vld [vmem:[#allocation7 + $0x444] sm:$0xff]
    %v2596 = vld [vmem:[#allocation7 + $0x44c] sm:$0xff]
    %v2597 = vld [vmem:[#allocation7 + $0x454] sm:$0xff]
    %v2598 = vld [vmem:[#allocation7 + $0x45c] sm:$0xf]
    %v2599 = vld [vmem:[#allocation7 + $0x460] sm:$0xff]
    %v2600 = vld [vmem:[#allocation7 + $0x468] sm:$0xff]
    %v2601 = vld [vmem:[#allocation7 + $0x470] sm:$0xff]
    %v2602 = vld [vmem:[#allocation7 + $0x478] sm:$0xf]
    %v2603 = vld [vmem:[#allocation7 + $0x47c] sm:$0xff]
    %v2604 = vld [vmem:[#allocation7 + $0x484] sm:$0xff]
    %v2605 = vld [vmem:[#allocation7 + $0x48c] sm:$0xff]
    %v2606 = vld [vmem:[#allocation7 + $0x494] sm:$0xf]
    %v2607 = vld [vmem:[#allocation7 + $0x498] sm:$0xff]
    %v2608 = vld [vmem:[#allocation7 + $0x4a0] sm:$0xff]
    %v2609 = vld [vmem:[#allocation7 + $0x4a8] sm:$0xff]
    %v2610 = vld [vmem:[#allocation7 + $0x4b0] sm:$0xf]
    %v2611 = vld [vmem:[#allocation7 + $0x4b4] sm:$0xff]
    %v2612 = vld [vmem:[#allocation7 + $0x4bc] sm:$0xff]
    %v2613 = vld [vmem:[#allocation7 + $0x4c4] sm:$0xff]
    %v2614 = vld [vmem:[#allocation7 + $0x4cc] sm:$0xf]
    %v2615 = vld [vmem:[#allocation7 + $0x4d0] sm:$0xff]
    %v2616 = vld [vmem:[#allocation7 + $0x4d8] sm:$0xff]
    %v2617 = vld [vmem:[#allocation7 + $0x4e0] sm:$0xff]
    %v2618 = vld [vmem:[#allocation7 + $0x4e8] sm:$0xf]
    %v2619 = vld [vmem:[#allocation7 + $0x4ec] sm:$0xff]
    %v2620 = vld [vmem:[#allocation7 + $0x4f4] sm:$0xff]
    %v2621 = vld [vmem:[#allocation7 + $0x4fc] sm:$0xff]
    %v2622 = vld [vmem:[#allocation7 + $0x504] sm:$0xf]
    %v2623 = vld [vmem:[#allocation7 + $0x508] sm:$0xff]
    %v2624 = vld [vmem:[#allocation7 + $0x510] sm:$0xff]
    %v2625 = vld [vmem:[#allocation7 + $0x518] sm:$0xff]
    %v2626 = vld [vmem:[#allocation7 + $0x520] sm:$0xf]
    %v2627 = vld [vmem:[#allocation7 + $0x524] sm:$0xff]
    %v2628 = vld [vmem:[#allocation7 + $0x52c] sm:$0xff]
    %v2629 = vld [vmem:[#allocation7 + $0x534] sm:$0xff]
    %v2630 = vld [vmem:[#allocation7 + $0x53c] sm:$0xf]
    %v2631 = vld [vmem:[#allocation7 + $0x540] sm:$0xff]
    %v2632 = vld [vmem:[#allocation7 + $0x548] sm:$0xff]
    %v2633 = vld [vmem:[#allocation7 + $0x550] sm:$0xff]
    %v2634 = vld [vmem:[#allocation7 + $0x558] sm:$0xf]
    %v2635 = vld [vmem:[#allocation7 + $0x55c] sm:$0xff]
    %v2636 = vld [vmem:[#allocation7 + $0x564] sm:$0xff]
    %v2637 = vld [vmem:[#allocation7 + $0x56c] sm:$0xff]
    %v2638 = vld [vmem:[#allocation7 + $0x574] sm:$0xf]
    %v2639 = vld [vmem:[#allocation7 + $0x578] sm:$0xff]
    %v2640 = vld [vmem:[#allocation7 + $0x580] sm:$0xff]
    %v2641 = vld [vmem:[#allocation7 + $0x588] sm:$0xff]
    %v2642 = vld [vmem:[#allocation7 + $0x590] sm:$0xf]
    %v2643 = vld [vmem:[#allocation7 + $0x594] sm:$0xff]
    %v2644 = vld [vmem:[#allocation7 + $0x59c] sm:$0xff]
    %v2645 = vld [vmem:[#allocation7 + $0x5a4] sm:$0xff]
    %v2646 = vld [vmem:[#allocation7 + $0x5ac] sm:$0xf]
    %v2647 = vld [vmem:[#allocation7 + $0x5b0] sm:$0xff]
    %v2648 = vld [vmem:[#allocation7 + $0x5b8] sm:$0xff]
    %v2649 = vld [vmem:[#allocation7 + $0x5c0] sm:$0xff]
    %v2650 = vld [vmem:[#allocation7 + $0x5c8] sm:$0xf]
    %v2651 = vld [vmem:[#allocation7 + $0x5cc] sm:$0xff]
    %v2652 = vld [vmem:[#allocation7 + $0x5d4] sm:$0xff]
    %v2653 = vld [vmem:[#allocation7 + $0x5dc] sm:$0xff]
    %v2654 = vld [vmem:[#allocation7 + $0x5e4] sm:$0xf]
    %v2655 = vld [vmem:[#allocation7 + $0x5e8] sm:$0xff]
    %v2656 = vld [vmem:[#allocation7 + $0x5f0] sm:$0xff]
    %v2657 = vld [vmem:[#allocation7 + $0x5f8] sm:$0xff]
    %v2658 = vld [vmem:[#allocation7 + $0x600] sm:$0xf]
    %v2659 = vld [vmem:[#allocation7 + $0x604] sm:$0xff]
    %v2660 = vld [vmem:[#allocation7 + $0x60c] sm:$0xff]
    %v2661 = vld [vmem:[#allocation7 + $0x614] sm:$0xff]
    %v2662 = vld [vmem:[#allocation7 + $0x61c] sm:$0xf]
    %v2663 = vld [vmem:[#allocation7 + $0x620] sm:$0xff]
    %v2664 = vld [vmem:[#allocation7 + $0x628] sm:$0xff]
    %v2665 = vld [vmem:[#allocation7 + $0x630] sm:$0xff]
    %v2666 = vld [vmem:[#allocation7 + $0x638] sm:$0xf]
    %v2667 = vld [vmem:[#allocation7 + $0x63c] sm:$0xff]
    %v2668 = vld [vmem:[#allocation7 + $0x644] sm:$0xff]
    %v2669 = vld [vmem:[#allocation7 + $0x64c] sm:$0xff]
    %v2670 = vld [vmem:[#allocation7 + $0x654] sm:$0xf]
    %v2671 = vld [vmem:[#allocation7 + $0x658] sm:$0xff]
    %v2672 = vld [vmem:[#allocation7 + $0x660] sm:$0xff]
    %v2673 = vld [vmem:[#allocation7 + $0x668] sm:$0xff]
    %v2674 = vld [vmem:[#allocation7 + $0x670] sm:$0xf]
    %v2675 = vld [vmem:[#allocation7 + $0x674] sm:$0xff]
    %v2676 = vld [vmem:[#allocation7 + $0x67c] sm:$0xff]
    %v2677 = vld [vmem:[#allocation7 + $0x684] sm:$0xff]
    %v2678 = vld [vmem:[#allocation7 + $0x68c] sm:$0xf]
    %v2679 = vld [vmem:[#allocation7 + $0x690] sm:$0xff]
    %v2680 = vld [vmem:[#allocation7 + $0x698] sm:$0xff]
    %v2681 = vld [vmem:[#allocation7 + $0x6a0] sm:$0xff]
    %v2682 = vld [vmem:[#allocation7 + $0x6a8] sm:$0xf]
    %v2683 = vld [vmem:[#allocation7 + $0x6ac] sm:$0xff]
    %v2684 = vld [vmem:[#allocation7 + $0x6b4] sm:$0xff]
    %v2685 = vld [vmem:[#allocation7 + $0x6bc] sm:$0xff]
    %v2686 = vld [vmem:[#allocation7 + $0x6c4] sm:$0xf]
    %v2687 = vld [vmem:[#allocation7 + $0x6c8] sm:$0xff]
    %v2688 = vld [vmem:[#allocation7 + $0x6d0] sm:$0xff]
    %v2689 = vld [vmem:[#allocation7 + $0x6d8] sm:$0xff]
    %v2690 = vld [vmem:[#allocation7 + $0x6e0] sm:$0xf]
    %v2691 = vld [vmem:[#allocation7 + $0x6e4] sm:$0xff]
    %v2692 = vld [vmem:[#allocation7 + $0x6ec] sm:$0xff]
    %v2693 = vld [vmem:[#allocation7 + $0x6f4] sm:$0xff]
    %v2694 = vld [vmem:[#allocation7 + $0x6fc] sm:$0xf]
    %v2695 = vld [vmem:[%s9] sm:$0xff]
    %v2697 = vperm.slane %v2695, 0
    %v2698 = vperm.slane %v2695, 1
    %v2699 = vperm.slane %v2695, 2
    %v2700 = vperm.slane %v2695, 3
    %v2701 = vperm.slane %v2695, 4
    %v2702 = vperm.slane %v2695, 5
    %v2703 = vperm.slane %v2695, 6
    %v2967 = vunpack.c.l.b16 %v2439
    %v2968 = vunpack.c.h.b16 %v2439
    %v2969 = vunpack.c.l.b16 %v2440
    %v2970 = vunpack.c.h.b16 %v2440
    %v2971 = vunpack.c.l.b16 %v2441
    %v2972 = vunpack.c.h.b16 %v2441
    %v2973 = vunpack.c.l.b16 %v2442
    %v2974 = vunpack.c.l.b16 %v2443
    %v2975 = vunpack.c.h.b16 %v2443
    %v2976 = vunpack.c.l.b16 %v2444
    %v2977 = vunpack.c.h.b16 %v2444
    %v2978 = vunpack.c.l.b16 %v2445
    %v2979 = vunpack.c.h.b16 %v2445
    %v2980 = vunpack.c.l.b16 %v2446
    %v2981 = vunpack.c.l.b16 %v2447
    %v2982 = vunpack.c.h.b16 %v2447
    %v2983 = vunpack.c.l.b16 %v2448
    %v2984 = vunpack.c.h.b16 %v2448
    %v2985 = vunpack.c.l.b16 %v2449
    %v2986 = vunpack.c.h.b16 %v2449
    %v2987 = vunpack.c.l.b16 %v2450
    %v2988 = vunpack.c.l.b16 %v2451
    %v2989 = vunpack.c.h.b16 %v2451
    %v2990 = vunpack.c.l.b16 %v2452
    %v2991 = vunpack.c.h.b16 %v2452
    %v2992 = vunpack.c.l.b16 %v2453
    %v2993 = vunpack.c.h.b16 %v2453
    %v2994 = vunpack.c.l.b16 %v2454
    %v2995 = vunpack.c.l.b16 %v2455
    %v2996 = vunpack.c.h.b16 %v2455
    %v2997 = vunpack.c.l.b16 %v2456
    %v2998 = vunpack.c.h.b16 %v2456
    %v2999 = vunpack.c.l.b16 %v2457
    %v3000 = vunpack.c.h.b16 %v2457
    %v3001 = vunpack.c.l.b16 %v2458
    %v3002 = vunpack.c.l.b16 %v2459
    %v3003 = vunpack.c.h.b16 %v2459
    %v3004 = vunpack.c.l.b16 %v2460
    %v3005 = vunpack.c.h.b16 %v2460
    %v3006 = vunpack.c.l.b16 %v2461
    %v3007 = vunpack.c.h.b16 %v2461
    %v3008 = vunpack.c.l.b16 %v2462
    %v3009 = vunpack.c.l.b16 %v2463
    %v3010 = vunpack.c.h.b16 %v2463
    %v3011 = vunpack.c.l.b16 %v2464
    %v3012 = vunpack.c.h.b16 %v2464
    %v3013 = vunpack.c.l.b16 %v2465
    %v3014 = vunpack.c.h.b16 %v2465
    %v3015 = vunpack.c.l.b16 %v2466
    %v3016 = vunpack.c.l.b16 %v2467
    %v3017 = vunpack.c.h.b16 %v2467
    %v3018 = vunpack.c.l.b16 %v2468
    %v3019 = vunpack.c.h.b16 %v2468
    %v3020 = vunpack.c.l.b16 %v2469
    %v3021 = vunpack.c.h.b16 %v2469
    %v3022 = vunpack.c.l.b16 %v2470
    %v3023 = vunpack.c.l.b16 %v2471
    %v3024 = vunpack.c.h.b16 %v2471
    %v3025 = vunpack.c.l.b16 %v2472
    %v3026 = vunpack.c.h.b16 %v2472
    %v3027 = vunpack.c.l.b16 %v2473
    %v3028 = vunpack.c.h.b16 %v2473
    %v3029 = vunpack.c.l.b16 %v2474
    %v3030 = vunpack.c.l.b16 %v2475
    %v3031 = vunpack.c.h.b16 %v2475
    %v3032 = vunpack.c.l.b16 %v2476
    %v3033 = vunpack.c.h.b16 %v2476
    %v3034 = vunpack.c.l.b16 %v2477
    %v3035 = vunpack.c.h.b16 %v2477
    %v3036 = vunpack.c.l.b16 %v2478
    %v3037 = vunpack.c.l.b16 %v2479
    %v3038 = vunpack.c.h.b16 %v2479
    %v3039 = vunpack.c.l.b16 %v2480
    %v3040 = vunpack.c.h.b16 %v2480
    %v3041 = vunpack.c.l.b16 %v2481
    %v3042 = vunpack.c.h.b16 %v2481
    %v3043 = vunpack.c.l.b16 %v2482
    %v3044 = vunpack.c.l.b16 %v2483
    %v3045 = vunpack.c.h.b16 %v2483
    %v3046 = vunpack.c.l.b16 %v2484
    %v3047 = vunpack.c.h.b16 %v2484
    %v3048 = vunpack.c.l.b16 %v2485
    %v3049 = vunpack.c.h.b16 %v2485
    %v3050 = vunpack.c.l.b16 %v2486
    %v3051 = vunpack.c.l.b16 %v2487
    %v3052 = vunpack.c.h.b16 %v2487
    %v3053 = vunpack.c.l.b16 %v2488
    %v3054 = vunpack.c.h.b16 %v2488
    %v3055 = vunpack.c.l.b16 %v2489
    %v3056 = vunpack.c.h.b16 %v2489
    %v3057 = vunpack.c.l.b16 %v2490
    %v3058 = vunpack.c.l.b16 %v2491
    %v3059 = vunpack.c.h.b16 %v2491
    %v3060 = vunpack.c.l.b16 %v2492
    %v3061 = vunpack.c.h.b16 %v2492
    %v3062 = vunpack.c.l.b16 %v2493
    %v3063 = vunpack.c.h.b16 %v2493
    %v3064 = vunpack.c.l.b16 %v2494
    %v3065 = vunpack.c.l.b16 %v2495
    %v3066 = vunpack.c.h.b16 %v2495
    %v3067 = vunpack.c.l.b16 %v2496
    %v3068 = vunpack.c.h.b16 %v2496
    %v3069 = vunpack.c.l.b16 %v2497
    %v3070 = vunpack.c.h.b16 %v2497
    %v3071 = vunpack.c.l.b16 %v2498
    %v3072 = vunpack.c.l.b16 %v2499
    %v3073 = vunpack.c.h.b16 %v2499
    %v3074 = vunpack.c.l.b16 %v2500
    %v3075 = vunpack.c.h.b16 %v2500
    %v3076 = vunpack.c.l.b16 %v2501
    %v3077 = vunpack.c.h.b16 %v2501
    %v3078 = vunpack.c.l.b16 %v2502
    %v3079 = vunpack.c.l.b16 %v2503
    %v3080 = vunpack.c.h.b16 %v2503
    %v3081 = vunpack.c.l.b16 %v2504
    %v3082 = vunpack.c.h.b16 %v2504
    %v3083 = vunpack.c.l.b16 %v2505
    %v3084 = vunpack.c.h.b16 %v2505
    %v3085 = vunpack.c.l.b16 %v2506
    %v3086 = vunpack.c.l.b16 %v2507
    %v3087 = vunpack.c.h.b16 %v2507
    %v3088 = vunpack.c.l.b16 %v2508
    %v3089 = vunpack.c.h.b16 %v2508
    %v3090 = vunpack.c.l.b16 %v2509
    %v3091 = vunpack.c.h.b16 %v2509
    %v3092 = vunpack.c.l.b16 %v2510
    %v3093 = vunpack.c.l.b16 %v2511
    %v3094 = vunpack.c.h.b16 %v2511
    %v3095 = vunpack.c.l.b16 %v2512
    %v3096 = vunpack.c.h.b16 %v2512
    %v3097 = vunpack.c.l.b16 %v2513
    %v3098 = vunpack.c.h.b16 %v2513
    %v3099 = vunpack.c.l.b16 %v2514
    %v3100 = vunpack.c.l.b16 %v2515
    %v3101 = vunpack.c.h.b16 %v2515
    %v3102 = vunpack.c.l.b16 %v2516
    %v3103 = vunpack.c.h.b16 %v2516
    %v3104 = vunpack.c.l.b16 %v2517
    %v3105 = vunpack.c.h.b16 %v2517
    %v3106 = vunpack.c.l.b16 %v2518
    %v3107 = vunpack.c.l.b16 %v2519
    %v3108 = vunpack.c.h.b16 %v2519
    %v3109 = vunpack.c.l.b16 %v2520
    %v3110 = vunpack.c.h.b16 %v2520
    %v3111 = vunpack.c.l.b16 %v2521
    %v3112 = vunpack.c.h.b16 %v2521
    %v3113 = vunpack.c.l.b16 %v2522
    %v3114 = vunpack.c.l.b16 %v2523
    %v3115 = vunpack.c.h.b16 %v2523
    %v3116 = vunpack.c.l.b16 %v2524
    %v3117 = vunpack.c.h.b16 %v2524
    %v3118 = vunpack.c.l.b16 %v2525
    %v3119 = vunpack.c.h.b16 %v2525
    %v3120 = vunpack.c.l.b16 %v2526
    %v3121 = vunpack.c.l.b16 %v2527
    %v3122 = vunpack.c.h.b16 %v2527
    %v3123 = vunpack.c.l.b16 %v2528
    %v3124 = vunpack.c.h.b16 %v2528
    %v3125 = vunpack.c.l.b16 %v2529
    %v3126 = vunpack.c.h.b16 %v2529
    %v3127 = vunpack.c.l.b16 %v2530
    %v3128 = vunpack.c.l.b16 %v2531
    %v3129 = vunpack.c.h.b16 %v2531
    %v3130 = vunpack.c.l.b16 %v2532
    %v3131 = vunpack.c.h.b16 %v2532
    %v3132 = vunpack.c.l.b16 %v2533
    %v3133 = vunpack.c.h.b16 %v2533
    %v3134 = vunpack.c.l.b16 %v2534
    %v3135 = vunpack.c.l.b16 %v2535
    %v3136 = vunpack.c.h.b16 %v2535
    %v3137 = vunpack.c.l.b16 %v2536
    %v3138 = vunpack.c.h.b16 %v2536
    %v3139 = vunpack.c.l.b16 %v2537
    %v3140 = vunpack.c.h.b16 %v2537
    %v3141 = vunpack.c.l.b16 %v2538
    %v3142 = vunpack.c.l.b16 %v2539
    %v3143 = vunpack.c.h.b16 %v2539
    %v3144 = vunpack.c.l.b16 %v2540
    %v3145 = vunpack.c.h.b16 %v2540
    %v3146 = vunpack.c.l.b16 %v2541
    %v3147 = vunpack.c.h.b16 %v2541
    %v3148 = vunpack.c.l.b16 %v2542
    %v3149 = vunpack.c.l.b16 %v2543
    %v3150 = vunpack.c.h.b16 %v2543
    %v3151 = vunpack.c.l.b16 %v2544
    %v3152 = vunpack.c.h.b16 %v2544
    %v3153 = vunpack.c.l.b16 %v2545
    %v3154 = vunpack.c.h.b16 %v2545
    %v3155 = vunpack.c.l.b16 %v2546
    %v3156 = vunpack.c.l.b16 %v2547
    %v3157 = vunpack.c.h.b16 %v2547
    %v3158 = vunpack.c.l.b16 %v2548
    %v3159 = vunpack.c.h.b16 %v2548
    %v3160 = vunpack.c.l.b16 %v2549
    %v3161 = vunpack.c.h.b16 %v2549
    %v3162 = vunpack.c.l.b16 %v2550
    %v3163 = vunpack.c.l.b16 %v2551
    %v3164 = vunpack.c.h.b16 %v2551
    %v3165 = vunpack.c.l.b16 %v2552
    %v3166 = vunpack.c.h.b16 %v2552
    %v3167 = vunpack.c.l.b16 %v2553
    %v3168 = vunpack.c.h.b16 %v2553
    %v3169 = vunpack.c.l.b16 %v2554
    %v3170 = vunpack.c.l.b16 %v2555
    %v3171 = vunpack.c.h.b16 %v2555
    %v3172 = vunpack.c.l.b16 %v2556
    %v3173 = vunpack.c.h.b16 %v2556
    %v3174 = vunpack.c.l.b16 %v2557
    %v3175 = vunpack.c.h.b16 %v2557
    %v3176 = vunpack.c.l.b16 %v2558
    %v3177 = vunpack.c.l.b16 %v2559
    %v3178 = vunpack.c.h.b16 %v2559
    %v3179 = vunpack.c.l.b16 %v2560
    %v3180 = vunpack.c.h.b16 %v2560
    %v3181 = vunpack.c.l.b16 %v2561
    %v3182 = vunpack.c.h.b16 %v2561
    %v3183 = vunpack.c.l.b16 %v2562
    %v3184 = vunpack.c.l.b16 %v2563
    %v3185 = vunpack.c.h.b16 %v2563
    %v3186 = vunpack.c.l.b16 %v2564
    %v3187 = vunpack.c.h.b16 %v2564
    %v3188 = vunpack.c.l.b16 %v2565
    %v3189 = vunpack.c.h.b16 %v2565
    %v3190 = vunpack.c.l.b16 %v2566
    %v3191 = vunpack.c.l.b16 %v2567
    %v3192 = vunpack.c.h.b16 %v2567
    %v3193 = vunpack.c.l.b16 %v2568
    %v3194 = vunpack.c.h.b16 %v2568
    %v3195 = vunpack.c.l.b16 %v2569
    %v3196 = vunpack.c.h.b16 %v2569
    %v3197 = vunpack.c.l.b16 %v2570
    %v3198 = vunpack.c.l.b16 %v2571
    %v3199 = vunpack.c.h.b16 %v2571
    %v3200 = vunpack.c.l.b16 %v2572
    %v3201 = vunpack.c.h.b16 %v2572
    %v3202 = vunpack.c.l.b16 %v2573
    %v3203 = vunpack.c.h.b16 %v2573
    %v3204 = vunpack.c.l.b16 %v2574
    %v3205 = vunpack.c.l.b16 %v2575
    %v3206 = vunpack.c.h.b16 %v2575
    %v3207 = vunpack.c.l.b16 %v2576
    %v3208 = vunpack.c.h.b16 %v2576
    %v3209 = vunpack.c.l.b16 %v2577
    %v3210 = vunpack.c.h.b16 %v2577
    %v3211 = vunpack.c.l.b16 %v2578
    %v3212 = vunpack.c.l.b16 %v2579
    %v3213 = vunpack.c.h.b16 %v2579
    %v3214 = vunpack.c.l.b16 %v2580
    %v3215 = vunpack.c.h.b16 %v2580
    %v3216 = vunpack.c.l.b16 %v2581
    %v3217 = vunpack.c.h.b16 %v2581
    %v3218 = vunpack.c.l.b16 %v2582
    %v3219 = vunpack.c.l.b16 %v2583
    %v3220 = vunpack.c.h.b16 %v2583
    %v3221 = vunpack.c.l.b16 %v2584
    %v3222 = vunpack.c.h.b16 %v2584
    %v3223 = vunpack.c.l.b16 %v2585
    %v3224 = vunpack.c.h.b16 %v2585
    %v3225 = vunpack.c.l.b16 %v2586
    %v3226 = vunpack.c.l.b16 %v2587
    %v3227 = vunpack.c.h.b16 %v2587
    %v3228 = vunpack.c.l.b16 %v2588
    %v3229 = vunpack.c.h.b16 %v2588
    %v3230 = vunpack.c.l.b16 %v2589
    %v3231 = vunpack.c.h.b16 %v2589
    %v3232 = vunpack.c.l.b16 %v2590
    %v3233 = vunpack.c.l.b16 %v2591
    %v3234 = vunpack.c.h.b16 %v2591
    %v3235 = vunpack.c.l.b16 %v2592
    %v3236 = vunpack.c.h.b16 %v2592
    %v3237 = vunpack.c.l.b16 %v2593
    %v3238 = vunpack.c.h.b16 %v2593
    %v3239 = vunpack.c.l.b16 %v2594
    %v3240 = vunpack.c.l.b16 %v2595
    %v3241 = vunpack.c.h.b16 %v2595
    %v3242 = vunpack.c.l.b16 %v2596
    %v3243 = vunpack.c.h.b16 %v2596
    %v3244 = vunpack.c.l.b16 %v2597
    %v3245 = vunpack.c.h.b16 %v2597
    %v3246 = vunpack.c.l.b16 %v2598
    %v3247 = vunpack.c.l.b16 %v2599
    %v3248 = vunpack.c.h.b16 %v2599
    %v3249 = vunpack.c.l.b16 %v2600
    %v3250 = vunpack.c.h.b16 %v2600
    %v3251 = vunpack.c.l.b16 %v2601
    %v3252 = vunpack.c.h.b16 %v2601
    %v3253 = vunpack.c.l.b16 %v2602
    %v3254 = vunpack.c.l.b16 %v2603
    %v3255 = vunpack.c.h.b16 %v2603
    %v3256 = vunpack.c.l.b16 %v2604
    %v3257 = vunpack.c.h.b16 %v2604
    %v3258 = vunpack.c.l.b16 %v2605
    %v3259 = vunpack.c.h.b16 %v2605
    %v3260 = vunpack.c.l.b16 %v2606
    %v3261 = vunpack.c.l.b16 %v2607
    %v3262 = vunpack.c.h.b16 %v2607
    %v3263 = vunpack.c.l.b16 %v2608
    %v3264 = vunpack.c.h.b16 %v2608
    %v3265 = vunpack.c.l.b16 %v2609
    %v3266 = vunpack.c.h.b16 %v2609
    %v3267 = vunpack.c.l.b16 %v2610
    %v3268 = vunpack.c.l.b16 %v2611
    %v3269 = vunpack.c.h.b16 %v2611
    %v3270 = vunpack.c.l.b16 %v2612
    %v3271 = vunpack.c.h.b16 %v2612
    %v3272 = vunpack.c.l.b16 %v2613
    %v3273 = vunpack.c.h.b16 %v2613
    %v3274 = vunpack.c.l.b16 %v2614
    %v3275 = vunpack.c.l.b16 %v2615
    %v3276 = vunpack.c.h.b16 %v2615
    %v3277 = vunpack.c.l.b16 %v2616
    %v3278 = vunpack.c.h.b16 %v2616
    %v3279 = vunpack.c.l.b16 %v2617
    %v3280 = vunpack.c.h.b16 %v2617
    %v3281 = vunpack.c.l.b16 %v2618
    %v3282 = vunpack.c.l.b16 %v2619
    %v3283 = vunpack.c.h.b16 %v2619
    %v3284 = vunpack.c.l.b16 %v2620
    %v3285 = vunpack.c.h.b16 %v2620
    %v3286 = vunpack.c.l.b16 %v2621
    %v3287 = vunpack.c.h.b16 %v2621
    %v3288 = vunpack.c.l.b16 %v2622
    %v3289 = vunpack.c.l.b16 %v2623
    %v3290 = vunpack.c.h.b16 %v2623
    %v3291 = vunpack.c.l.b16 %v2624
    %v3292 = vunpack.c.h.b16 %v2624
    %v3293 = vunpack.c.l.b16 %v2625
    %v3294 = vunpack.c.h.b16 %v2625
    %v3295 = vunpack.c.l.b16 %v2626
    %v3296 = vunpack.c.l.b16 %v2627
    %v3297 = vunpack.c.h.b16 %v2627
    %v3298 = vunpack.c.l.b16 %v2628
    %v3299 = vunpack.c.h.b16 %v2628
    %v3300 = vunpack.c.l.b16 %v2629
    %v3301 = vunpack.c.h.b16 %v2629
    %v3302 = vunpack.c.l.b16 %v2630
    %v3303 = vunpack.c.l.b16 %v2631
    %v3304 = vunpack.c.h.b16 %v2631
    %v3305 = vunpack.c.l.b16 %v2632
    %v3306 = vunpack.c.h.b16 %v2632
    %v3307 = vunpack.c.l.b16 %v2633
    %v3308 = vunpack.c.h.b16 %v2633
    %v3309 = vunpack.c.l.b16 %v2634
    %v3310 = vunpack.c.l.b16 %v2635
    %v3311 = vunpack.c.h.b16 %v2635
    %v3312 = vunpack.c.l.b16 %v2636
    %v3313 = vunpack.c.h.b16 %v2636
    %v3314 = vunpack.c.l.b16 %v2637
    %v3315 = vunpack.c.h.b16 %v2637
    %v3316 = vunpack.c.l.b16 %v2638
    %v3317 = vunpack.c.l.b16 %v2639
    %v3318 = vunpack.c.h.b16 %v2639
    %v3319 = vunpack.c.l.b16 %v2640
    %v3320 = vunpack.c.h.b16 %v2640
    %v3321 = vunpack.c.l.b16 %v2641
    %v3322 = vunpack.c.h.b16 %v2641
    %v3323 = vunpack.c.l.b16 %v2642
    %v3324 = vunpack.c.l.b16 %v2643
    %v3325 = vunpack.c.h.b16 %v2643
    %v3326 = vunpack.c.l.b16 %v2644
    %v3327 = vunpack.c.h.b16 %v2644
    %v3328 = vunpack.c.l.b16 %v2645
    %v3329 = vunpack.c.h.b16 %v2645
    %v3330 = vunpack.c.l.b16 %v2646
    %v3331 = vunpack.c.l.b16 %v2647
    %v3332 = vunpack.c.h.b16 %v2647
    %v3333 = vunpack.c.l.b16 %v2648
    %v3334 = vunpack.c.h.b16 %v2648
    %v3335 = vunpack.c.l.b16 %v2649
    %v3336 = vunpack.c.h.b16 %v2649
    %v3337 = vunpack.c.l.b16 %v2650
    %v3338 = vunpack.c.l.b16 %v2651
    %v3339 = vunpack.c.h.b16 %v2651
    %v3340 = vunpack.c.l.b16 %v2652
    %v3341 = vunpack.c.h.b16 %v2652
    %v3342 = vunpack.c.l.b16 %v2653
    %v3343 = vunpack.c.h.b16 %v2653
    %v3344 = vunpack.c.l.b16 %v2654
    %v3345 = vunpack.c.l.b16 %v2655
    %v3346 = vunpack.c.h.b16 %v2655
    %v3347 = vunpack.c.l.b16 %v2656
    %v3348 = vunpack.c.h.b16 %v2656
    %v3349 = vunpack.c.l.b16 %v2657
    %v3350 = vunpack.c.h.b16 %v2657
    %v3351 = vunpack.c.l.b16 %v2658
    %v3352 = vunpack.c.l.b16 %v2659
    %v3353 = vunpack.c.h.b16 %v2659
    %v3354 = vunpack.c.l.b16 %v2660
    %v3355 = vunpack.c.h.b16 %v2660
    %v3356 = vunpack.c.l.b16 %v2661
    %v3357 = vunpack.c.h.b16 %v2661
    %v3358 = vunpack.c.l.b16 %v2662
    %v3359 = vunpack.c.l.b16 %v2663
    %v3360 = vunpack.c.h.b16 %v2663
    %v3361 = vunpack.c.l.b16 %v2664
    %v3362 = vunpack.c.h.b16 %v2664
    %v3363 = vunpack.c.l.b16 %v2665
    %v3364 = vunpack.c.h.b16 %v2665
    %v3365 = vunpack.c.l.b16 %v2666
    %v3366 = vunpack.c.l.b16 %v2667
    %v3367 = vunpack.c.h.b16 %v2667
    %v3368 = vunpack.c.l.b16 %v2668
    %v3369 = vunpack.c.h.b16 %v2668
    %v3370 = vunpack.c.l.b16 %v2669
    %v3371 = vunpack.c.h.b16 %v2669
    %v3372 = vunpack.c.l.b16 %v2670
    %v3373 = vunpack.c.l.b16 %v2671
    %v3374 = vunpack.c.h.b16 %v2671
    %v3375 = vunpack.c.l.b16 %v2672
    %v3376 = vunpack.c.h.b16 %v2672
    %v3377 = vunpack.c.l.b16 %v2673
    %v3378 = vunpack.c.h.b16 %v2673
    %v3379 = vunpack.c.l.b16 %v2674
    %v3380 = vunpack.c.l.b16 %v2675
    %v3381 = vunpack.c.h.b16 %v2675
    %v3382 = vunpack.c.l.b16 %v2676
    %v3383 = vunpack.c.h.b16 %v2676
    %v3384 = vunpack.c.l.b16 %v2677
    %v3385 = vunpack.c.h.b16 %v2677
    %v3386 = vunpack.c.l.b16 %v2678
    %v3387 = vunpack.c.l.b16 %v2679
    %v3388 = vunpack.c.h.b16 %v2679
    %v3389 = vunpack.c.l.b16 %v2680
    %v3390 = vunpack.c.h.b16 %v2680
    %v3391 = vunpack.c.l.b16 %v2681
    %v3392 = vunpack.c.h.b16 %v2681
    %v3393 = vunpack.c.l.b16 %v2682
    %v3394 = vunpack.c.l.b16 %v2683
    %v3395 = vunpack.c.h.b16 %v2683
    %v3396 = vunpack.c.l.b16 %v2684
    %v3397 = vunpack.c.h.b16 %v2684
    %v3398 = vunpack.c.l.b16 %v2685
    %v3399 = vunpack.c.h.b16 %v2685
    %v3400 = vunpack.c.l.b16 %v2686
    %v3401 = vunpack.c.l.b16 %v2687
    %v3402 = vunpack.c.h.b16 %v2687
    %v3403 = vunpack.c.l.b16 %v2688
    %v3404 = vunpack.c.h.b16 %v2688
    %v3405 = vunpack.c.l.b16 %v2689
    %v3406 = vunpack.c.h.b16 %v2689
    %v3407 = vunpack.c.l.b16 %v2690
    %v3408 = vunpack.c.l.b16 %v2691
    %v3409 = vunpack.c.h.b16 %v2691
    %v3410 = vunpack.c.l.b16 %v2692
    %v3411 = vunpack.c.h.b16 %v2692
    %v3412 = vunpack.c.l.b16 %v2693
    %v3413 = vunpack.c.h.b16 %v2693
    %v3414 = vunpack.c.l.b16 %v2694
    %v3415 = vpack.c.b16 %v2974, %v2967
    %v3416 = vpack.c.b16 %v2975, %v2968
    %v3417 = vpack.c.b16 %v2976, %v2969
    %v3418 = vpack.c.b16 %v2977, %v2970
    %v3419 = vpack.c.b16 %v2978, %v2971
    %v3420 = vpack.c.b16 %v2979, %v2972
    %v3421 = vpack.c.b16 %v2980, %v2973
    %v3422 = vpack.c.b16 %v2988, %v2981
    %v3423 = vpack.c.b16 %v2989, %v2982
    %v3424 = vpack.c.b16 %v2990, %v2983
    %v3425 = vpack.c.b16 %v2991, %v2984
    %v3426 = vpack.c.b16 %v2992, %v2985
    %v3427 = vpack.c.b16 %v2993, %v2986
    %v3428 = vpack.c.b16 %v2994, %v2987
    %v3429 = vpack.c.b16 %v3002, %v2995
    %v3430 = vpack.c.b16 %v3003, %v2996
    %v3431 = vpack.c.b16 %v3004, %v2997
    %v3432 = vpack.c.b16 %v3005, %v2998
    %v3433 = vpack.c.b16 %v3006, %v2999
    %v3434 = vpack.c.b16 %v3007, %v3000
    %v3435 = vpack.c.b16 %v3008, %v3001
    %v3436 = vpack.c.b16 %v3016, %v3009
    %v3437 = vpack.c.b16 %v3017, %v3010
    %v3438 = vpack.c.b16 %v3018, %v3011
    %v3439 = vpack.c.b16 %v3019, %v3012
    %v3440 = vpack.c.b16 %v3020, %v3013
    %v3441 = vpack.c.b16 %v3021, %v3014
    %v3442 = vpack.c.b16 %v3022, %v3015
    %v3443 = vpack.c.b16 %v3030, %v3023
    %v3444 = vpack.c.b16 %v3031, %v3024
    %v3445 = vpack.c.b16 %v3032, %v3025
    %v3446 = vpack.c.b16 %v3033, %v3026
    %v3447 = vpack.c.b16 %v3034, %v3027
    %v3448 = vpack.c.b16 %v3035, %v3028
    %v3449 = vpack.c.b16 %v3036, %v3029
    %v3450 = vpack.c.b16 %v3044, %v3037
    %v3451 = vpack.c.b16 %v3045, %v3038
    %v3452 = vpack.c.b16 %v3046, %v3039
    %v3453 = vpack.c.b16 %v3047, %v3040
    %v3454 = vpack.c.b16 %v3048, %v3041
    %v3455 = vpack.c.b16 %v3049, %v3042
    %v3456 = vpack.c.b16 %v3050, %v3043
    %v3457 = vpack.c.b16 %v3058, %v3051
    %v3458 = vpack.c.b16 %v3059, %v3052
    %v3459 = vpack.c.b16 %v3060, %v3053
    %v3460 = vpack.c.b16 %v3061, %v3054
    %v3461 = vpack.c.b16 %v3062, %v3055
    %v3462 = vpack.c.b16 %v3063, %v3056
    %v3463 = vpack.c.b16 %v3064, %v3057
    %v3464 = vpack.c.b16 %v3072, %v3065
    %v3465 = vpack.c.b16 %v3073, %v3066
    %v3466 = vpack.c.b16 %v3074, %v3067
    %v3467 = vpack.c.b16 %v3075, %v3068
    %v3468 = vpack.c.b16 %v3076, %v3069
    %v3469 = vpack.c.b16 %v3077, %v3070
    %v3470 = vpack.c.b16 %v3078, %v3071
    %v3471 = vpack.c.b16 %v3086, %v3079
    %v3472 = vpack.c.b16 %v3087, %v3080
    %v3473 = vpack.c.b16 %v3088, %v3081
    %v3474 = vpack.c.b16 %v3089, %v3082
    %v3475 = vpack.c.b16 %v3090, %v3083
    %v3476 = vpack.c.b16 %v3091, %v3084
    %v3477 = vpack.c.b16 %v3092, %v3085
    %v3478 = vpack.c.b16 %v3100, %v3093
    %v3479 = vpack.c.b16 %v3101, %v3094
    %v3480 = vpack.c.b16 %v3102, %v3095
    %v3481 = vpack.c.b16 %v3103, %v3096
    %v3482 = vpack.c.b16 %v3104, %v3097
    %v3483 = vpack.c.b16 %v3105, %v3098
    %v3484 = vpack.c.b16 %v3106, %v3099
    %v3485 = vpack.c.b16 %v3114, %v3107
    %v3486 = vpack.c.b16 %v3115, %v3108
    %v3487 = vpack.c.b16 %v3116, %v3109
    %v3488 = vpack.c.b16 %v3117, %v3110
    %v3489 = vpack.c.b16 %v3118, %v3111
    %v3490 = vpack.c.b16 %v3119, %v3112
    %v3491 = vpack.c.b16 %v3120, %v3113
    %v3492 = vpack.c.b16 %v3128, %v3121
    %v3493 = vpack.c.b16 %v3129, %v3122
    %v3494 = vpack.c.b16 %v3130, %v3123
    %v3495 = vpack.c.b16 %v3131, %v3124
    %v3496 = vpack.c.b16 %v3132, %v3125
    %v3497 = vpack.c.b16 %v3133, %v3126
    %v3498 = vpack.c.b16 %v3134, %v3127
    %v3499 = vpack.c.b16 %v3142, %v3135
    %v3500 = vpack.c.b16 %v3143, %v3136
    %v3501 = vpack.c.b16 %v3144, %v3137
    %v3502 = vpack.c.b16 %v3145, %v3138
    %v3503 = vpack.c.b16 %v3146, %v3139
    %v3504 = vpack.c.b16 %v3147, %v3140
    %v3505 = vpack.c.b16 %v3148, %v3141
    %v3506 = vpack.c.b16 %v3156, %v3149
    %v3507 = vpack.c.b16 %v3157, %v3150
    %v3508 = vpack.c.b16 %v3158, %v3151
    %v3509 = vpack.c.b16 %v3159, %v3152
    %v3510 = vpack.c.b16 %v3160, %v3153
    %v3511 = vpack.c.b16 %v3161, %v3154
    %v3512 = vpack.c.b16 %v3162, %v3155
    %v3513 = vpack.c.b16 %v3170, %v3163
    %v3514 = vpack.c.b16 %v3171, %v3164
    %v3515 = vpack.c.b16 %v3172, %v3165
    %v3516 = vpack.c.b16 %v3173, %v3166
    %v3517 = vpack.c.b16 %v3174, %v3167
    %v3518 = vpack.c.b16 %v3175, %v3168
    %v3519 = vpack.c.b16 %v3176, %v3169
    %v3520 = vpack.c.b16 %v3184, %v3177
    %v3521 = vpack.c.b16 %v3185, %v3178
    %v3522 = vpack.c.b16 %v3186, %v3179
    %v3523 = vpack.c.b16 %v3187, %v3180
    %v3524 = vpack.c.b16 %v3188, %v3181
    %v3525 = vpack.c.b16 %v3189, %v3182
    %v3526 = vpack.c.b16 %v3190, %v3183
    %v3527 = vpack.c.b16 %v3198, %v3191
    %v3528 = vpack.c.b16 %v3199, %v3192
    %v3529 = vpack.c.b16 %v3200, %v3193
    %v3530 = vpack.c.b16 %v3201, %v3194
    %v3531 = vpack.c.b16 %v3202, %v3195
    %v3532 = vpack.c.b16 %v3203, %v3196
    %v3533 = vpack.c.b16 %v3204, %v3197
    %v3534 = vpack.c.b16 %v3212, %v3205
    %v3535 = vpack.c.b16 %v3213, %v3206
    %v3536 = vpack.c.b16 %v3214, %v3207
    %v3537 = vpack.c.b16 %v3215, %v3208
    %v3538 = vpack.c.b16 %v3216, %v3209
    %v3539 = vpack.c.b16 %v3217, %v3210
    %v3540 = vpack.c.b16 %v3218, %v3211
    %v3541 = vpack.c.b16 %v3226, %v3219
    %v3542 = vpack.c.b16 %v3227, %v3220
    %v3543 = vpack.c.b16 %v3228, %v3221
    %v3544 = vpack.c.b16 %v3229, %v3222
    %v3545 = vpack.c.b16 %v3230, %v3223
    %v3546 = vpack.c.b16 %v3231, %v3224
    %v3547 = vpack.c.b16 %v3232, %v3225
    %v3548 = vpack.c.b16 %v3240, %v3233
    %v3549 = vpack.c.b16 %v3241, %v3234
    %v3550 = vpack.c.b16 %v3242, %v3235
    %v3551 = vpack.c.b16 %v3243, %v3236
    %v3552 = vpack.c.b16 %v3244, %v3237
    %v3553 = vpack.c.b16 %v3245, %v3238
    %v3554 = vpack.c.b16 %v3246, %v3239
    %v3555 = vpack.c.b16 %v3254, %v3247
    %v3556 = vpack.c.b16 %v3255, %v3248
    %v3557 = vpack.c.b16 %v3256, %v3249
    %v3558 = vpack.c.b16 %v3257, %v3250
    %v3559 = vpack.c.b16 %v3258, %v3251
    %v3560 = vpack.c.b16 %v3259, %v3252
    %v3561 = vpack.c.b16 %v3260, %v3253
    %v3562 = vpack.c.b16 %v3268, %v3261
    %v3563 = vpack.c.b16 %v3269, %v3262
    %v3564 = vpack.c.b16 %v3270, %v3263
    %v3565 = vpack.c.b16 %v3271, %v3264
    %v3566 = vpack.c.b16 %v3272, %v3265
    %v3567 = vpack.c.b16 %v3273, %v3266
    %v3568 = vpack.c.b16 %v3274, %v3267
    %v3569 = vpack.c.b16 %v3282, %v3275
    %v3570 = vpack.c.b16 %v3283, %v3276
    %v3571 = vpack.c.b16 %v3284, %v3277
    %v3572 = vpack.c.b16 %v3285, %v3278
    %v3573 = vpack.c.b16 %v3286, %v3279
    %v3574 = vpack.c.b16 %v3287, %v3280
    %v3575 = vpack.c.b16 %v3288, %v3281
    %v3576 = vpack.c.b16 %v3296, %v3289
    %v3577 = vpack.c.b16 %v3297, %v3290
    %v3578 = vpack.c.b16 %v3298, %v3291
    %v3579 = vpack.c.b16 %v3299, %v3292
    %v3580 = vpack.c.b16 %v3300, %v3293
    %v3581 = vpack.c.b16 %v3301, %v3294
    %v3582 = vpack.c.b16 %v3302, %v3295
    %v3583 = vpack.c.b16 %v3310, %v3303
    %v3584 = vpack.c.b16 %v3311, %v3304
    %v3585 = vpack.c.b16 %v3312, %v3305
    %v3586 = vpack.c.b16 %v3313, %v3306
    %v3587 = vpack.c.b16 %v3314, %v3307
    %v3588 = vpack.c.b16 %v3315, %v3308
    %v3589 = vpack.c.b16 %v3316, %v3309
    %v3590 = vpack.c.b16 %v3324, %v3317
    %v3591 = vpack.c.b16 %v3325, %v3318
    %v3592 = vpack.c.b16 %v3326, %v3319
    %v3593 = vpack.c.b16 %v3327, %v3320
    %v3594 = vpack.c.b16 %v3328, %v3321
    %v3595 = vpack.c.b16 %v3329, %v3322
    %v3596 = vpack.c.b16 %v3330, %v3323
    %v3597 = vpack.c.b16 %v3338, %v3331
    %v3598 = vpack.c.b16 %v3339, %v3332
    %v3599 = vpack.c.b16 %v3340, %v3333
    %v3600 = vpack.c.b16 %v3341, %v3334
    %v3601 = vpack.c.b16 %v3342, %v3335
    %v3602 = vpack.c.b16 %v3343, %v3336
    %v3603 = vpack.c.b16 %v3344, %v3337
    %v3604 = vpack.c.b16 %v3352, %v3345
    %v3605 = vpack.c.b16 %v3353, %v3346
    %v3606 = vpack.c.b16 %v3354, %v3347
    %v3607 = vpack.c.b16 %v3355, %v3348
    %v3608 = vpack.c.b16 %v3356, %v3349
    %v3609 = vpack.c.b16 %v3357, %v3350
    %v3610 = vpack.c.b16 %v3358, %v3351
    %v3611 = vpack.c.b16 %v3366, %v3359
    %v3612 = vpack.c.b16 %v3367, %v3360
    %v3613 = vpack.c.b16 %v3368, %v3361
    %v3614 = vpack.c.b16 %v3369, %v3362
    %v3615 = vpack.c.b16 %v3370, %v3363
    %v3616 = vpack.c.b16 %v3371, %v3364
    %v3617 = vpack.c.b16 %v3372, %v3365
    %v3618 = vpack.c.b16 %v3380, %v3373
    %v3619 = vpack.c.b16 %v3381, %v3374
    %v3620 = vpack.c.b16 %v3382, %v3375
    %v3621 = vpack.c.b16 %v3383, %v3376
    %v3622 = vpack.c.b16 %v3384, %v3377
    %v3623 = vpack.c.b16 %v3385, %v3378
    %v3624 = vpack.c.b16 %v3386, %v3379
    %v3625 = vpack.c.b16 %v3394, %v3387
    %v3626 = vpack.c.b16 %v3395, %v3388
    %v3627 = vpack.c.b16 %v3396, %v3389
    %v3628 = vpack.c.b16 %v3397, %v3390
    %v3629 = vpack.c.b16 %v3398, %v3391
    %v3630 = vpack.c.b16 %v3399, %v3392
    %v3631 = vpack.c.b16 %v3400, %v3393
    %v3632 = vpack.c.b16 %v3408, %v3401
    %v3633 = vpack.c.b16 %v3409, %v3402
    %v3634 = vpack.c.b16 %v3410, %v3403
    %v3635 = vpack.c.b16 %v3411, %v3404
    %v3636 = vpack.c.b16 %v3412, %v3405
    %v3637 = vpack.c.b16 %v3413, %v3406
    %v3638 = vpack.c.b16 %v3414, %v3407
    %3863 = vmatpush.bf16.msra.mxu0 %v3464
    %3864 = vmatpush.bf16.msra.mxu0 %v3457
    %3865 = vmatpush.bf16.msra.mxu0 %v3450
    %3866 = vmatpush.bf16.msra.mxu0 %v3443
    %3867 = vmatpush.bf16.msra.mxu0 %v3436
    %3868 = vmatpush.bf16.msra.mxu0 %v3429
    %3869 = vmatpush.bf16.msra.mxu0 %v3422
    %3870 = vmatpush.bf16.msra.mxu0 %v3415
    %3871 = vmatmul.bf16.gmra.mxu0 %v2435
    %v3872 = vpop.f32.mrf.mxu0
    %v3873 = vadd.f32 %v2697, %v3872
    %v3874 = vpop.f32.mrf.mxu0
    %3875 = vdwg.mxu0
    %3876 = vmatpush.bf16.msra.mxu0 %v3520
    %3877 = vmatpush.bf16.msra.mxu0 %v3513
    %3878 = vmatpush.bf16.msra.mxu0 %v3506
    %3879 = vmatpush.bf16.msra.mxu0 %v3499
    %3880 = vmatpush.bf16.msra.mxu0 %v3492
    %3881 = vmatpush.bf16.msra.mxu0 %v3485
    %3882 = vmatpush.bf16.msra.mxu0 %v3478
    %3883 = vmatpush.bf16.msra.mxu0 %v3471
    %3884 = vmatmul.bf16.gmra.mxu0 %v2436
    %v3885 = vpop.f32.mrf.mxu0
    %v3886 = vadd.f32 %v3873, %v3885
    %v3887 = vpop.f32.mrf.mxu0
    %3888 = vdwg.mxu0
    %3889 = vmatpush.bf16.msra.mxu0 %v3576
    %3890 = vmatpush.bf16.msra.mxu0 %v3569
    %3891 = vmatpush.bf16.msra.mxu0 %v3562
    %3892 = vmatpush.bf16.msra.mxu0 %v3555
    %3893 = vmatpush.bf16.msra.mxu0 %v3548
    %3894 = vmatpush.bf16.msra.mxu0 %v3541
    %3895 = vmatpush.bf16.msra.mxu0 %v3534
    %3896 = vmatpush.bf16.msra.mxu0 %v3527
    %3897 = vmatmul.bf16.gmra.mxu0 %v2437
    %v3898 = vpop.f32.mrf.mxu0
    %v3899 = vadd.f32 %v3886, %v3898
    %v3900 = vpop.f32.mrf.mxu0
    %3901 = vdwg.mxu0
    %3902 = vmatpush.bf16.msra.mxu0 %v3632
    %3903 = vmatpush.bf16.msra.mxu0 %v3625
    %3904 = vmatpush.bf16.msra.mxu0 %v3618
    %3905 = vmatpush.bf16.msra.mxu0 %v3611
    %3906 = vmatpush.bf16.msra.mxu0 %v3604
    %3907 = vmatpush.bf16.msra.mxu0 %v3597
    %3908 = vmatpush.bf16.msra.mxu0 %v3590
    %3909 = vmatpush.bf16.msra.mxu0 %v3583
    %3910 = vmatmul.bf16.gmra.mxu0 %v2438
    %v3911 = vpop.f32.mrf.mxu0
    %v3912 = vadd.f32 %v3899, %v3911
    %v3913 = vpop.f32.mrf.mxu0
    %3914 = vdwg.mxu0
    %3915 = vmatpush.bf16.msra.mxu0 %v3465
    %3916 = vmatpush.bf16.msra.mxu0 %v3458
    %3917 = vmatpush.bf16.msra.mxu0 %v3451
    %3918 = vmatpush.bf16.msra.mxu0 %v3444
    %3919 = vmatpush.bf16.msra.mxu0 %v3437
    %3920 = vmatpush.bf16.msra.mxu0 %v3430
    %3921 = vmatpush.bf16.msra.mxu0 %v3423
    %3922 = vmatpush.bf16.msra.mxu0 %v3416
    %3923 = vmatmul.bf16.gmra.mxu0 %v2435
    %v3924 = vpop.f32.mrf.mxu0
    %v3925 = vadd.f32 %v2698, %v3924
    %v3926 = vpop.f32.mrf.mxu0
    %3927 = vdwg.mxu0
    %3928 = vmatpush.bf16.msra.mxu0 %v3521
    %3929 = vmatpush.bf16.msra.mxu0 %v3514
    %3930 = vmatpush.bf16.msra.mxu0 %v3507
    %3931 = vmatpush.bf16.msra.mxu0 %v3500
    %3932 = vmatpush.bf16.msra.mxu0 %v3493
    %3933 = vmatpush.bf16.msra.mxu0 %v3486
    %3934 = vmatpush.bf16.msra.mxu0 %v3479
    %3935 = vmatpush.bf16.msra.mxu0 %v3472
    %3936 = vmatmul.bf16.gmra.mxu0 %v2436
    %v3937 = vpop.f32.mrf.mxu0
    %v3938 = vadd.f32 %v3925, %v3937
    %v3939 = vpop.f32.mrf.mxu0
    %3940 = vdwg.mxu0
    %3941 = vmatpush.bf16.msra.mxu0 %v3577
    %3942 = vmatpush.bf16.msra.mxu0 %v3570
    %3943 = vmatpush.bf16.msra.mxu0 %v3563
    %3944 = vmatpush.bf16.msra.mxu0 %v3556
    %3945 = vmatpush.bf16.msra.mxu0 %v3549
    %3946 = vmatpush.bf16.msra.mxu0 %v3542
    %3947 = vmatpush.bf16.msra.mxu0 %v3535
    %3948 = vmatpush.bf16.msra.mxu0 %v3528
    %3949 = vmatmul.bf16.gmra.mxu0 %v2437
    %v3950 = vpop.f32.mrf.mxu0
    %v3951 = vadd.f32 %v3938, %v3950
    %v3952 = vpop.f32.mrf.mxu0
    %3953 = vdwg.mxu0
    %3954 = vmatpush.bf16.msra.mxu0 %v3633
    %3955 = vmatpush.bf16.msra.mxu0 %v3626
    %3956 = vmatpush.bf16.msra.mxu0 %v3619
    %3957 = vmatpush.bf16.msra.mxu0 %v3612
    %3958 = vmatpush.bf16.msra.mxu0 %v3605
    %3959 = vmatpush.bf16.msra.mxu0 %v3598
    %3960 = vmatpush.bf16.msra.mxu0 %v3591
    %3961 = vmatpush.bf16.msra.mxu0 %v3584
    %3962 = vmatmul.bf16.gmra.mxu0 %v2438
    %v3963 = vpop.f32.mrf.mxu0
    %v3964 = vadd.f32 %v3951, %v3963
    %v3965 = vpop.f32.mrf.mxu0
    %3966 = vdwg.mxu0
    %3967 = vmatpush.bf16.msra.mxu0 %v3466
    %3968 = vmatpush.bf16.msra.mxu0 %v3459
    %3969 = vmatpush.bf16.msra.mxu0 %v3452
    %3970 = vmatpush.bf16.msra.mxu0 %v3445
    %3971 = vmatpush.bf16.msra.mxu0 %v3438
    %3972 = vmatpush.bf16.msra.mxu0 %v3431
    %3973 = vmatpush.bf16.msra.mxu0 %v3424
    %3974 = vmatpush.bf16.msra.mxu0 %v3417
    %3975 = vmatmul.bf16.gmra.mxu0 %v2435
    %v3976 = vpop.f32.mrf.mxu0
    %v3977 = vadd.f32 %v2699, %v3976
    %v3978 = vpop.f32.mrf.mxu0
    %3979 = vdwg.mxu0
    %3980 = vmatpush.bf16.msra.mxu0 %v3522
    %3981 = vmatpush.bf16.msra.mxu0 %v3515
    %3982 = vmatpush.bf16.msra.mxu0 %v3508
    %3983 = vmatpush.bf16.msra.mxu0 %v3501
    %3984 = vmatpush.bf16.msra.mxu0 %v3494
    %3985 = vmatpush.bf16.msra.mxu0 %v3487
    %3986 = vmatpush.bf16.msra.mxu0 %v3480
    %3987 = vmatpush.bf16.msra.mxu0 %v3473
    %3988 = vmatmul.bf16.gmra.mxu0 %v2436
    %v3989 = vpop.f32.mrf.mxu0
    %v3990 = vadd.f32 %v3977, %v3989
    %v3991 = vpop.f32.mrf.mxu0
    %3992 = vdwg.mxu0
    %3993 = vmatpush.bf16.msra.mxu0 %v3578
    %3994 = vmatpush.bf16.msra.mxu0 %v3571
    %3995 = vmatpush.bf16.msra.mxu0 %v3564
    %3996 = vmatpush.bf16.msra.mxu0 %v3557
    %3997 = vmatpush.bf16.msra.mxu0 %v3550
    %3998 = vmatpush.bf16.msra.mxu0 %v3543
    %3999 = vmatpush.bf16.msra.mxu0 %v3536
    %4000 = vmatpush.bf16.msra.mxu0 %v3529
    %4001 = vmatmul.bf16.gmra.mxu0 %v2437
    %v4002 = vpop.f32.mrf.mxu0
    %v4003 = vadd.f32 %v3990, %v4002
    %v4004 = vpop.f32.mrf.mxu0
    %4005 = vdwg.mxu0
    %4006 = vmatpush.bf16.msra.mxu0 %v3634
    %4007 = vmatpush.bf16.msra.mxu0 %v3627
    %4008 = vmatpush.bf16.msra.mxu0 %v3620
    %4009 = vmatpush.bf16.msra.mxu0 %v3613
    %4010 = vmatpush.bf16.msra.mxu0 %v3606
    %4011 = vmatpush.bf16.msra.mxu0 %v3599
    %4012 = vmatpush.bf16.msra.mxu0 %v3592
    %4013 = vmatpush.bf16.msra.mxu0 %v3585
    %4014 = vmatmul.bf16.gmra.mxu0 %v2438
    %v4015 = vpop.f32.mrf.mxu0
    %v4016 = vadd.f32 %v4003, %v4015
    %v4017 = vpop.f32.mrf.mxu0
    %4018 = vdwg.mxu0
    %4019 = vmatpush.bf16.msra.mxu0 %v3467
    %4020 = vmatpush.bf16.msra.mxu0 %v3460
    %4021 = vmatpush.bf16.msra.mxu0 %v3453
    %4022 = vmatpush.bf16.msra.mxu0 %v3446
    %4023 = vmatpush.bf16.msra.mxu0 %v3439
    %4024 = vmatpush.bf16.msra.mxu0 %v3432
    %4025 = vmatpush.bf16.msra.mxu0 %v3425
    %4026 = vmatpush.bf16.msra.mxu0 %v3418
    %4027 = vmatmul.bf16.gmra.mxu0 %v2435
    %v4028 = vpop.f32.mrf.mxu0
    %v4029 = vadd.f32 %v2700, %v4028
    %v4030 = vpop.f32.mrf.mxu0
    %4031 = vdwg.mxu0
    %4032 = vmatpush.bf16.msra.mxu0 %v3523
    %4033 = vmatpush.bf16.msra.mxu0 %v3516
    %4034 = vmatpush.bf16.msra.mxu0 %v3509
    %4035 = vmatpush.bf16.msra.mxu0 %v3502
    %4036 = vmatpush.bf16.msra.mxu0 %v3495
    %4037 = vmatpush.bf16.msra.mxu0 %v3488
    %4038 = vmatpush.bf16.msra.mxu0 %v3481
    %4039 = vmatpush.bf16.msra.mxu0 %v3474
    %4040 = vmatmul.bf16.gmra.mxu0 %v2436
    %v4041 = vpop.f32.mrf.mxu0
    %v4042 = vadd.f32 %v4029, %v4041
    %v4043 = vpop.f32.mrf.mxu0
    %4044 = vdwg.mxu0
    %4045 = vmatpush.bf16.msra.mxu0 %v3579
    %4046 = vmatpush.bf16.msra.mxu0 %v3572
    %4047 = vmatpush.bf16.msra.mxu0 %v3565
    %4048 = vmatpush.bf16.msra.mxu0 %v3558
    %4049 = vmatpush.bf16.msra.mxu0 %v3551
    %4050 = vmatpush.bf16.msra.mxu0 %v3544
    %4051 = vmatpush.bf16.msra.mxu0 %v3537
    %4052 = vmatpush.bf16.msra.mxu0 %v3530
    %4053 = vmatmul.bf16.gmra.mxu0 %v2437
    %v4054 = vpop.f32.mrf.mxu0
    %v4055 = vadd.f32 %v4042, %v4054
    %v4056 = vpop.f32.mrf.mxu0
    %4057 = vdwg.mxu0
    %4058 = vmatpush.bf16.msra.mxu0 %v3635
    %4059 = vmatpush.bf16.msra.mxu0 %v3628
    %4060 = vmatpush.bf16.msra.mxu0 %v3621
    %4061 = vmatpush.bf16.msra.mxu0 %v3614
    %4062 = vmatpush.bf16.msra.mxu0 %v3607
    %4063 = vmatpush.bf16.msra.mxu0 %v3600
    %4064 = vmatpush.bf16.msra.mxu0 %v3593
    %4065 = vmatpush.bf16.msra.mxu0 %v3586
    %4066 = vmatmul.bf16.gmra.mxu0 %v2438
    %v4067 = vpop.f32.mrf.mxu0
    %v4068 = vadd.f32 %v4055, %v4067
    %v4069 = vpop.f32.mrf.mxu0
    %4070 = vdwg.mxu0
    %4071 = vmatpush.bf16.msra.mxu0 %v3468
    %4072 = vmatpush.bf16.msra.mxu0 %v3461
    %4073 = vmatpush.bf16.msra.mxu0 %v3454
    %4074 = vmatpush.bf16.msra.mxu0 %v3447
    %4075 = vmatpush.bf16.msra.mxu0 %v3440
    %4076 = vmatpush.bf16.msra.mxu0 %v3433
    %4077 = vmatpush.bf16.msra.mxu0 %v3426
    %4078 = vmatpush.bf16.msra.mxu0 %v3419
    %4079 = vmatmul.bf16.gmra.mxu0 %v2435
    %v4080 = vpop.f32.mrf.mxu0
    %v4081 = vadd.f32 %v2701, %v4080
    %v4082 = vpop.f32.mrf.mxu0
    %4083 = vdwg.mxu0
    %4084 = vmatpush.bf16.msra.mxu0 %v3524
    %4085 = vmatpush.bf16.msra.mxu0 %v3517
    %4086 = vmatpush.bf16.msra.mxu0 %v3510
    %4087 = vmatpush.bf16.msra.mxu0 %v3503
    %4088 = vmatpush.bf16.msra.mxu0 %v3496
    %4089 = vmatpush.bf16.msra.mxu0 %v3489
    %4090 = vmatpush.bf16.msra.mxu0 %v3482
    %4091 = vmatpush.bf16.msra.mxu0 %v3475
    %4092 = vmatmul.bf16.gmra.mxu0 %v2436
    %v4093 = vpop.f32.mrf.mxu0
    %v4094 = vadd.f32 %v4081, %v4093
    %v4095 = vpop.f32.mrf.mxu0
    %4096 = vdwg.mxu0
    %4097 = vmatpush.bf16.msra.mxu0 %v3580
    %4098 = vmatpush.bf16.msra.mxu0 %v3573
    %4099 = vmatpush.bf16.msra.mxu0 %v3566
    %4100 = vmatpush.bf16.msra.mxu0 %v3559
    %4101 = vmatpush.bf16.msra.mxu0 %v3552
    %4102 = vmatpush.bf16.msra.mxu0 %v3545
    %4103 = vmatpush.bf16.msra.mxu0 %v3538
    %4104 = vmatpush.bf16.msra.mxu0 %v3531
    %4105 = vmatmul.bf16.gmra.mxu0 %v2437
    %v4106 = vpop.f32.mrf.mxu0
    %v4107 = vadd.f32 %v4094, %v4106
    %v4108 = vpop.f32.mrf.mxu0
    %4109 = vdwg.mxu0
    %4110 = vmatpush.bf16.msra.mxu0 %v3636
    %4111 = vmatpush.bf16.msra.mxu0 %v3629
    %4112 = vmatpush.bf16.msra.mxu0 %v3622
    %4113 = vmatpush.bf16.msra.mxu0 %v3615
    %4114 = vmatpush.bf16.msra.mxu0 %v3608
    %4115 = vmatpush.bf16.msra.mxu0 %v3601
    %4116 = vmatpush.bf16.msra.mxu0 %v3594
    %4117 = vmatpush.bf16.msra.mxu0 %v3587
    %4118 = vmatmul.bf16.gmra.mxu0 %v2438
    %v4119 = vpop.f32.mrf.mxu0
    %v4120 = vadd.f32 %v4107, %v4119
    %v4121 = vpop.f32.mrf.mxu0
    %4122 = vdwg.mxu0
    %4123 = vmatpush.bf16.msra.mxu0 %v3469
    %4124 = vmatpush.bf16.msra.mxu0 %v3462
    %4125 = vmatpush.bf16.msra.mxu0 %v3455
    %4126 = vmatpush.bf16.msra.mxu0 %v3448
    %4127 = vmatpush.bf16.msra.mxu0 %v3441
    %4128 = vmatpush.bf16.msra.mxu0 %v3434
    %4129 = vmatpush.bf16.msra.mxu0 %v3427
    %4130 = vmatpush.bf16.msra.mxu0 %v3420
    %4131 = vmatmul.bf16.gmra.mxu0 %v2435
    %v4132 = vpop.f32.mrf.mxu0
    %v4133 = vadd.f32 %v2702, %v4132
    %v4134 = vpop.f32.mrf.mxu0
    %4135 = vdwg.mxu0
    %4136 = vmatpush.bf16.msra.mxu0 %v3525
    %4137 = vmatpush.bf16.msra.mxu0 %v3518
    %4138 = vmatpush.bf16.msra.mxu0 %v3511
    %4139 = vmatpush.bf16.msra.mxu0 %v3504
    %4140 = vmatpush.bf16.msra.mxu0 %v3497
    %4141 = vmatpush.bf16.msra.mxu0 %v3490
    %4142 = vmatpush.bf16.msra.mxu0 %v3483
    %4143 = vmatpush.bf16.msra.mxu0 %v3476
    %4144 = vmatmul.bf16.gmra.mxu0 %v2436
    %v4145 = vpop.f32.mrf.mxu0
    %v4146 = vadd.f32 %v4133, %v4145
    %v4147 = vpop.f32.mrf.mxu0
    %4148 = vdwg.mxu0
    %4149 = vmatpush.bf16.msra.mxu0 %v3581
    %4150 = vmatpush.bf16.msra.mxu0 %v3574
    %4151 = vmatpush.bf16.msra.mxu0 %v3567
    %4152 = vmatpush.bf16.msra.mxu0 %v3560
    %4153 = vmatpush.bf16.msra.mxu0 %v3553
    %4154 = vmatpush.bf16.msra.mxu0 %v3546
    %4155 = vmatpush.bf16.msra.mxu0 %v3539
    %4156 = vmatpush.bf16.msra.mxu0 %v3532
    %4157 = vmatmul.bf16.gmra.mxu0 %v2437
    %v4158 = vpop.f32.mrf.mxu0
    %v4159 = vadd.f32 %v4146, %v4158
    %v4160 = vpop.f32.mrf.mxu0
    %4161 = vdwg.mxu0
    %4162 = vmatpush.bf16.msra.mxu0 %v3637
    %4163 = vmatpush.bf16.msra.mxu0 %v3630
    %4164 = vmatpush.bf16.msra.mxu0 %v3623
    %4165 = vmatpush.bf16.msra.mxu0 %v3616
    %4166 = vmatpush.bf16.msra.mxu0 %v3609
    %4167 = vmatpush.bf16.msra.mxu0 %v3602
    %4168 = vmatpush.bf16.msra.mxu0 %v3595
    %4169 = vmatpush.bf16.msra.mxu0 %v3588
    %4170 = vmatmul.bf16.gmra.mxu0 %v2438
    %v4171 = vpop.f32.mrf.mxu0
    %v4172 = vadd.f32 %v4159, %v4171
    %v4173 = vpop.f32.mrf.mxu0
    %4174 = vdwg.mxu0
    %4175 = vmatpush.bf16.msra.mxu0 %v3470
    %4176 = vmatpush.bf16.msra.mxu0 %v3463
    %4177 = vmatpush.bf16.msra.mxu0 %v3456
    %4178 = vmatpush.bf16.msra.mxu0 %v3449
    %4179 = vmatpush.bf16.msra.mxu0 %v3442
    %4180 = vmatpush.bf16.msra.mxu0 %v3435
    %4181 = vmatpush.bf16.msra.mxu0 %v3428
    %4182 = vmatpush.bf16.msra.mxu0 %v3421
    %4183 = vmatmul.bf16.gmra.mxu0 %v2435
    %v4184 = vpop.f32.mrf.mxu0
    %v4185 = vadd.f32 %v2703, %v4184
    %v4186 = vpop.f32.mrf.mxu0
    %4187 = vdwg.mxu0
    %4188 = vmatpush.bf16.msra.mxu0 %v3526
    %4189 = vmatpush.bf16.msra.mxu0 %v3519
    %4190 = vmatpush.bf16.msra.mxu0 %v3512
    %4191 = vmatpush.bf16.msra.mxu0 %v3505
    %4192 = vmatpush.bf16.msra.mxu0 %v3498
    %4193 = vmatpush.bf16.msra.mxu0 %v3491
    %4194 = vmatpush.bf16.msra.mxu0 %v3484
    %4195 = vmatpush.bf16.msra.mxu0 %v3477
    %4196 = vmatmul.bf16.gmra.mxu0 %v2436
    %v4197 = vpop.f32.mrf.mxu0
    %v4198 = vadd.f32 %v4185, %v4197
    %v4199 = vpop.f32.mrf.mxu0
    %4200 = vdwg.mxu0
    %4201 = vmatpush.bf16.msra.mxu0 %v3582
    %4202 = vmatpush.bf16.msra.mxu0 %v3575
    %4203 = vmatpush.bf16.msra.mxu0 %v3568
    %4204 = vmatpush.bf16.msra.mxu0 %v3561
    %4205 = vmatpush.bf16.msra.mxu0 %v3554
    %4206 = vmatpush.bf16.msra.mxu0 %v3547
    %4207 = vmatpush.bf16.msra.mxu0 %v3540
    %4208 = vmatpush.bf16.msra.mxu0 %v3533
    %4209 = vmatmul.bf16.gmra.mxu0 %v2437
    %v4210 = vpop.f32.mrf.mxu0
    %v4211 = vadd.f32 %v4198, %v4210
    %v4212 = vpop.f32.mrf.mxu0
    %4213 = vdwg.mxu0
    %4214 = vmatpush.bf16.msra.mxu0 %v3638
    %4215 = vmatpush.bf16.msra.mxu0 %v3631
    %4216 = vmatpush.bf16.msra.mxu0 %v3624
    %4217 = vmatpush.bf16.msra.mxu0 %v3617
    %4218 = vmatpush.bf16.msra.mxu0 %v3610
    %4219 = vmatpush.bf16.msra.mxu0 %v3603
    %4220 = vmatpush.bf16.msra.mxu0 %v3596
    %4221 = vmatpush.bf16.msra.mxu0 %v3589
    %4222 = vmatmul.bf16.gmra.mxu0 %v2438
    %v4223 = vpop.f32.mrf.mxu0
    %v4224 = vadd.f32 %v4211, %v4223
    %v4225 = vpop.f32.mrf.mxu0
    %4226 = vdwg.mxu0
    %v4227 = vxor.u32 %v3912, 2147483648
    %v4228 = vxor.u32 %v3964, 2147483648
    %v4229 = vxor.u32 %v4016, 2147483648
    %v4230 = vxor.u32 %v4068, 2147483648
    %v4231 = vxor.u32 %v4120, 2147483648
    %v4232 = vxor.u32 %v4172, 2147483648
    %v4233 = vxor.u32 %v4224, 2147483648
    %v4234 = vmul.f32 %v4227, 1.442695
    %v4235 = vpow.pop %v4234
    %v4236 = vmul.f32 %v4228, 1.442695
    %v4237 = vpow.pop %v4236
    %v4238 = vmul.f32 %v4229, 1.442695
    %v4239 = vpow.pop %v4238
    %v4240 = vmul.f32 %v4230, 1.442695
    %v4241 = vpow.pop %v4240
    %v4242 = vmul.f32 %v4231, 1.442695
    %v4243 = vpow.pop %v4242
    %v4244 = vmul.f32 %v4232, 1.442695
    %v4245 = vpow.pop %v4244
    %v4246 = vmul.f32 %v4233, 1.442695
    %v4247 = vpow.pop %v4246
    %v4248 = vadd.f32 %v4235, 1.0
    %v4249 = vadd.f32 %v4237, 1.0
    %v4250 = vadd.f32 %v4239, 1.0
    %v4251 = vadd.f32 %v4241, 1.0
    %v4252 = vadd.f32 %v4243, 1.0
    %v4253 = vadd.f32 %v4245, 1.0
    %v4254 = vadd.f32 %v4247, 1.0
    %v4255 = vrcp.pop %v4248
    %v4256 = vmul.f32 %v4248, %v4255
    %v4257 = vsub.f32 1.0, %v4256
    %v4258 = vmul.f32 %v4255, %v4257
    %v4259 = vadd.f32 %v4255, %v4258
    %vm4260 = vweird.f32 %v4248
    %vm4261 = vweird.f32 %v4255
    %vm4262 = vmor %vm4260, %vm4261
    %v4263 = vsel %vm4262, %v4255, %v4259
    %v4264 = vand.u32 2147483647, %v4248
    %vm4265 = vcmp.eq.f32.partialorder %v4264, 8.507059e+37
    %v4266 = vand.u32 %v4248, 2147483648
    %v4267 = vor.u32 1.1754944e-38, %v4266
    %v4268 = vsel %vm4265, %v4267, %v4263
    %v4269 = vmul.f32 1.0, %v4268
    %v4270 = vrcp.pop %v4249
    %v4271 = vmul.f32 %v4249, %v4270
    %v4272 = vsub.f32 1.0, %v4271
    %v4273 = vmul.f32 %v4270, %v4272
    %v4274 = vadd.f32 %v4270, %v4273
    %vm4275 = vweird.f32 %v4249
    %vm4276 = vweird.f32 %v4270
    %vm4277 = vmor %vm4275, %vm4276
    %v4278 = vsel %vm4277, %v4270, %v4274
    %v4279 = vand.u32 2147483647, %v4249
    %vm4280 = vcmp.eq.f32.partialorder %v4279, 8.507059e+37
    %v4281 = vand.u32 %v4249, 2147483648
    %v4282 = vor.u32 1.1754944e-38, %v4281
    %v4283 = vsel %vm4280, %v4282, %v4278
    %v4284 = vmul.f32 1.0, %v4283
    %v4285 = vrcp.pop %v4250
    %v4286 = vmul.f32 %v4250, %v4285
    %v4287 = vsub.f32 1.0, %v4286
    %v4288 = vmul.f32 %v4285, %v4287
    %v4289 = vadd.f32 %v4285, %v4288
    %vm4290 = vweird.f32 %v4250
    %vm4291 = vweird.f32 %v4285
    %vm4292 = vmor %vm4290, %vm4291
    %v4293 = vsel %vm4292, %v4285, %v4289
    %v4294 = vand.u32 2147483647, %v4250
    %vm4295 = vcmp.eq.f32.partialorder %v4294, 8.507059e+37
    %v4296 = vand.u32 %v4250, 2147483648
    %v4297 = vor.u32 1.1754944e-38, %v4296
    %v4298 = vsel %vm4295, %v4297, %v4293
    %v4299 = vmul.f32 1.0, %v4298
    %v4300 = vrcp.pop %v4251
    %v4301 = vmul.f32 %v4251, %v4300
    %v4302 = vsub.f32 1.0, %v4301
    %v4303 = vmul.f32 %v4300, %v4302
    %v4304 = vadd.f32 %v4300, %v4303
    %vm4305 = vweird.f32 %v4251
    %vm4306 = vweird.f32 %v4300
    %vm4307 = vmor %vm4305, %vm4306
    %v4308 = vsel %vm4307, %v4300, %v4304
    %v4309 = vand.u32 2147483647, %v4251
    %vm4310 = vcmp.eq.f32.partialorder %v4309, 8.507059e+37
    %v4311 = vand.u32 %v4251, 2147483648
    %v4312 = vor.u32 1.1754944e-38, %v4311
    %v4313 = vsel %vm4310, %v4312, %v4308
    %v4314 = vmul.f32 1.0, %v4313
    %v4315 = vrcp.pop %v4252
    %v4316 = vmul.f32 %v4252, %v4315
    %v4317 = vsub.f32 1.0, %v4316
    %v4318 = vmul.f32 %v4315, %v4317
    %v4319 = vadd.f32 %v4315, %v4318
    %vm4320 = vweird.f32 %v4252
    %vm4321 = vweird.f32 %v4315
    %vm4322 = vmor %vm4320, %vm4321
    %v4323 = vsel %vm4322, %v4315, %v4319
    %v4324 = vand.u32 2147483647, %v4252
    %vm4325 = vcmp.eq.f32.partialorder %v4324, 8.507059e+37
    %v4326 = vand.u32 %v4252, 2147483648
    %v4327 = vor.u32 1.1754944e-38, %v4326
    %v4328 = vsel %vm4325, %v4327, %v4323
    %v4329 = vmul.f32 1.0, %v4328
    %v4330 = vrcp.pop %v4253
    %v4331 = vmul.f32 %v4253, %v4330
    %v4332 = vsub.f32 1.0, %v4331
    %v4333 = vmul.f32 %v4330, %v4332
    %v4334 = vadd.f32 %v4330, %v4333
    %vm4335 = vweird.f32 %v4253
    %vm4336 = vweird.f32 %v4330
    %vm4337 = vmor %vm4335, %vm4336
    %v4338 = vsel %vm4337, %v4330, %v4334
    %v4339 = vand.u32 2147483647, %v4253
    %vm4340 = vcmp.eq.f32.partialorder %v4339, 8.507059e+37
    %v4341 = vand.u32 %v4253, 2147483648
    %v4342 = vor.u32 1.1754944e-38, %v4341
    %v4343 = vsel %vm4340, %v4342, %v4338
    %v4344 = vmul.f32 1.0, %v4343
    %v4345 = vrcp.pop %v4254
    %v4346 = vmul.f32 %v4254, %v4345
    %v4347 = vsub.f32 1.0, %v4346
    %v4348 = vmul.f32 %v4345, %v4347
    %v4349 = vadd.f32 %v4345, %v4348
    %vm4350 = vweird.f32 %v4254
    %vm4351 = vweird.f32 %v4345
    %vm4352 = vmor %vm4350, %vm4351
    %v4353 = vsel %vm4352, %v4345, %v4349
    %v4354 = vand.u32 2147483647, %v4254
    %vm4355 = vcmp.eq.f32.partialorder %v4354, 8.507059e+37
    %v4356 = vand.u32 %v4254, 2147483648
    %v4357 = vor.u32 1.1754944e-38, %v4356
    %v4358 = vsel %vm4355, %v4357, %v4353
    %v4359 = vmul.f32 1.0, %v4358
    %4360 = vst [vmem:[#allocation8] sm:$0xff] %v4269
    %4361 = vst [vmem:[#allocation8 + $0x8] sm:$0xff] %v4284
    %4362 = vst [vmem:[#allocation8 + $0x10] sm:$0xff] %v4299
    %4363 = vst [vmem:[#allocation8 + $0x18] sm:$0xff] %v4314
    %4364 = vst [vmem:[#allocation8 + $0x20] sm:$0xff] %v4329
    %4365 = vst [vmem:[#allocation8 + $0x28] sm:$0xff] %v4344
    %4366 = vst [vmem:[#allocation8 + $0x30] sm:$0xff] %v4359
    %4367 = vst [vmem:[%s11] sm:$0xff] %v2115
    %4368 = vst [vmem:[%s11 + $0x8] sm:$0xff] %v2167
    // Predicated region
    $region54: #{vae_mnist_forward.1} parent=1 // pred_check
      _
    $region55: #{vae_mnist_forward.1} parent=1 // pred_check_branch
      %4370 = sbr.rel (0) target = $region57
    $region56: #{vae_mnist_forward.1} parent=1 // pred_region
      %4372 = vsyncadd [#allocation4], 0
      %s4374 = sshll.u32 [#allocation8], 4
      %s4375 = int_to_ptr.vmem [resolvable:$true] %s4374
      %s4376 = sshll.u32 %s10, 4
      %s4377 = int_to_ptr.hbm [resolvable:$true] %s4376
      %4379 = dma.vmem_to_hbm [thread:$0]  %s4375, 896, %s4377, [#allocation4]
    $region57: #{vae_mnist_forward.1} parent=1 // pred_fallthru
      _
    // Predicated region
    $region58: #{vae_mnist_forward.1} parent=1 // pred_check
      _
    $region59: #{vae_mnist_forward.1} parent=1 // pred_check_branch
      %4381 = sbr.rel (0) target = $region61
    $region60: #{vae_mnist_forward.1} parent=1 // pred_region
      _
    $region61: #{vae_mnist_forward.1} parent=1 // pred_fallthru
      _
    // Predicated region
    $region62: #{vae_mnist_forward.1} parent=1 // pred_check
      _
    $region63: #{vae_mnist_forward.1} parent=1 // pred_check_branch
      %4383 = sbr.rel (0) target = $region65
    $region64: #{vae_mnist_forward.1} parent=1 // pred_region
      %4385 = dma.done [#allocation4], 896
    $region65: #{vae_mnist_forward.1} parent=1 // pred_fallthru
      _
    // Predicated region
    $region66: #{vae_mnist_forward.1} parent=1 // pred_check
      _
    $region67: #{vae_mnist_forward.1} parent=1 // pred_check_branch
      %4387 = sbr.rel (0) target = $region69
    $region68: #{vae_mnist_forward.1} parent=1 // pred_region
      _
    $region69: #{vae_mnist_forward.1} parent=1 // pred_fallthru
      _
    %4388 = vsyncpa [#allocation3], 1
    %4389 = vsyncpa [#allocation6], 1
    %4390 = vsyncpa [#allocation4], 1

</llo_original>
